<compile_context>
chip_gen: v7x
topology: tpu7x:2x2x1
jax: 0.10.0
libtpu: 0.0.40
codegen_flags: <defaults>
</compile_context>

<pallas_src>
import jax
import jax.numpy as jnp
import numpy as np
from jax import lax
from jax.experimental import pallas as pl
from jax.experimental.pallas import tpu as pltpu


# --------------------------- Pallas kernel ---------------------------------
def _make_bigru_kernel(T, B, H):
    """Bidirectional GRU recurrence; whole sequence in a single kernel call."""

    def kernel(gx_ref, whh_ref, bhh_ref, out_ref, hid_ref, bwd_buf):
        # gx_ref : (T, B, 6H) f32  row i holds fwd gate inputs of time i and
        #                          bwd gate inputs of time T-1-i (glue-built),
        #                          lane layout [r_f, r_b, z_f, z_b, n_f, n_b]
        # whh_ref: (2H, 6H)   f32  fused recurrent weights (block structure)
        # bhh_ref: (1, 6H)    f32  fused recurrent bias
        # out_ref: (T, B, H)  f32  summed fwd+bwd outputs
        # hid_ref: (2, B, H)  f32  final hidden: [forward, backward]
        # bwd_buf: (T, B, H)  f32  VMEM scratch for backward-direction outputs
        whh = whh_ref[...]
        # Hoist the bias broadcast out of the loop (JAX does not CSE it).
        bhh = jnp.broadcast_to(bhh_ref[...], (B, 6 * H))

        def step(i, h_cat):
            # h_cat: (B, 2H) = [h_fwd | h_bwd], carried in vregs.
            gx = gx_ref[i]                                          # (B, 6H)
            gh = jnp.dot(h_cat, whh,
                         preferred_element_type=jnp.float32,
                         precision=lax.Precision.HIGHEST) + bhh     # (B, 6H)
            a = gx + gh
            rz = jax.nn.sigmoid(a[:, :4 * H])          # [r_f r_b z_f z_b]
            r = rz[:, :2 * H]
            z = rz[:, 2 * H:]
            n = jnp.tanh(gx[:, 4 * H:] + r * gh[:, 4 * H:])         # [n_f n_b]
            h_new = (1.0 - z) * n + z * h_cat                       # (B, 2H)
            out_ref[i] = h_new[:, :H]               # forward output at time i
            bwd_buf[T - 1 - i] = h_new[:, H:]       # backward output at T-1-i
            return h_new

        h0 = jnp.zeros((B, 2 * H), jnp.float32)     # hidden=None -> zero init
        h_last = lax.fori_loop(0, T, step, h0, unroll=True)

        # fwd + bwd sum done in VMEM: single output, no extra HBM traffic.
        out_ref[...] = out_ref[...] + bwd_buf[...]
        hid_ref[0] = h_last[:, :H]      # forward final hidden (after t = T-1)
        hid_ref[1] = h_last[:, H:]      # backward final hidden (after t = 0)

    return kernel


# --------------------------- wrapper / glue ---------------------------------
def _gate(x, g, H):
    """Slice gate g (0=r, 1=z, 2=n) out of a [..., 3H] array."""
    return x[..., g * H:(g + 1) * H]


def encoder_forward(src, params):
    """src: (T, B) int32 token ids.  Returns (outputs (T,B,H), hidden (2,B,H))."""
    T, B = src.shape
    f32 = jnp.float32
    embed_tbl = params["embed"]                     # (V, E)
    E = embed_tbl.shape[1]
    H = params["whh_f"].shape[1] // 3               # whh_*: (H, 3H) pre-transposed

    # ---- glue: embedding lookup (gather) ----
    embedded = jnp.take(embed_tbl, src, axis=0).astype(f32)            # (T, B, E)

    # ---- glue: input projection for ALL timesteps & BOTH directions as one
    #      large lane-dense GEMM, hoisted off the serial recurrence ----
    wih_cat = jnp.concatenate([params["wih_f"], params["wih_b"]], axis=1)  # (E, 6H)
    bih_cat = jnp.concatenate([params["bih_f"], params["bih_b"]], axis=1)  # (1, 6H)
    gx_all = jnp.dot(embedded.reshape(T * B, E), wih_cat,
                     precision=lax.Precision.HIGHEST) + bih_cat
    gx_all = gx_all.reshape(T, B, 6 * H)
    gx_f = gx_all[..., :3 * H]                 # fwd gates [r z n] at time t
    gx_b = gx_all[..., 3 * H:][::-1]           # bwd gates [r z n] at time T-1-t

    # Interleave per gate so the kernel's per-step load is one contiguous
    # (B, 6H) block with layout [r_f, r_b, z_f, z_b, n_f, n_b].
    gx_fused = jnp.concatenate(
        [_gate(gx_f, 0, H), _gate(gx_b, 0, H),
         _gate(gx_f, 1, H), _gate(gx_b, 1, H),
         _gate(gx_f, 2, H), _gate(gx_b, 2, H)], axis=-1)            # (T, B, 6H)

    # ---- glue: fuse the two directions' recurrent weights into one (2H, 6H)
    #      matrix so each step needs a single MXU matmul ----
    zeros_h = jnp.zeros((H, H), f32)
    fcol = lambda w: jnp.concatenate([w, zeros_h], axis=0)          # fwd rows live
    bcol = lambda w: jnp.concatenate([zeros_h, w], axis=0)          # bwd rows live
    whh_f, whh_b = params["whh_f"], params["whh_b"]
    whh_fused = jnp.concatenate(
        [fcol(_gate(whh_f, 0, H)), bcol(_gate(whh_b, 0, H)),
         fcol(_gate(whh_f, 1, H)), bcol(_gate(whh_b, 1, H)),
         fcol(_gate(whh_f, 2, H)), bcol(_gate(whh_b, 2, H))], axis=1)   # (2H, 6H)
    bhh_f, bhh_b = params["bhh_f"], params["bhh_b"]
    bhh_fused = jnp.concatenate(
        [_gate(bhh_f, 0, H), _gate(bhh_b, 0, H),
         _gate(bhh_f, 1, H), _gate(bhh_b, 1, H),
         _gate(bhh_f, 2, H), _gate(bhh_b, 2, H)], axis=1)           # (1, 6H)

    kernel = _make_bigru_kernel(T, B, H)
    vmem = pltpu.MemorySpace.VMEM
    outputs, hidden = pl.pallas_call(
        kernel,
        out_shape=(jax.ShapeDtypeStruct((T, B, H), f32),
                   jax.ShapeDtypeStruct((2, B, H), f32)),
        in_specs=[pl.BlockSpec(memory_space=vmem)] * 3,
        out_specs=(pl.BlockSpec(memory_space=vmem),
                   pl.BlockSpec(memory_space=vmem)),
        scratch_shapes=[pltpu.VMEM((T, B, H), f32)],
    )(gx_fused, whh_fused, bhh_fused)

    return outputs, hidden


# ---------------- pure-JAX reference (for correctness check) ----------------
def _gru_dir_ref(x, h0, wih_t, whh_t, bih, bhh):
    H = h0.shape[-1]

    def step(h, xt):
        gx = jnp.dot(xt, wih_t, precision=lax.Precision.HIGHEST) + bih
        gh = jnp.dot(h, whh_t, precision=lax.Precision.HIGHEST) + bhh
        r = jax.nn.sigmoid(gx[:, :H] + gh[:, :H])
        z = jax.nn.sigmoid(gx[:, H:2 * H] + gh[:, H:2 * H])
        n = jnp.tanh(gx[:, 2 * H:] + r * gh[:, 2 * H:])
        h_new = (1.0 - z) * n + z * h
        return h_new, h_new

    hT, ys = jax.lax.scan(step, h0, x)
    return ys, hT


def encoder_reference(src, params):
    embedded = jnp.take(params["embed"], src, axis=0).astype(jnp.float32)
    B = src.shape[1]
    H = params["whh_f"].shape[1] // 3
    h0 = jnp.zeros((B, H), jnp.float32)
    out_f, hf = _gru_dir_ref(embedded, h0, params["wih_f"], params["whh_f"],
                             params["bih_f"], params["bhh_f"])
    out_b_rev, hb = _gru_dir_ref(embedded[::-1], h0, params["wih_b"],
                                 params["whh_b"], params["bih_b"], params["bhh_b"])
    out_b = out_b_rev[::-1]
    return out_f + out_b, jnp.stack([hf, hb], axis=0)


# ---------------- deterministic parameter init ----------------
def init_params(key, vocab, E, H):
    ks = jax.random.split(key, 9)
    k = 1.0 / np.sqrt(H)
    u = lambda kk, shape: jax.random.uniform(kk, shape, jnp.float32, -k, k)
    return {
        "embed": jax.random.normal(ks[0], (vocab, E), jnp.float32),  # like nn.Embedding
        # weights stored pre-transposed: W_ih^T (E,3H), W_hh^T (H,3H); gate order r,z,n
        "wih_f": u(ks[1], (E, 3 * H)),
        "whh_f": u(ks[2], (H, 3 * H)),
        "bih_f": u(ks[3], (1, 3 * H)),
        "bhh_f": u(ks[4], (1, 3 * H)),
        "wih_b": u(ks[5], (E, 3 * H)),
        "whh_b": u(ks[6], (H, 3 * H)),
        "bih_b": u(ks[7], (1, 3 * H)),
        "bhh_b": u(ks[8], (1, 3 * H)),
    }


if __name__ == "__main__":
    # Small shapes: vocab=50, embed=32, hidden=32, seq=8, batch=4
    VOCAB, E, H, T, B = 50, 32, 32, 8, 4
    key = jax.random.PRNGKey(0)
    pkey, skey = jax.random.split(key)
    params = init_params(pkey, VOCAB, E, H)
    src = jax.random.randint(skey, (T, B), 0, VOCAB, dtype=jnp.int32)

    outputs, hidden = jax.jit(encoder_forward)(src, params)
    jax.block_until_ready((outputs, hidden))

    ref_out, ref_hid = encoder_reference(src, params)
    np.testing.assert_allclose(np.asarray(outputs), np.asarray(ref_out),
                               rtol=1e-4, atol=1e-4)
    np.testing.assert_allclose(np.asarray(hidden), np.asarray(ref_hid),
                               rtol=1e-4, atol=1e-4)

    assert outputs.shape == (T, B, H) and hidden.shape == (2, B, H)
    print("KERNEL_OK")
</pallas_src>

<mosaic_0001>
module attributes {stable_mosaic.version = 11 : i64} {
  func.func @kernel(%arg0: memref<8x4x192xf32, #tpu.memory_space<vmem>>, %arg1: memref<64x192xf32, #tpu.memory_space<vmem>>, %arg2: memref<1x192xf32, #tpu.memory_space<vmem>>, %arg3: memref<8x4x32xf32, #tpu.memory_space<vmem>>, %arg4: memref<2x4x32xf32, #tpu.memory_space<vmem>>, %arg5: memref<8x4x32xf32, #tpu.memory_space<vmem>>) attributes {dimension_semantics = [], scalar_prefetch = 0 : i64, scratch_operands = 1 : i64, tpu.core_type = #tpu.core_type<tc>} {
    %c0 = arith.constant 0 : index
    %c0_0 = arith.constant 0 : index
    %0 = vector.load %arg1[%c0, %c0_0] : memref<64x192xf32, #tpu.memory_space<vmem>>, vector<64x192xf32>
    %c0_1 = arith.constant 0 : index
    %c0_2 = arith.constant 0 : index
    %1 = vector.load %arg2[%c0_1, %c0_2] : memref<1x192xf32, #tpu.memory_space<vmem>>, vector<1x192xf32>
    %2 = vector.shape_cast %1 : vector<1x192xf32> to vector<1x192xf32>
    %3 = vector.broadcast %2 : vector<1x192xf32> to vector<4x192xf32>
    %cst = arith.constant 0.000000e+00 : f32
    %4 = vector.broadcast %cst : f32 to vector<4x64xf32>
    %c0_i32 = arith.constant 0 : i32
    %5 = arith.index_cast %c0_i32 : i32 to index
    %c0_3 = arith.constant 0 : index
    %c0_4 = arith.constant 0 : index
    %6 = vector.load %arg0[%5, %c0_3, %c0_4] : memref<8x4x192xf32, #tpu.memory_space<vmem>>, vector<1x4x192xf32>
    %7 = vector.shape_cast %6 : vector<1x4x192xf32> to vector<4x192xf32>
    %cst_5 = arith.constant dense<0.000000e+00> : vector<4x192xf32>
    %8 = tpu.matmul %4, %0, %cst_5 {dimension_numbers = #tpu.dot_dimension_numbers<[1], [0], [0], [1], [0, 0, 1, 1], [], []>, precision = #tpu.contract_precision<fp32>} : vector<4x64xf32>, vector<64x192xf32>, vector<4x192xf32> -> vector<4x192xf32>
    %9 = arith.addf %8, %3 : vector<4x192xf32>
    %10 = arith.addf %7, %9 : vector<4x192xf32>
    %11 = vector.extract_strided_slice %10 {offsets = [0, 0], sizes = [4, 128], strides = [1, 1]} : vector<4x192xf32> to vector<4x128xf32>
    %12 = arith.negf %11 : vector<4x128xf32>
    %13 = math.exp %12 : vector<4x128xf32>
    %cst_6 = arith.constant 1.000000e+00 : f32
    %14 = vector.broadcast %cst_6 : f32 to vector<4x128xf32>
    %15 = arith.addf %14, %13 : vector<4x128xf32>
    %16 = arith.divf %14, %15 : vector<4x128xf32>
    %17 = vector.extract_strided_slice %16 {offsets = [0, 0], sizes = [4, 64], strides = [1, 1]} : vector<4x128xf32> to vector<4x64xf32>
    %18 = vector.extract_strided_slice %16 {offsets = [0, 64], sizes = [4, 64], strides = [1, 1]} : vector<4x128xf32> to vector<4x64xf32>
    %19 = vector.extract_strided_slice %7 {offsets = [0, 128], sizes = [4, 64], strides = [1, 1]} : vector<4x192xf32> to vector<4x64xf32>
    %20 = vector.extract_strided_slice %9 {offsets = [0, 128], sizes = [4, 64], strides = [1, 1]} : vector<4x192xf32> to vector<4x64xf32>
    %21 = arith.mulf %17, %20 : vector<4x64xf32>
    %22 = arith.addf %19, %21 : vector<4x64xf32>
    %23 = math.tanh %22 : vector<4x64xf32>
    %cst_7 = arith.constant 1.000000e+00 : f32
    %24 = vector.broadcast %cst_7 : f32 to vector<4x64xf32>
    %25 = arith.subf %24, %18 : vector<4x64xf32>
    %26 = arith.mulf %25, %23 : vector<4x64xf32>
    %27 = arith.mulf %18, %4 : vector<4x64xf32>
    %28 = arith.addf %26, %27 : vector<4x64xf32>
    %29 = vector.extract_strided_slice %28 {offsets = [0, 0], sizes = [4, 32], strides = [1, 1]} : vector<4x64xf32> to vector<4x32xf32>
    %30 = arith.index_cast %c0_i32 : i32 to index
    %c0_8 = arith.constant 0 : index
    %c0_9 = arith.constant 0 : index
    %31 = vector.load %arg3[%30, %c0_8, %c0_9] : memref<8x4x32xf32, #tpu.memory_space<vmem>>, vector<1x4x32xf32>
    %32 = vector.shape_cast %31 : vector<1x4x32xf32> to vector<4x32xf32>
    %33 = vector.shape_cast %29 : vector<4x32xf32> to vector<1x4x32xf32>
    tpu.vector_store %arg3[%30, %c0_8, %c0_9], %33 {strides = array<i32>} : memref<8x4x32xf32, #tpu.memory_space<vmem>>, vector<1x4x32xf32>,
    %34 = vector.extract_strided_slice %28 {offsets = [0, 32], sizes = [4, 32], strides = [1, 1]} : vector<4x64xf32> to vector<4x32xf32>
    %c7_i32 = arith.constant 7 : i32
    %35 = arith.subi %c7_i32, %c0_i32 : i32
    %36 = arith.index_cast %35 : i32 to index
    %c0_10 = arith.constant 0 : index
    %c0_11 = arith.constant 0 : index
    %37 = vector.load %arg5[%36, %c0_10, %c0_11] : memref<8x4x32xf32, #tpu.memory_space<vmem>>, vector<1x4x32xf32>
    %38 = vector.shape_cast %37 : vector<1x4x32xf32> to vector<4x32xf32>
    %39 = vector.shape_cast %34 : vector<4x32xf32> to vector<1x4x32xf32>
    tpu.vector_store %arg5[%36, %c0_10, %c0_11], %39 {strides = array<i32>} : memref<8x4x32xf32, #tpu.memory_space<vmem>>, vector<1x4x32xf32>,
    %c1_i32 = arith.constant 1 : i32
    %40 = arith.index_cast %c1_i32 : i32 to index
    %c0_12 = arith.constant 0 : index
    %c0_13 = arith.constant 0 : index
    %41 = vector.load %arg0[%40, %c0_12, %c0_13] : memref<8x4x192xf32, #tpu.memory_space<vmem>>, vector<1x4x192xf32>
    %42 = vector.shape_cast %41 : vector<1x4x192xf32> to vector<4x192xf32>
    %cst_14 = arith.constant dense<0.000000e+00> : vector<4x192xf32>
    %43 = tpu.matmul %28, %0, %cst_14 {dimension_numbers = #tpu.dot_dimension_numbers<[1], [0], [0], [1], [0, 0, 1, 1], [], []>, precision = #tpu.contract_precision<fp32>} : vector<4x64xf32>, vector<64x192xf32>, vector<4x192xf32> -> vector<4x192xf32>
    %44 = arith.addf %43, %3 : vector<4x192xf32>
    %45 = arith.addf %42, %44 : vector<4x192xf32>
    %46 = vector.extract_strided_slice %45 {offsets = [0, 0], sizes = [4, 128], strides = [1, 1]} : vector<4x192xf32> to vector<4x128xf32>
    %47 = arith.negf %46 : vector<4x128xf32>
    %48 = math.exp %47 : vector<4x128xf32>
    %cst_15 = arith.constant 1.000000e+00 : f32
    %49 = vector.broadcast %cst_15 : f32 to vector<4x128xf32>
    %50 = arith.addf %49, %48 : vector<4x128xf32>
    %51 = arith.divf %49, %50 : vector<4x128xf32>
    %52 = vector.extract_strided_slice %51 {offsets = [0, 0], sizes = [4, 64], strides = [1, 1]} : vector<4x128xf32> to vector<4x64xf32>
    %53 = vector.extract_strided_slice %51 {offsets = [0, 64], sizes = [4, 64], strides = [1, 1]} : vector<4x128xf32> to vector<4x64xf32>
    %54 = vector.extract_strided_slice %42 {offsets = [0, 128], sizes = [4, 64], strides = [1, 1]} : vector<4x192xf32> to vector<4x64xf32>
    %55 = vector.extract_strided_slice %44 {offsets = [0, 128], sizes = [4, 64], strides = [1, 1]} : vector<4x192xf32> to vector<4x64xf32>
    %56 = arith.mulf %52, %55 : vector<4x64xf32>
    %57 = arith.addf %54, %56 : vector<4x64xf32>
    %58 = math.tanh %57 : vector<4x64xf32>
    %cst_16 = arith.constant 1.000000e+00 : f32
    %59 = vector.broadcast %cst_16 : f32 to vector<4x64xf32>
    %60 = arith.subf %59, %53 : vector<4x64xf32>
    %61 = arith.mulf %60, %58 : vector<4x64xf32>
    %62 = arith.mulf %53, %28 : vector<4x64xf32>
    %63 = arith.addf %61, %62 : vector<4x64xf32>
    %64 = vector.extract_strided_slice %63 {offsets = [0, 0], sizes = [4, 32], strides = [1, 1]} : vector<4x64xf32> to vector<4x32xf32>
    %65 = arith.index_cast %c1_i32 : i32 to index
    %c0_17 = arith.constant 0 : index
    %c0_18 = arith.constant 0 : index
    %66 = vector.load %arg3[%65, %c0_17, %c0_18] : memref<8x4x32xf32, #tpu.memory_space<vmem>>, vector<1x4x32xf32>
    %67 = vector.shape_cast %66 : vector<1x4x32xf32> to vector<4x32xf32>
    %68 = vector.shape_cast %64 : vector<4x32xf32> to vector<1x4x32xf32>
    tpu.vector_store %arg3[%65, %c0_17, %c0_18], %68 {strides = array<i32>} : memref<8x4x32xf32, #tpu.memory_space<vmem>>, vector<1x4x32xf32>,
    %69 = vector.extract_strided_slice %63 {offsets = [0, 32], sizes = [4, 32], strides = [1, 1]} : vector<4x64xf32> to vector<4x32xf32>
    %c7_i32_19 = arith.constant 7 : i32
    %70 = arith.subi %c7_i32_19, %c1_i32 : i32
    %71 = arith.index_cast %70 : i32 to index
    %c0_20 = arith.constant 0 : index
    %c0_21 = arith.constant 0 : index
    %72 = vector.load %arg5[%71, %c0_20, %c0_21] : memref<8x4x32xf32, #tpu.memory_space<vmem>>, vector<1x4x32xf32>
    %73 = vector.shape_cast %72 : vector<1x4x32xf32> to vector<4x32xf32>
    %74 = vector.shape_cast %69 : vector<4x32xf32> to vector<1x4x32xf32>
    tpu.vector_store %arg5[%71, %c0_20, %c0_21], %74 {strides = array<i32>} : memref<8x4x32xf32, #tpu.memory_space<vmem>>, vector<1x4x32xf32>,
    %c2_i32 = arith.constant 2 : i32
    %75 = arith.index_cast %c2_i32 : i32 to index
    %c0_22 = arith.constant 0 : index
    %c0_23 = arith.constant 0 : index
    %76 = vector.load %arg0[%75, %c0_22, %c0_23] : memref<8x4x192xf32, #tpu.memory_space<vmem>>, vector<1x4x192xf32>
    %77 = vector.shape_cast %76 : vector<1x4x192xf32> to vector<4x192xf32>
    %cst_24 = arith.constant dense<0.000000e+00> : vector<4x192xf32>
    %78 = tpu.matmul %63, %0, %cst_24 {dimension_numbers = #tpu.dot_dimension_numbers<[1], [0], [0], [1], [0, 0, 1, 1], [], []>, precision = #tpu.contract_precision<fp32>} : vector<4x64xf32>, vector<64x192xf32>, vector<4x192xf32> -> vector<4x192xf32>
    %79 = arith.addf %78, %3 : vector<4x192xf32>
    %80 = arith.addf %77, %79 : vector<4x192xf32>
    %81 = vector.extract_strided_slice %80 {offsets = [0, 0], sizes = [4, 128], strides = [1, 1]} : vector<4x192xf32> to vector<4x128xf32>
    %82 = arith.negf %81 : vector<4x128xf32>
    %83 = math.exp %82 : vector<4x128xf32>
    %cst_25 = arith.constant 1.000000e+00 : f32
    %84 = vector.broadcast %cst_25 : f32 to vector<4x128xf32>
    %85 = arith.addf %84, %83 : vector<4x128xf32>
    %86 = arith.divf %84, %85 : vector<4x128xf32>
    %87 = vector.extract_strided_slice %86 {offsets = [0, 0], sizes = [4, 64], strides = [1, 1]} : vector<4x128xf32> to vector<4x64xf32>
    %88 = vector.extract_strided_slice %86 {offsets = [0, 64], sizes = [4, 64], strides = [1, 1]} : vector<4x128xf32> to vector<4x64xf32>
    %89 = vector.extract_strided_slice %77 {offsets = [0, 128], sizes = [4, 64], strides = [1, 1]} : vector<4x192xf32> to vector<4x64xf32>
    %90 = vector.extract_strided_slice %79 {offsets = [0, 128], sizes = [4, 64], strides = [1, 1]} : vector<4x192xf32> to vector<4x64xf32>
    %91 = arith.mulf %87, %90 : vector<4x64xf32>
    %92 = arith.addf %89, %91 : vector<4x64xf32>
    %93 = math.tanh %92 : vector<4x64xf32>
    %cst_26 = arith.constant 1.000000e+00 : f32
    %94 = vector.broadcast %cst_26 : f32 to vector<4x64xf32>
    %95 = arith.subf %94, %88 : vector<4x64xf32>
    %96 = arith.mulf %95, %93 : vector<4x64xf32>
    %97 = arith.mulf %88, %63 : vector<4x64xf32>
    %98 = arith.addf %96, %97 : vector<4x64xf32>
    %99 = vector.extract_strided_slice %98 {offsets = [0, 0], sizes = [4, 32], strides = [1, 1]} : vector<4x64xf32> to vector<4x32xf32>
    %100 = arith.index_cast %c2_i32 : i32 to index
    %c0_27 = arith.constant 0 : index
    %c0_28 = arith.constant 0 : index
    %101 = vector.load %arg3[%100, %c0_27, %c0_28] : memref<8x4x32xf32, #tpu.memory_space<vmem>>, vector<1x4x32xf32>
    %102 = vector.shape_cast %101 : vector<1x4x32xf32> to vector<4x32xf32>
    %103 = vector.shape_cast %99 : vector<4x32xf32> to vector<1x4x32xf32>
    tpu.vector_store %arg3[%100, %c0_27, %c0_28], %103 {strides = array<i32>} : memref<8x4x32xf32, #tpu.memory_space<vmem>>, vector<1x4x32xf32>,
    %104 = vector.extract_strided_slice %98 {offsets = [0, 32], sizes = [4, 32], strides = [1, 1]} : vector<4x64xf32> to vector<4x32xf32>
    %c7_i32_29 = arith.constant 7 : i32
    %105 = arith.subi %c7_i32_29, %c2_i32 : i32
    %106 = arith.index_cast %105 : i32 to index
    %c0_30 = arith.constant 0 : index
    %c0_31 = arith.constant 0 : index
    %107 = vector.load %arg5[%106, %c0_30, %c0_31] : memref<8x4x32xf32, #tpu.memory_space<vmem>>, vector<1x4x32xf32>
    %108 = vector.shape_cast %107 : vector<1x4x32xf32> to vector<4x32xf32>
    %109 = vector.shape_cast %104 : vector<4x32xf32> to vector<1x4x32xf32>
    tpu.vector_store %arg5[%106, %c0_30, %c0_31], %109 {strides = array<i32>} : memref<8x4x32xf32, #tpu.memory_space<vmem>>, vector<1x4x32xf32>,
    %c3_i32 = arith.constant 3 : i32
    %110 = arith.index_cast %c3_i32 : i32 to index
    %c0_32 = arith.constant 0 : index
    %c0_33 = arith.constant 0 : index
    %111 = vector.load %arg0[%110, %c0_32, %c0_33] : memref<8x4x192xf32, #tpu.memory_space<vmem>>, vector<1x4x192xf32>
    %112 = vector.shape_cast %111 : vector<1x4x192xf32> to vector<4x192xf32>
    %cst_34 = arith.constant dense<0.000000e+00> : vector<4x192xf32>
    %113 = tpu.matmul %98, %0, %cst_34 {dimension_numbers = #tpu.dot_dimension_numbers<[1], [0], [0], [1], [0, 0, 1, 1], [], []>, precision = #tpu.contract_precision<fp32>} : vector<4x64xf32>, vector<64x192xf32>, vector<4x192xf32> -> vector<4x192xf32>
    %114 = arith.addf %113, %3 : vector<4x192xf32>
    %115 = arith.addf %112, %114 : vector<4x192xf32>
    %116 = vector.extract_strided_slice %115 {offsets = [0, 0], sizes = [4, 128], strides = [1, 1]} : vector<4x192xf32> to vector<4x128xf32>
    %117 = arith.negf %116 : vector<4x128xf32>
    %118 = math.exp %117 : vector<4x128xf32>
    %cst_35 = arith.constant 1.000000e+00 : f32
    %119 = vector.broadcast %cst_35 : f32 to vector<4x128xf32>
    %120 = arith.addf %119, %118 : vector<4x128xf32>
    %121 = arith.divf %119, %120 : vector<4x128xf32>
    %122 = vector.extract_strided_slice %121 {offsets = [0, 0], sizes = [4, 64], strides = [1, 1]} : vector<4x128xf32> to vector<4x64xf32>
    %123 = vector.extract_strided_slice %121 {offsets = [0, 64], sizes = [4, 64], strides = [1, 1]} : vector<4x128xf32> to vector<4x64xf32>
    %124 = vector.extract_strided_slice %112 {offsets = [0, 128], sizes = [4, 64], strides = [1, 1]} : vector<4x192xf32> to vector<4x64xf32>
    %125 = vector.extract_strided_slice %114 {offsets = [0, 128], sizes = [4, 64], strides = [1, 1]} : vector<4x192xf32> to vector<4x64xf32>
    %126 = arith.mulf %122, %125 : vector<4x64xf32>
    %127 = arith.addf %124, %126 : vector<4x64xf32>
    %128 = math.tanh %127 : vector<4x64xf32>
    %cst_36 = arith.constant 1.000000e+00 : f32
    %129 = vector.broadcast %cst_36 : f32 to vector<4x64xf32>
    %130 = arith.subf %129, %123 : vector<4x64xf32>
    %131 = arith.mulf %130, %128 : vector<4x64xf32>
    %132 = arith.mulf %123, %98 : vector<4x64xf32>
    %133 = arith.addf %131, %132 : vector<4x64xf32>
    %134 = vector.extract_strided_slice %133 {offsets = [0, 0], sizes = [4, 32], strides = [1, 1]} : vector<4x64xf32> to vector<4x32xf32>
    %135 = arith.index_cast %c3_i32 : i32 to index
    %c0_37 = arith.constant 0 : index
    %c0_38 = arith.constant 0 : index
    %136 = vector.load %arg3[%135, %c0_37, %c0_38] : memref<8x4x32xf32, #tpu.memory_space<vmem>>, vector<1x4x32xf32>
    %137 = vector.shape_cast %136 : vector<1x4x32xf32> to vector<4x32xf32>
    %138 = vector.shape_cast %134 : vector<4x32xf32> to vector<1x4x32xf32>
    tpu.vector_store %arg3[%135, %c0_37, %c0_38], %138 {strides = array<i32>} : memref<8x4x32xf32, #tpu.memory_space<vmem>>, vector<1x4x32xf32>,
    %139 = vector.extract_strided_slice %133 {offsets = [0, 32], sizes = [4, 32], strides = [1, 1]} : vector<4x64xf32> to vector<4x32xf32>
    %c7_i32_39 = arith.constant 7 : i32
    %140 = arith.subi %c7_i32_39, %c3_i32 : i32
    %141 = arith.index_cast %140 : i32 to index
    %c0_40 = arith.constant 0 : index
    %c0_41 = arith.constant 0 : index
    %142 = vector.load %arg5[%141, %c0_40, %c0_41] : memref<8x4x32xf32, #tpu.memory_space<vmem>>, vector<1x4x32xf32>
    %143 = vector.shape_cast %142 : vector<1x4x32xf32> to vector<4x32xf32>
    %144 = vector.shape_cast %139 : vector<4x32xf32> to vector<1x4x32xf32>
    tpu.vector_store %arg5[%141, %c0_40, %c0_41], %144 {strides = array<i32>} : memref<8x4x32xf32, #tpu.memory_space<vmem>>, vector<1x4x32xf32>,
    %c4_i32 = arith.constant 4 : i32
    %145 = arith.index_cast %c4_i32 : i32 to index
    %c0_42 = arith.constant 0 : index
    %c0_43 = arith.constant 0 : index
    %146 = vector.load %arg0[%145, %c0_42, %c0_43] : memref<8x4x192xf32, #tpu.memory_space<vmem>>, vector<1x4x192xf32>
    %147 = vector.shape_cast %146 : vector<1x4x192xf32> to vector<4x192xf32>
    %cst_44 = arith.constant dense<0.000000e+00> : vector<4x192xf32>
    %148 = tpu.matmul %133, %0, %cst_44 {dimension_numbers = #tpu.dot_dimension_numbers<[1], [0], [0], [1], [0, 0, 1, 1], [], []>, precision = #tpu.contract_precision<fp32>} : vector<4x64xf32>, vector<64x192xf32>, vector<4x192xf32> -> vector<4x192xf32>
    %149 = arith.addf %148, %3 : vector<4x192xf32>
    %150 = arith.addf %147, %149 : vector<4x192xf32>
    %151 = vector.extract_strided_slice %150 {offsets = [0, 0], sizes = [4, 128], strides = [1, 1]} : vector<4x192xf32> to vector<4x128xf32>
    %152 = arith.negf %151 : vector<4x128xf32>
    %153 = math.exp %152 : vector<4x128xf32>
    %cst_45 = arith.constant 1.000000e+00 : f32
    %154 = vector.broadcast %cst_45 : f32 to vector<4x128xf32>
    %155 = arith.addf %154, %153 : vector<4x128xf32>
    %156 = arith.divf %154, %155 : vector<4x128xf32>
    %157 = vector.extract_strided_slice %156 {offsets = [0, 0], sizes = [4, 64], strides = [1, 1]} : vector<4x128xf32> to vector<4x64xf32>
    %158 = vector.extract_strided_slice %156 {offsets = [0, 64], sizes = [4, 64], strides = [1, 1]} : vector<4x128xf32> to vector<4x64xf32>
    %159 = vector.extract_strided_slice %147 {offsets = [0, 128], sizes = [4, 64], strides = [1, 1]} : vector<4x192xf32> to vector<4x64xf32>
    %160 = vector.extract_strided_slice %149 {offsets = [0, 128], sizes = [4, 64], strides = [1, 1]} : vector<4x192xf32> to vector<4x64xf32>
    %161 = arith.mulf %157, %160 : vector<4x64xf32>
    %162 = arith.addf %159, %161 : vector<4x64xf32>
    %163 = math.tanh %162 : vector<4x64xf32>
    %cst_46 = arith.constant 1.000000e+00 : f32
    %164 = vector.broadcast %cst_46 : f32 to vector<4x64xf32>
    %165 = arith.subf %164, %158 : vector<4x64xf32>
    %166 = arith.mulf %165, %163 : vector<4x64xf32>
    %167 = arith.mulf %158, %133 : vector<4x64xf32>
    %168 = arith.addf %166, %167 : vector<4x64xf32>
    %169 = vector.extract_strided_slice %168 {offsets = [0, 0], sizes = [4, 32], strides = [1, 1]} : vector<4x64xf32> to vector<4x32xf32>
    %170 = arith.index_cast %c4_i32 : i32 to index
    %c0_47 = arith.constant 0 : index
    %c0_48 = arith.constant 0 : index
    %171 = vector.load %arg3[%170, %c0_47, %c0_48] : memref<8x4x32xf32, #tpu.memory_space<vmem>>, vector<1x4x32xf32>
    %172 = vector.shape_cast %171 : vector<1x4x32xf32> to vector<4x32xf32>
    %173 = vector.shape_cast %169 : vector<4x32xf32> to vector<1x4x32xf32>
    tpu.vector_store %arg3[%170, %c0_47, %c0_48], %173 {strides = array<i32>} : memref<8x4x32xf32, #tpu.memory_space<vmem>>, vector<1x4x32xf32>,
    %174 = vector.extract_strided_slice %168 {offsets = [0, 32], sizes = [4, 32], strides = [1, 1]} : vector<4x64xf32> to vector<4x32xf32>
    %c7_i32_49 = arith.constant 7 : i32
    %175 = arith.subi %c7_i32_49, %c4_i32 : i32
    %176 = arith.index_cast %175 : i32 to index
    %c0_50 = arith.constant 0 : index
    %c0_51 = arith.constant 0 : index
    %177 = vector.load %arg5[%176, %c0_50, %c0_51] : memref<8x4x32xf32, #tpu.memory_space<vmem>>, vector<1x4x32xf32>
    %178 = vector.shape_cast %177 : vector<1x4x32xf32> to vector<4x32xf32>
    %179 = vector.shape_cast %174 : vector<4x32xf32> to vector<1x4x32xf32>
    tpu.vector_store %arg5[%176, %c0_50, %c0_51], %179 {strides = array<i32>} : memref<8x4x32xf32, #tpu.memory_space<vmem>>, vector<1x4x32xf32>,
    %c5_i32 = arith.constant 5 : i32
    %180 = arith.index_cast %c5_i32 : i32 to index
    %c0_52 = arith.constant 0 : index
    %c0_53 = arith.constant 0 : index
    %181 = vector.load %arg0[%180, %c0_52, %c0_53] : memref<8x4x192xf32, #tpu.memory_space<vmem>>, vector<1x4x192xf32>
    %182 = vector.shape_cast %181 : vector<1x4x192xf32> to vector<4x192xf32>
    %cst_54 = arith.constant dense<0.000000e+00> : vector<4x192xf32>
    %183 = tpu.matmul %168, %0, %cst_54 {dimension_numbers = #tpu.dot_dimension_numbers<[1], [0], [0], [1], [0, 0, 1, 1], [], []>, precision = #tpu.contract_precision<fp32>} : vector<4x64xf32>, vector<64x192xf32>, vector<4x192xf32> -> vector<4x192xf32>
    %184 = arith.addf %183, %3 : vector<4x192xf32>
    %185 = arith.addf %182, %184 : vector<4x192xf32>
    %186 = vector.extract_strided_slice %185 {offsets = [0, 0], sizes = [4, 128], strides = [1, 1]} : vector<4x192xf32> to vector<4x128xf32>
    %187 = arith.negf %186 : vector<4x128xf32>
    %188 = math.exp %187 : vector<4x128xf32>
    %cst_55 = arith.constant 1.000000e+00 : f32
    %189 = vector.broadcast %cst_55 : f32 to vector<4x128xf32>
    %190 = arith.addf %189, %188 : vector<4x128xf32>
    %191 = arith.divf %189, %190 : vector<4x128xf32>
    %192 = vector.extract_strided_slice %191 {offsets = [0, 0], sizes = [4, 64], strides = [1, 1]} : vector<4x128xf32> to vector<4x64xf32>
    %193 = vector.extract_strided_slice %191 {offsets = [0, 64], sizes = [4, 64], strides = [1, 1]} : vector<4x128xf32> to vector<4x64xf32>
    %194 = vector.extract_strided_slice %182 {offsets = [0, 128], sizes = [4, 64], strides = [1, 1]} : vector<4x192xf32> to vector<4x64xf32>
    %195 = vector.extract_strided_slice %184 {offsets = [0, 128], sizes = [4, 64], strides = [1, 1]} : vector<4x192xf32> to vector<4x64xf32>
    %196 = arith.mulf %192, %195 : vector<4x64xf32>
    %197 = arith.addf %194, %196 : vector<4x64xf32>
    %198 = math.tanh %197 : vector<4x64xf32>
    %cst_56 = arith.constant 1.000000e+00 : f32
    %199 = vector.broadcast %cst_56 : f32 to vector<4x64xf32>
    %200 = arith.subf %199, %193 : vector<4x64xf32>
    %201 = arith.mulf %200, %198 : vector<4x64xf32>
    %202 = arith.mulf %193, %168 : vector<4x64xf32>
    %203 = arith.addf %201, %202 : vector<4x64xf32>
    %204 = vector.extract_strided_slice %203 {offsets = [0, 0], sizes = [4, 32], strides = [1, 1]} : vector<4x64xf32> to vector<4x32xf32>
    %205 = arith.index_cast %c5_i32 : i32 to index
    %c0_57 = arith.constant 0 : index
    %c0_58 = arith.constant 0 : index
    %206 = vector.load %arg3[%205, %c0_57, %c0_58] : memref<8x4x32xf32, #tpu.memory_space<vmem>>, vector<1x4x32xf32>
    %207 = vector.shape_cast %206 : vector<1x4x32xf32> to vector<4x32xf32>
    %208 = vector.shape_cast %204 : vector<4x32xf32> to vector<1x4x32xf32>
    tpu.vector_store %arg3[%205, %c0_57, %c0_58], %208 {strides = array<i32>} : memref<8x4x32xf32, #tpu.memory_space<vmem>>, vector<1x4x32xf32>,
    %209 = vector.extract_strided_slice %203 {offsets = [0, 32], sizes = [4, 32], strides = [1, 1]} : vector<4x64xf32> to vector<4x32xf32>
    %c7_i32_59 = arith.constant 7 : i32
    %210 = arith.subi %c7_i32_59, %c5_i32 : i32
    %211 = arith.index_cast %210 : i32 to index
    %c0_60 = arith.constant 0 : index
    %c0_61 = arith.constant 0 : index
    %212 = vector.load %arg5[%211, %c0_60, %c0_61] : memref<8x4x32xf32, #tpu.memory_space<vmem>>, vector<1x4x32xf32>
    %213 = vector.shape_cast %212 : vector<1x4x32xf32> to vector<4x32xf32>
    %214 = vector.shape_cast %209 : vector<4x32xf32> to vector<1x4x32xf32>
    tpu.vector_store %arg5[%211, %c0_60, %c0_61], %214 {strides = array<i32>} : memref<8x4x32xf32, #tpu.memory_space<vmem>>, vector<1x4x32xf32>,
    %c6_i32 = arith.constant 6 : i32
    %215 = arith.index_cast %c6_i32 : i32 to index
    %c0_62 = arith.constant 0 : index
    %c0_63 = arith.constant 0 : index
    %216 = vector.load %arg0[%215, %c0_62, %c0_63] : memref<8x4x192xf32, #tpu.memory_space<vmem>>, vector<1x4x192xf32>
    %217 = vector.shape_cast %216 : vector<1x4x192xf32> to vector<4x192xf32>
    %cst_64 = arith.constant dense<0.000000e+00> : vector<4x192xf32>
    %218 = tpu.matmul %203, %0, %cst_64 {dimension_numbers = #tpu.dot_dimension_numbers<[1], [0], [0], [1], [0, 0, 1, 1], [], []>, precision = #tpu.contract_precision<fp32>} : vector<4x64xf32>, vector<64x192xf32>, vector<4x192xf32> -> vector<4x192xf32>
    %219 = arith.addf %218, %3 : vector<4x192xf32>
    %220 = arith.addf %217, %219 : vector<4x192xf32>
    %221 = vector.extract_strided_slice %220 {offsets = [0, 0], sizes = [4, 128], strides = [1, 1]} : vector<4x192xf32> to vector<4x128xf32>
    %222 = arith.negf %221 : vector<4x128xf32>
    %223 = math.exp %222 : vector<4x128xf32>
    %cst_65 = arith.constant 1.000000e+00 : f32
    %224 = vector.broadcast %cst_65 : f32 to vector<4x128xf32>
    %225 = arith.addf %224, %223 : vector<4x128xf32>
    %226 = arith.divf %224, %225 : vector<4x128xf32>
    %227 = vector.extract_strided_slice %226 {offsets = [0, 0], sizes = [4, 64], strides = [1, 1]} : vector<4x128xf32> to vector<4x64xf32>
    %228 = vector.extract_strided_slice %226 {offsets = [0, 64], sizes = [4, 64], strides = [1, 1]} : vector<4x128xf32> to vector<4x64xf32>
    %229 = vector.extract_strided_slice %217 {offsets = [0, 128], sizes = [4, 64], strides = [1, 1]} : vector<4x192xf32> to vector<4x64xf32>
    %230 = vector.extract_strided_slice %219 {offsets = [0, 128], sizes = [4, 64], strides = [1, 1]} : vector<4x192xf32> to vector<4x64xf32>
    %231 = arith.mulf %227, %230 : vector<4x64xf32>
    %232 = arith.addf %229, %231 : vector<4x64xf32>
    %233 = math.tanh %232 : vector<4x64xf32>
    %cst_66 = arith.constant 1.000000e+00 : f32
    %234 = vector.broadcast %cst_66 : f32 to vector<4x64xf32>
    %235 = arith.subf %234, %228 : vector<4x64xf32>
    %236 = arith.mulf %235, %233 : vector<4x64xf32>
    %237 = arith.mulf %228, %203 : vector<4x64xf32>
    %238 = arith.addf %236, %237 : vector<4x64xf32>
    %239 = vector.extract_strided_slice %238 {offsets = [0, 0], sizes = [4, 32], strides = [1, 1]} : vector<4x64xf32> to vector<4x32xf32>
    %240 = arith.index_cast %c6_i32 : i32 to index
    %c0_67 = arith.constant 0 : index
    %c0_68 = arith.constant 0 : index
    %241 = vector.load %arg3[%240, %c0_67, %c0_68] : memref<8x4x32xf32, #tpu.memory_space<vmem>>, vector<1x4x32xf32>
    %242 = vector.shape_cast %241 : vector<1x4x32xf32> to vector<4x32xf32>
    %243 = vector.shape_cast %239 : vector<4x32xf32> to vector<1x4x32xf32>
    tpu.vector_store %arg3[%240, %c0_67, %c0_68], %243 {strides = array<i32>} : memref<8x4x32xf32, #tpu.memory_space<vmem>>, vector<1x4x32xf32>,
    %244 = vector.extract_strided_slice %238 {offsets = [0, 32], sizes = [4, 32], strides = [1, 1]} : vector<4x64xf32> to vector<4x32xf32>
    %c7_i32_69 = arith.constant 7 : i32
    %245 = arith.subi %c7_i32_69, %c6_i32 : i32
    %246 = arith.index_cast %245 : i32 to index
    %c0_70 = arith.constant 0 : index
    %c0_71 = arith.constant 0 : index
    %247 = vector.load %arg5[%246, %c0_70, %c0_71] : memref<8x4x32xf32, #tpu.memory_space<vmem>>, vector<1x4x32xf32>
    %248 = vector.shape_cast %247 : vector<1x4x32xf32> to vector<4x32xf32>
    %249 = vector.shape_cast %244 : vector<4x32xf32> to vector<1x4x32xf32>
    tpu.vector_store %arg5[%246, %c0_70, %c0_71], %249 {strides = array<i32>} : memref<8x4x32xf32, #tpu.memory_space<vmem>>, vector<1x4x32xf32>,
    %c7_i32_72 = arith.constant 7 : i32
    %250 = arith.index_cast %c7_i32_72 : i32 to index
    %c0_73 = arith.constant 0 : index
    %c0_74 = arith.constant 0 : index
    %251 = vector.load %arg0[%250, %c0_73, %c0_74] : memref<8x4x192xf32, #tpu.memory_space<vmem>>, vector<1x4x192xf32>
    %252 = vector.shape_cast %251 : vector<1x4x192xf32> to vector<4x192xf32>
    %cst_75 = arith.constant dense<0.000000e+00> : vector<4x192xf32>
    %253 = tpu.matmul %238, %0, %cst_75 {dimension_numbers = #tpu.dot_dimension_numbers<[1], [0], [0], [1], [0, 0, 1, 1], [], []>, precision = #tpu.contract_precision<fp32>} : vector<4x64xf32>, vector<64x192xf32>, vector<4x192xf32> -> vector<4x192xf32>
    %254 = arith.addf %253, %3 : vector<4x192xf32>
    %255 = arith.addf %252, %254 : vector<4x192xf32>
    %256 = vector.extract_strided_slice %255 {offsets = [0, 0], sizes = [4, 128], strides = [1, 1]} : vector<4x192xf32> to vector<4x128xf32>
    %257 = arith.negf %256 : vector<4x128xf32>
    %258 = math.exp %257 : vector<4x128xf32>
    %cst_76 = arith.constant 1.000000e+00 : f32
    %259 = vector.broadcast %cst_76 : f32 to vector<4x128xf32>
    %260 = arith.addf %259, %258 : vector<4x128xf32>
    %261 = arith.divf %259, %260 : vector<4x128xf32>
    %262 = vector.extract_strided_slice %261 {offsets = [0, 0], sizes = [4, 64], strides = [1, 1]} : vector<4x128xf32> to vector<4x64xf32>
    %263 = vector.extract_strided_slice %261 {offsets = [0, 64], sizes = [4, 64], strides = [1, 1]} : vector<4x128xf32> to vector<4x64xf32>
    %264 = vector.extract_strided_slice %252 {offsets = [0, 128], sizes = [4, 64], strides = [1, 1]} : vector<4x192xf32> to vector<4x64xf32>
    %265 = vector.extract_strided_slice %254 {offsets = [0, 128], sizes = [4, 64], strides = [1, 1]} : vector<4x192xf32> to vector<4x64xf32>
    %266 = arith.mulf %262, %265 : vector<4x64xf32>
    %267 = arith.addf %264, %266 : vector<4x64xf32>
    %268 = math.tanh %267 : vector<4x64xf32>
    %cst_77 = arith.constant 1.000000e+00 : f32
    %269 = vector.broadcast %cst_77 : f32 to vector<4x64xf32>
    %270 = arith.subf %269, %263 : vector<4x64xf32>
    %271 = arith.mulf %270, %268 : vector<4x64xf32>
    %272 = arith.mulf %263, %238 : vector<4x64xf32>
    %273 = arith.addf %271, %272 : vector<4x64xf32>
    %274 = vector.extract_strided_slice %273 {offsets = [0, 0], sizes = [4, 32], strides = [1, 1]} : vector<4x64xf32> to vector<4x32xf32>
    %275 = arith.index_cast %c7_i32_72 : i32 to index
    %c0_78 = arith.constant 0 : index
    %c0_79 = arith.constant 0 : index
    %276 = vector.load %arg3[%275, %c0_78, %c0_79] : memref<8x4x32xf32, #tpu.memory_space<vmem>>, vector<1x4x32xf32>
    %277 = vector.shape_cast %276 : vector<1x4x32xf32> to vector<4x32xf32>
    %278 = vector.shape_cast %274 : vector<4x32xf32> to vector<1x4x32xf32>
    tpu.vector_store %arg3[%275, %c0_78, %c0_79], %278 {strides = array<i32>} : memref<8x4x32xf32, #tpu.memory_space<vmem>>, vector<1x4x32xf32>,
    %279 = vector.extract_strided_slice %273 {offsets = [0, 32], sizes = [4, 32], strides = [1, 1]} : vector<4x64xf32> to vector<4x32xf32>
    %c7_i32_80 = arith.constant 7 : i32
    %280 = arith.subi %c7_i32_80, %c7_i32_72 : i32
    %281 = arith.index_cast %280 : i32 to index
    %c0_81 = arith.constant 0 : index
    %c0_82 = arith.constant 0 : index
    %282 = vector.load %arg5[%281, %c0_81, %c0_82] : memref<8x4x32xf32, #tpu.memory_space<vmem>>, vector<1x4x32xf32>
    %283 = vector.shape_cast %282 : vector<1x4x32xf32> to vector<4x32xf32>
    %284 = vector.shape_cast %279 : vector<4x32xf32> to vector<1x4x32xf32>
    tpu.vector_store %arg5[%281, %c0_81, %c0_82], %284 {strides = array<i32>} : memref<8x4x32xf32, #tpu.memory_space<vmem>>, vector<1x4x32xf32>,
    %c8_i32 = arith.constant 8 : i32
    %c0_83 = arith.constant 0 : index
    %c0_84 = arith.constant 0 : index
    %c0_85 = arith.constant 0 : index
    %285 = vector.load %arg3[%c0_83, %c0_84, %c0_85] : memref<8x4x32xf32, #tpu.memory_space<vmem>>, vector<8x4x32xf32>
    %c0_86 = arith.constant 0 : index
    %c0_87 = arith.constant 0 : index
    %c0_88 = arith.constant 0 : index
    %286 = vector.load %arg5[%c0_86, %c0_87, %c0_88] : memref<8x4x32xf32, #tpu.memory_space<vmem>>, vector<8x4x32xf32>
    %287 = arith.addf %285, %286 : vector<8x4x32xf32>
    %c0_89 = arith.constant 0 : index
    %c0_90 = arith.constant 0 : index
    %c0_91 = arith.constant 0 : index
    %288 = vector.load %arg3[%c0_89, %c0_90, %c0_91] : memref<8x4x32xf32, #tpu.memory_space<vmem>>, vector<8x4x32xf32>
    tpu.vector_store %arg3[%c0_89, %c0_90, %c0_91], %287 {strides = array<i32>} : memref<8x4x32xf32, #tpu.memory_space<vmem>>, vector<8x4x32xf32>,
    %289 = vector.extract_strided_slice %273 {offsets = [0, 0], sizes = [4, 32], strides = [1, 1]} : vector<4x64xf32> to vector<4x32xf32>
    %c0_92 = arith.constant 0 : index
    %c0_93 = arith.constant 0 : index
    %c0_94 = arith.constant 0 : index
    %290 = vector.load %arg4[%c0_92, %c0_93, %c0_94] : memref<2x4x32xf32, #tpu.memory_space<vmem>>, vector<1x4x32xf32>
    %291 = vector.shape_cast %290 : vector<1x4x32xf32> to vector<4x32xf32>
    %292 = vector.shape_cast %289 : vector<4x32xf32> to vector<1x4x32xf32>
    tpu.vector_store %arg4[%c0_92, %c0_93, %c0_94], %292 {strides = array<i32>} : memref<2x4x32xf32, #tpu.memory_space<vmem>>, vector<1x4x32xf32>,
    %293 = vector.extract_strided_slice %273 {offsets = [0, 32], sizes = [4, 32], strides = [1, 1]} : vector<4x64xf32> to vector<4x32xf32>
    %c1 = arith.constant 1 : index
    %c0_95 = arith.constant 0 : index
    %c0_96 = arith.constant 0 : index
    %294 = vector.load %arg4[%c1, %c0_95, %c0_96] : memref<2x4x32xf32, #tpu.memory_space<vmem>>, vector<1x4x32xf32>
    %295 = vector.shape_cast %294 : vector<1x4x32xf32> to vector<4x32xf32>
    %296 = vector.shape_cast %293 : vector<4x32xf32> to vector<1x4x32xf32>
    tpu.vector_store %arg4[%c1, %c0_95, %c0_96], %296 {strides = array<i32>} : memref<2x4x32xf32, #tpu.memory_space<vmem>>, vector<1x4x32xf32>,
    return
  }
}

</mosaic_0001>

<llo_original>
// kernel: reverse
$region0: #{reverse}
  #allocation0 [shape = 's32[1]{0}', space=sflag, size = 0x4, scoped, tag = 'scoped memory for reverse']
  %s0 = inlined_call_operand.vmem [shape: f32[8,4,32], index: 0, kind: input, shape index: {}]
  %s1 = inlined_call_operand.vmem [shape: f32[8,4,32], index: 1, kind: output, shape index: {}]
  %s2 = scalar_lea.vmem %s0, 28
  %v3 = vld [vmem:[%s2] sm:$0xf]
  %4 = vst [vmem:[%s1] sm:$0xf] %v3
  %s5 = scalar_lea.vmem %s0, 24
  %v6 = vld [vmem:[%s5] sm:$0xf]
  %s7 = scalar_lea.vmem %s1, 4
  %8 = vst [vmem:[%s7] sm:$0xf] %v6
  %s9 = scalar_lea.vmem %s0, 20
  %v10 = vld [vmem:[%s9] sm:$0xf]
  %s11 = scalar_lea.vmem %s1, 8
  %12 = vst [vmem:[%s11] sm:$0xf] %v10
  %s13 = scalar_lea.vmem %s0, 16
  %v14 = vld [vmem:[%s13] sm:$0xf]
  %s15 = scalar_lea.vmem %s1, 12
  %16 = vst [vmem:[%s15] sm:$0xf] %v14
  %s17 = scalar_lea.vmem %s0, 12
  %v18 = vld [vmem:[%s17] sm:$0xf]
  %s19 = scalar_lea.vmem %s1, 16
  %20 = vst [vmem:[%s19] sm:$0xf] %v18
  %s21 = scalar_lea.vmem %s0, 8
  %v22 = vld [vmem:[%s21] sm:$0xf]
  %s23 = scalar_lea.vmem %s1, 20
  %24 = vst [vmem:[%s23] sm:$0xf] %v22
  %s25 = scalar_lea.vmem %s0, 4
  %v26 = vld [vmem:[%s25] sm:$0xf]
  %s27 = scalar_lea.vmem %s1, 24
  %28 = vst [vmem:[%s27] sm:$0xf] %v26
  %v29 = vld [vmem:[%s0] sm:$0xf]
  %s30 = scalar_lea.vmem %s1, 28
  %31 = vst [vmem:[%s30] sm:$0xf] %v29

// kernel: encoder_forward.1
$region0: #{encoder_forward.1}
  #allocation0 [shape = 'u32[]', space=smem, size = 0x4, offset = 0x4, fixed_abs, tag = 'smem constant byte address 0x4 - core index']
  #allocation1 [shape = 'u32[144,128]{1,0:T(1,128)}', space=vmem, size = 0x12000, scoped, tag = 'internal scratch']
  #allocation2 [shape = 'f32[8,4,32]{2,1,0:T(4,128)}', space=vmem, size = 0x4000, scoped, tag = 'scratch operand']
  %s0 = inlined_call_operand.vmem [shape: f32[8,4,192], index: 0, kind: input, shape index: {}]
  %s1 = inlined_call_operand.vmem [shape: f32[64,192], index: 1, kind: input, shape index: {}]
  %s2 = inlined_call_operand.vmem [shape: f32[1,192], index: 2, kind: input, shape index: {}]
  %s3 = inlined_call_operand.hbm [shape: f32[8,4,32], index: 3, kind: output, shape index: {0}]
  %s4 = inlined_call_operand.hbm [shape: f32[2,4,32], index: 4, kind: output, shape index: {1}]
  %5 = xla_tuple %s3, %s4
  %s6 = sld [smem:[#allocation0]]
  $region30: #{encoder_forward.1} parent=0
    _
  %s8 = ssub.s32 1, %s6
  %s9 = scalar_select 0, %s8, %s6
  $region1: #{encoder_forward.1} parent=0
    #allocation3 [shape = 'u8[16384]{0}', space=vmem, size = 0x4000, scoped, tag = 'output window, operand 0, single buffered']
    #allocation4 [shape = 's32[1]{0}', space=sflag, size = 0x4, scoped, tag = 'scoped memory for encoder_forward.1']
    #allocation5 [shape = 'u8[4096]{0}', space=vmem, size = 0x1000, scoped, tag = 'output window, operand 1, single buffered']
    #allocation6 [shape = 's32[1]{0}', space=sflag, size = 0x4, scoped, tag = 'scoped memory for encoder_forward.1']
    %10 = vsyncpa [#allocation4], 0
    %11 = vsyncpa [#allocation6], 0
    // Predicated region
    $region2: #{encoder_forward.1} parent=1 // pred_check
      _
    $region3: #{encoder_forward.1} parent=1 // pred_check_branch
      %13 = sbr.rel (0) target = $region5
    $region4: #{encoder_forward.1} parent=1 // pred_region
      _
    $region5: #{encoder_forward.1} parent=1 // pred_fallthru
      _
    // Predicated region
    $region6: #{encoder_forward.1} parent=1 // pred_check
      _
    $region7: #{encoder_forward.1} parent=1 // pred_check_branch
      %15 = sbr.rel (0) target = $region9
    $region8: #{encoder_forward.1} parent=1 // pred_region
      _
    $region9: #{encoder_forward.1} parent=1 // pred_fallthru
      _
    // Predicated region
    $region10: #{encoder_forward.1} parent=1 // pred_check
      _
    $region11: #{encoder_forward.1} parent=1 // pred_check_branch
      %17 = sbr.rel (0) target = $region13
    $region12: #{encoder_forward.1} parent=1 // pred_region
      _
    $region13: #{encoder_forward.1} parent=1 // pred_fallthru
      _
    %v18 = vld [vmem:[%s1] sm:$0xff]
    %v19 = vld [vmem:[%s1 + $0x8] sm:$0xff]
    %v20 = vld [vmem:[%s1 + $0x10] sm:$0xff]
    %v21 = vld [vmem:[%s1 + $0x18] sm:$0xff]
    %v22 = vld [vmem:[%s1 + $0x20] sm:$0xff]
    %v23 = vld [vmem:[%s1 + $0x28] sm:$0xff]
    %v24 = vld [vmem:[%s1 + $0x30] sm:$0xff]
    %v25 = vld [vmem:[%s1 + $0x38] sm:$0xff]
    %v26 = vld [vmem:[%s1 + $0x40] sm:$0xff]
    %v27 = vld [vmem:[%s1 + $0x48] sm:$0xff]
    %v28 = vld [vmem:[%s1 + $0x50] sm:$0xff]
    %v29 = vld [vmem:[%s1 + $0x58] sm:$0xff]
    %v30 = vld [vmem:[%s1 + $0x60] sm:$0xff]
    %v31 = vld [vmem:[%s1 + $0x68] sm:$0xff]
    %v32 = vld [vmem:[%s1 + $0x70] sm:$0xff]
    %v33 = vld [vmem:[%s1 + $0x78] sm:$0xff]
    %v34 = vld [vmem:[%s2] sm:$0x3]
    %v36 = vlaneseq
    %v37 = vshrl.u32 %v36, 7
    %v38 = vsub.s32 0, %v37
    %v39 = vrot.slane %v34, %v38
    %v40 = vlaneseq
    %v41 = vshrl.u32 %v40, 7
    %v42 = vsub.s32 1, %v41
    %v43 = vrot.slane %v34, %v42
    %v46 = vld [vmem:[%s0] sm:$0xff]
    %vm47 = vcmask 523264
    %v49 = vsel %vm47, 0.0, 0
    %v51 = vand.u32 %v19, 4294901760
    %52 = vmatprep.subr.mxu0 %v51
    %v53 = vand.u32 %v18, 4294901760
    %54 = vmatpush1.msra.mxu0 %v53
    %v55 = vand.u32 %v21, 4294901760
    %56 = vmatprep.subr.mxu0 %v55
    %v57 = vand.u32 %v20, 4294901760
    %58 = vmatpush1.msra.mxu0 %v57
    %v59 = vand.u32 %v23, 4294901760
    %60 = vmatprep.subr.mxu0 %v59
    %v61 = vand.u32 %v22, 4294901760
    %62 = vmatpush1.msra.mxu0 %v61
    %v63 = vand.u32 %v25, 4294901760
    %64 = vmatprep.subr.mxu0 %v63
    %v65 = vand.u32 %v24, 4294901760
    %66 = vmatpush1.msra.mxu0 %v65
    %v67 = vand.u32 %v27, 4294901760
    %68 = vmatprep.subr.mxu0 %v67
    %v69 = vand.u32 %v26, 4294901760
    %70 = vmatpush1.msra.mxu0 %v69
    %v71 = vand.u32 %v29, 4294901760
    %72 = vmatprep.subr.mxu0 %v71
    %v73 = vand.u32 %v28, 4294901760
    %74 = vmatpush1.msra.mxu0 %v73
    %v75 = vand.u32 %v31, 4294901760
    %76 = vmatprep.subr.mxu0 %v75
    %v77 = vand.u32 %v30, 4294901760
    %78 = vmatpush1.msra.mxu0 %v77
    %v79 = vand.u32 %v33, 4294901760
    %80 = vmatprep.subr.mxu0 %v79
    %v81 = vand.u32 %v32, 4294901760
    %82 = vmatpush1.msra.mxu0 %v81
    %83 = vmatprep.subr.mxu0 0.0
    %84 = vmatpush1.msra.mxu0 0.0
    %85 = vmatprep.subr.mxu0 0.0
    %86 = vmatpush1.msra.mxu0 0.0
    %87 = vmatprep.subr.mxu0 0.0
    %88 = vmatpush1.msra.mxu0 0.0
    %89 = vmatprep.subr.mxu0 0.0
    %90 = vmatpush1.msra.mxu0 0.0
    %91 = vmatprep.subr.mxu0 0.0
    %92 = vmatpush1.msra.mxu0 0.0
    %93 = vmatprep.subr.mxu0 0.0
    %94 = vmatpush1.msra.mxu0 0.0
    %95 = vmatprep.subr.mxu0 0.0
    %96 = vmatpush1.msra.mxu0 0.0
    %97 = vmatprep.subr.mxu0 0.0
    %98 = vmatpush1.msra.mxu0 0.0
    %99 = vmatprep.subr.mxu0 0.0
    %100 = vmatpush1.msra.mxu0 0.0
    %101 = vmatprep.subr.mxu0 0.0
    %102 = vmatpush1.msra.mxu0 0.0
    %103 = vmatprep.subr.mxu0 0.0
    %104 = vmatpush1.msra.mxu0 0.0
    %105 = vmatprep.subr.mxu0 0.0
    %106 = vmatpush1.msra.mxu0 0.0
    %107 = vmatprep.subr.mxu0 0.0
    %108 = vmatpush1.msra.mxu0 0.0
    %109 = vmatprep.subr.mxu0 0.0
    %110 = vmatpush1.msra.mxu0 0.0
    %111 = vmatprep.subr.mxu0 0.0
    %112 = vmatpush1.msra.mxu0 0.0
    %113 = vmatprep.subr.mxu0 0.0
    %114 = vmatpush1.msra.mxu0 0.0
    %115 = vmatprep.subr.mxu0 0.0
    %116 = vmatpush1.msra.mxu0 0.0
    %117 = vmatprep.subr.mxu0 0.0
    %118 = vmatpush1.msra.mxu0 0.0
    %119 = vmatprep.subr.mxu0 0.0
    %120 = vmatpush1.msra.mxu0 0.0
    %121 = vmatprep.subr.mxu0 0.0
    %122 = vmatpush1.msra.mxu0 0.0
    %123 = vmatprep.subr.mxu0 0.0
    %124 = vmatpush1.msra.mxu0 0.0
    %125 = vmatprep.subr.mxu0 0.0
    %126 = vmatpush1.msra.mxu0 0.0
    %127 = vmatprep.subr.mxu0 0.0
    %128 = vmatpush1.msra.mxu0 0.0
    %129 = vmatprep.subr.mxu0 0.0
    %130 = vmatpush1.msra.mxu0 0.0
    %131 = vmatprep.mubr.f32.mxu0 0.0
    %v132 = vand.u32 %v49, 4294901760
    %v133 = vsub.f32 %v49, %v132
    %v134 = vand.u32 %v133, 4294901760
    %v135 = vsub.f32 %v133, %v134
    %v136 = vand.u32 %v135, 4294901760
    %137 = vmatmul.mubr.f32.gmra.mrb[0].mxu0 %v136
    %v138 = vpop.f32.mrb[0].mxu0
    %v139 = vadd.f32 %v39, %v138
    %v140 = vpop.f32.mrb[0].mxu0
    %v141 = vadd.f32 %v43, %v140
    %142 = vdwg.mxu0
    %v143 = vand.u32 %v19, 4294901760
    %v144 = vsub.f32 %v19, %v143
    %v145 = vand.u32 %v144, 4294901760
    %v146 = vsub.f32 %v144, %v145
    %v147 = vand.u32 %v146, 4294901760
    %148 = vmatprep.subr.mxu0 %v147
    %v149 = vand.u32 %v18, 4294901760
    %v150 = vsub.f32 %v18, %v149
    %v151 = vand.u32 %v150, 4294901760
    %v152 = vsub.f32 %v150, %v151
    %v153 = vand.u32 %v152, 4294901760
    %154 = vmatpush1.msra.mxu0 %v153
    %v155 = vand.u32 %v21, 4294901760
    %v156 = vsub.f32 %v21, %v155
    %v157 = vand.u32 %v156, 4294901760
    %v158 = vsub.f32 %v156, %v157
    %v159 = vand.u32 %v158, 4294901760
    %160 = vmatprep.subr.mxu0 %v159
    %v161 = vand.u32 %v20, 4294901760
    %v162 = vsub.f32 %v20, %v161
    %v163 = vand.u32 %v162, 4294901760
    %v164 = vsub.f32 %v162, %v163
    %v165 = vand.u32 %v164, 4294901760
    %166 = vmatpush1.msra.mxu0 %v165
    %v167 = vand.u32 %v23, 4294901760
    %v168 = vsub.f32 %v23, %v167
    %v169 = vand.u32 %v168, 4294901760
    %v170 = vsub.f32 %v168, %v169
    %v171 = vand.u32 %v170, 4294901760
    %172 = vmatprep.subr.mxu0 %v171
    %v173 = vand.u32 %v22, 4294901760
    %v174 = vsub.f32 %v22, %v173
    %v175 = vand.u32 %v174, 4294901760
    %v176 = vsub.f32 %v174, %v175
    %v177 = vand.u32 %v176, 4294901760
    %178 = vmatpush1.msra.mxu0 %v177
    %v179 = vand.u32 %v25, 4294901760
    %v180 = vsub.f32 %v25, %v179
    %v181 = vand.u32 %v180, 4294901760
    %v182 = vsub.f32 %v180, %v181
    %v183 = vand.u32 %v182, 4294901760
    %184 = vmatprep.subr.mxu0 %v183
    %v185 = vand.u32 %v24, 4294901760
    %v186 = vsub.f32 %v24, %v185
    %v187 = vand.u32 %v186, 4294901760
    %v188 = vsub.f32 %v186, %v187
    %v189 = vand.u32 %v188, 4294901760
    %190 = vmatpush1.msra.mxu0 %v189
    %v191 = vand.u32 %v27, 4294901760
    %v192 = vsub.f32 %v27, %v191
    %v193 = vand.u32 %v192, 4294901760
    %v194 = vsub.f32 %v192, %v193
    %v195 = vand.u32 %v194, 4294901760
    %196 = vmatprep.subr.mxu0 %v195
    %v197 = vand.u32 %v26, 4294901760
    %v198 = vsub.f32 %v26, %v197
    %v199 = vand.u32 %v198, 4294901760
    %v200 = vsub.f32 %v198, %v199
    %v201 = vand.u32 %v200, 4294901760
    %202 = vmatpush1.msra.mxu0 %v201
    %v203 = vand.u32 %v29, 4294901760
    %v204 = vsub.f32 %v29, %v203
    %v205 = vand.u32 %v204, 4294901760
    %v206 = vsub.f32 %v204, %v205
    %v207 = vand.u32 %v206, 4294901760
    %208 = vmatprep.subr.mxu0 %v207
    %v209 = vand.u32 %v28, 4294901760
    %v210 = vsub.f32 %v28, %v209
    %v211 = vand.u32 %v210, 4294901760
    %v212 = vsub.f32 %v210, %v211
    %v213 = vand.u32 %v212, 4294901760
    %214 = vmatpush1.msra.mxu0 %v213
    %v215 = vand.u32 %v31, 4294901760
    %v216 = vsub.f32 %v31, %v215
    %v217 = vand.u32 %v216, 4294901760
    %v218 = vsub.f32 %v216, %v217
    %v219 = vand.u32 %v218, 4294901760
    %220 = vmatprep.subr.mxu0 %v219
    %v221 = vand.u32 %v30, 4294901760
    %v222 = vsub.f32 %v30, %v221
    %v223 = vand.u32 %v222, 4294901760
    %v224 = vsub.f32 %v222, %v223
    %v225 = vand.u32 %v224, 4294901760
    %226 = vmatpush1.msra.mxu0 %v225
    %v227 = vand.u32 %v33, 4294901760
    %v228 = vsub.f32 %v33, %v227
    %v229 = vand.u32 %v228, 4294901760
    %v230 = vsub.f32 %v228, %v229
    %v231 = vand.u32 %v230, 4294901760
    %232 = vmatprep.subr.mxu0 %v231
    %v233 = vand.u32 %v32, 4294901760
    %v234 = vsub.f32 %v32, %v233
    %v235 = vand.u32 %v234, 4294901760
    %v236 = vsub.f32 %v234, %v235
    %v237 = vand.u32 %v236, 4294901760
    %238 = vmatpush1.msra.mxu0 %v237
    %239 = vmatprep.subr.mxu0 0.0
    %240 = vmatpush1.msra.mxu0 0.0
    %241 = vmatprep.subr.mxu0 0.0
    %242 = vmatpush1.msra.mxu0 0.0
    %243 = vmatprep.subr.mxu0 0.0
    %244 = vmatpush1.msra.mxu0 0.0
    %245 = vmatprep.subr.mxu0 0.0
    %246 = vmatpush1.msra.mxu0 0.0
    %247 = vmatprep.subr.mxu0 0.0
    %248 = vmatpush1.msra.mxu0 0.0
    %249 = vmatprep.subr.mxu0 0.0
    %250 = vmatpush1.msra.mxu0 0.0
    %251 = vmatprep.subr.mxu0 0.0
    %252 = vmatpush1.msra.mxu0 0.0
    %253 = vmatprep.subr.mxu0 0.0
    %254 = vmatpush1.msra.mxu0 0.0
    %255 = vmatprep.subr.mxu0 0.0
    %256 = vmatpush1.msra.mxu0 0.0
    %257 = vmatprep.subr.mxu0 0.0
    %258 = vmatpush1.msra.mxu0 0.0
    %259 = vmatprep.subr.mxu0 0.0
    %260 = vmatpush1.msra.mxu0 0.0
    %261 = vmatprep.subr.mxu0 0.0
    %262 = vmatpush1.msra.mxu0 0.0
    %263 = vmatprep.subr.mxu0 0.0
    %264 = vmatpush1.msra.mxu0 0.0
    %265 = vmatprep.subr.mxu0 0.0
    %266 = vmatpush1.msra.mxu0 0.0
    %267 = vmatprep.subr.mxu0 0.0
    %268 = vmatpush1.msra.mxu0 0.0
    %269 = vmatprep.subr.mxu0 0.0
    %270 = vmatpush1.msra.mxu0 0.0
    %271 = vmatprep.subr.mxu0 0.0
    %272 = vmatpush1.msra.mxu0 0.0
    %273 = vmatprep.subr.mxu0 0.0
    %274 = vmatpush1.msra.mxu0 0.0
    %275 = vmatprep.subr.mxu0 0.0
    %276 = vmatpush1.msra.mxu0 0.0
    %277 = vmatprep.subr.mxu0 0.0
    %278 = vmatpush1.msra.mxu0 0.0
    %279 = vmatprep.subr.mxu0 0.0
    %280 = vmatpush1.msra.mxu0 0.0
    %281 = vmatprep.subr.mxu0 0.0
    %282 = vmatpush1.msra.mxu0 0.0
    %283 = vmatprep.subr.mxu0 0.0
    %284 = vmatpush1.msra.mxu0 0.0
    %285 = vmatprep.subr.mxu0 0.0
    %286 = vmatpush1.msra.mxu0 0.0
    %287 = vmatprep.mubr.f32.mxu0 0.0
    %v288 = vand.u32 %v49, 4294901760
    %289 = vmatmul.mubr.f32.gmra.mrb[0].mxu0 %v288
    %v290 = vpop.f32.mrb[0].mxu0
    %v291 = vadd.f32 %v139, %v290
    %v292 = vpop.f32.mrb[0].mxu0
    %v293 = vadd.f32 %v141, %v292
    %294 = vdwg.mxu0
    %v295 = vand.u32 %v19, 4294901760
    %v296 = vsub.f32 %v19, %v295
    %297 = vmatprep.subr.mxu0 %v296
    %v298 = vand.u32 %v18, 4294901760
    %v299 = vsub.f32 %v18, %v298
    %300 = vmatpush1.msra.mxu0 %v299
    %v301 = vand.u32 %v21, 4294901760
    %v302 = vsub.f32 %v21, %v301
    %303 = vmatprep.subr.mxu0 %v302
    %v304 = vand.u32 %v20, 4294901760
    %v305 = vsub.f32 %v20, %v304
    %306 = vmatpush1.msra.mxu0 %v305
    %v307 = vand.u32 %v23, 4294901760
    %v308 = vsub.f32 %v23, %v307
    %309 = vmatprep.subr.mxu0 %v308
    %v310 = vand.u32 %v22, 4294901760
    %v311 = vsub.f32 %v22, %v310
    %312 = vmatpush1.msra.mxu0 %v311
    %v313 = vand.u32 %v25, 4294901760
    %v314 = vsub.f32 %v25, %v313
    %315 = vmatprep.subr.mxu0 %v314
    %v316 = vand.u32 %v24, 4294901760
    %v317 = vsub.f32 %v24, %v316
    %318 = vmatpush1.msra.mxu0 %v317
    %v319 = vand.u32 %v27, 4294901760
    %v320 = vsub.f32 %v27, %v319
    %321 = vmatprep.subr.mxu0 %v320
    %v322 = vand.u32 %v26, 4294901760
    %v323 = vsub.f32 %v26, %v322
    %324 = vmatpush1.msra.mxu0 %v323
    %v325 = vand.u32 %v29, 4294901760
    %v326 = vsub.f32 %v29, %v325
    %327 = vmatprep.subr.mxu0 %v326
    %v328 = vand.u32 %v28, 4294901760
    %v329 = vsub.f32 %v28, %v328
    %330 = vmatpush1.msra.mxu0 %v329
    %v331 = vand.u32 %v31, 4294901760
    %v332 = vsub.f32 %v31, %v331
    %333 = vmatprep.subr.mxu0 %v332
    %v334 = vand.u32 %v30, 4294901760
    %v335 = vsub.f32 %v30, %v334
    %336 = vmatpush1.msra.mxu0 %v335
    %v337 = vand.u32 %v33, 4294901760
    %v338 = vsub.f32 %v33, %v337
    %339 = vmatprep.subr.mxu0 %v338
    %v340 = vand.u32 %v32, 4294901760
    %v341 = vsub.f32 %v32, %v340
    %342 = vmatpush1.msra.mxu0 %v341
    %343 = vmatprep.subr.mxu0 0.0
    %344 = vmatpush1.msra.mxu0 0.0
    %345 = vmatprep.subr.mxu0 0.0
    %346 = vmatpush1.msra.mxu0 0.0
    %347 = vmatprep.subr.mxu0 0.0
    %348 = vmatpush1.msra.mxu0 0.0
    %349 = vmatprep.subr.mxu0 0.0
    %350 = vmatpush1.msra.mxu0 0.0
    %351 = vmatprep.subr.mxu0 0.0
    %352 = vmatpush1.msra.mxu0 0.0
    %353 = vmatprep.subr.mxu0 0.0
    %354 = vmatpush1.msra.mxu0 0.0
    %355 = vmatprep.subr.mxu0 0.0
    %356 = vmatpush1.msra.mxu0 0.0
    %357 = vmatprep.subr.mxu0 0.0
    %358 = vmatpush1.msra.mxu0 0.0
    %359 = vmatprep.subr.mxu0 0.0
    %360 = vmatpush1.msra.mxu0 0.0
    %361 = vmatprep.subr.mxu0 0.0
    %362 = vmatpush1.msra.mxu0 0.0
    %363 = vmatprep.subr.mxu0 0.0
    %364 = vmatpush1.msra.mxu0 0.0
    %365 = vmatprep.subr.mxu0 0.0
    %366 = vmatpush1.msra.mxu0 0.0
    %367 = vmatprep.subr.mxu0 0.0
    %368 = vmatpush1.msra.mxu0 0.0
    %369 = vmatprep.subr.mxu0 0.0
    %370 = vmatpush1.msra.mxu0 0.0
    %371 = vmatprep.subr.mxu0 0.0
    %372 = vmatpush1.msra.mxu0 0.0
    %373 = vmatprep.subr.mxu0 0.0
    %374 = vmatpush1.msra.mxu0 0.0
    %375 = vmatprep.subr.mxu0 0.0
    %376 = vmatpush1.msra.mxu0 0.0
    %377 = vmatprep.subr.mxu0 0.0
    %378 = vmatpush1.msra.mxu0 0.0
    %379 = vmatprep.subr.mxu0 0.0
    %380 = vmatpush1.msra.mxu0 0.0
    %381 = vmatprep.subr.mxu0 0.0
    %382 = vmatpush1.msra.mxu0 0.0
    %383 = vmatprep.subr.mxu0 0.0
    %384 = vmatpush1.msra.mxu0 0.0
    %385 = vmatprep.subr.mxu0 0.0
    %386 = vmatpush1.msra.mxu0 0.0
    %387 = vmatprep.subr.mxu0 0.0
    %388 = vmatpush1.msra.mxu0 0.0
    %389 = vmatprep.subr.mxu0 0.0
    %390 = vmatpush1.msra.mxu0 0.0
    %391 = vmatprep.mubr.f32.mxu0 0.0
    %v392 = vand.u32 %v49, 4294901760
    %v393 = vsub.f32 %v49, %v392
    %394 = vmatmul.mubr.f32.gmra.mrb[0].mxu0 %v393
    %v395 = vpop.f32.mrb[0].mxu0
    %v396 = vadd.f32 %v291, %v395
    %v397 = vpop.f32.mrb[0].mxu0
    %v398 = vadd.f32 %v293, %v397
    %399 = vdwg.mxu0
    %v400 = vand.u32 %v19, 4294901760
    %401 = vmatprep.subr.mxu0 %v400
    %v402 = vand.u32 %v18, 4294901760
    %403 = vmatpush1.msra.mxu0 %v402
    %v404 = vand.u32 %v21, 4294901760
    %405 = vmatprep.subr.mxu0 %v404
    %v406 = vand.u32 %v20, 4294901760
    %407 = vmatpush1.msra.mxu0 %v406
    %v408 = vand.u32 %v23, 4294901760
    %409 = vmatprep.subr.mxu0 %v408
    %v410 = vand.u32 %v22, 4294901760
    %411 = vmatpush1.msra.mxu0 %v410
    %v412 = vand.u32 %v25, 4294901760
    %413 = vmatprep.subr.mxu0 %v412
    %v414 = vand.u32 %v24, 4294901760
    %415 = vmatpush1.msra.mxu0 %v414
    %v416 = vand.u32 %v27, 4294901760
    %417 = vmatprep.subr.mxu0 %v416
    %v418 = vand.u32 %v26, 4294901760
    %419 = vmatpush1.msra.mxu0 %v418
    %v420 = vand.u32 %v29, 4294901760
    %421 = vmatprep.subr.mxu0 %v420
    %v422 = vand.u32 %v28, 4294901760
    %423 = vmatpush1.msra.mxu0 %v422
    %v424 = vand.u32 %v31, 4294901760
    %425 = vmatprep.subr.mxu0 %v424
    %v426 = vand.u32 %v30, 4294901760
    %427 = vmatpush1.msra.mxu0 %v426
    %v428 = vand.u32 %v33, 4294901760
    %429 = vmatprep.subr.mxu0 %v428
    %v430 = vand.u32 %v32, 4294901760
    %431 = vmatpush1.msra.mxu0 %v430
    %432 = vmatprep.subr.mxu0 0.0
    %433 = vmatpush1.msra.mxu0 0.0
    %434 = vmatprep.subr.mxu0 0.0
    %435 = vmatpush1.msra.mxu0 0.0
    %436 = vmatprep.subr.mxu0 0.0
    %437 = vmatpush1.msra.mxu0 0.0
    %438 = vmatprep.subr.mxu0 0.0
    %439 = vmatpush1.msra.mxu0 0.0
    %440 = vmatprep.subr.mxu0 0.0
    %441 = vmatpush1.msra.mxu0 0.0
    %442 = vmatprep.subr.mxu0 0.0
    %443 = vmatpush1.msra.mxu0 0.0
    %444 = vmatprep.subr.mxu0 0.0
    %445 = vmatpush1.msra.mxu0 0.0
    %446 = vmatprep.subr.mxu0 0.0
    %447 = vmatpush1.msra.mxu0 0.0
    %448 = vmatprep.subr.mxu0 0.0
    %449 = vmatpush1.msra.mxu0 0.0
    %450 = vmatprep.subr.mxu0 0.0
    %451 = vmatpush1.msra.mxu0 0.0
    %452 = vmatprep.subr.mxu0 0.0
    %453 = vmatpush1.msra.mxu0 0.0
    %454 = vmatprep.subr.mxu0 0.0
    %455 = vmatpush1.msra.mxu0 0.0
    %456 = vmatprep.subr.mxu0 0.0
    %457 = vmatpush1.msra.mxu0 0.0
    %458 = vmatprep.subr.mxu0 0.0
    %459 = vmatpush1.msra.mxu0 0.0
    %460 = vmatprep.subr.mxu0 0.0
    %461 = vmatpush1.msra.mxu0 0.0
    %462 = vmatprep.subr.mxu0 0.0
    %463 = vmatpush1.msra.mxu0 0.0
    %464 = vmatprep.subr.mxu0 0.0
    %465 = vmatpush1.msra.mxu0 0.0
    %466 = vmatprep.subr.mxu0 0.0
    %467 = vmatpush1.msra.mxu0 0.0
    %468 = vmatprep.subr.mxu0 0.0
    %469 = vmatpush1.msra.mxu0 0.0
    %470 = vmatprep.subr.mxu0 0.0
    %471 = vmatpush1.msra.mxu0 0.0
    %472 = vmatprep.subr.mxu0 0.0
    %473 = vmatpush1.msra.mxu0 0.0
    %474 = vmatprep.subr.mxu0 0.0
    %475 = vmatpush1.msra.mxu0 0.0
    %476 = vmatprep.subr.mxu0 0.0
    %477 = vmatpush1.msra.mxu0 0.0
    %478 = vmatprep.subr.mxu0 0.0
    %479 = vmatpush1.msra.mxu0 0.0
    %480 = vmatprep.mubr.f32.mxu0 0.0
    %v481 = vand.u32 %v49, 4294901760
    %v482 = vsub.f32 %v49, %v481
    %v483 = vand.u32 %v482, 4294901760
    %484 = vmatmul.mubr.f32.gmra.mrb[0].mxu0 %v483
    %v485 = vpop.f32.mrb[0].mxu0
    %v486 = vadd.f32 %v396, %v485
    %v487 = vpop.f32.mrb[0].mxu0
    %v488 = vadd.f32 %v398, %v487
    %489 = vdwg.mxu0
    %v490 = vand.u32 %v19, 4294901760
    %v491 = vsub.f32 %v19, %v490
    %v492 = vand.u32 %v491, 4294901760
    %493 = vmatprep.subr.mxu0 %v492
    %v494 = vand.u32 %v18, 4294901760
    %v495 = vsub.f32 %v18, %v494
    %v496 = vand.u32 %v495, 4294901760
    %497 = vmatpush1.msra.mxu0 %v496
    %v498 = vand.u32 %v21, 4294901760
    %v499 = vsub.f32 %v21, %v498
    %v500 = vand.u32 %v499, 4294901760
    %501 = vmatprep.subr.mxu0 %v500
    %v502 = vand.u32 %v20, 4294901760
    %v503 = vsub.f32 %v20, %v502
    %v504 = vand.u32 %v503, 4294901760
    %505 = vmatpush1.msra.mxu0 %v504
    %v506 = vand.u32 %v23, 4294901760
    %v507 = vsub.f32 %v23, %v506
    %v508 = vand.u32 %v507, 4294901760
    %509 = vmatprep.subr.mxu0 %v508
    %v510 = vand.u32 %v22, 4294901760
    %v511 = vsub.f32 %v22, %v510
    %v512 = vand.u32 %v511, 4294901760
    %513 = vmatpush1.msra.mxu0 %v512
    %v514 = vand.u32 %v25, 4294901760
    %v515 = vsub.f32 %v25, %v514
    %v516 = vand.u32 %v515, 4294901760
    %517 = vmatprep.subr.mxu0 %v516
    %v518 = vand.u32 %v24, 4294901760
    %v519 = vsub.f32 %v24, %v518
    %v520 = vand.u32 %v519, 4294901760
    %521 = vmatpush1.msra.mxu0 %v520
    %v522 = vand.u32 %v27, 4294901760
    %v523 = vsub.f32 %v27, %v522
    %v524 = vand.u32 %v523, 4294901760
    %525 = vmatprep.subr.mxu0 %v524
    %v526 = vand.u32 %v26, 4294901760
    %v527 = vsub.f32 %v26, %v526
    %v528 = vand.u32 %v527, 4294901760
    %529 = vmatpush1.msra.mxu0 %v528
    %v530 = vand.u32 %v29, 4294901760
    %v531 = vsub.f32 %v29, %v530
    %v532 = vand.u32 %v531, 4294901760
    %533 = vmatprep.subr.mxu0 %v532
    %v534 = vand.u32 %v28, 4294901760
    %v535 = vsub.f32 %v28, %v534
    %v536 = vand.u32 %v535, 4294901760
    %537 = vmatpush1.msra.mxu0 %v536
    %v538 = vand.u32 %v31, 4294901760
    %v539 = vsub.f32 %v31, %v538
    %v540 = vand.u32 %v539, 4294901760
    %541 = vmatprep.subr.mxu0 %v540
    %v542 = vand.u32 %v30, 4294901760
    %v543 = vsub.f32 %v30, %v542
    %v544 = vand.u32 %v543, 4294901760
    %545 = vmatpush1.msra.mxu0 %v544
    %v546 = vand.u32 %v33, 4294901760
    %v547 = vsub.f32 %v33, %v546
    %v548 = vand.u32 %v547, 4294901760
    %549 = vmatprep.subr.mxu0 %v548
    %v550 = vand.u32 %v32, 4294901760
    %v551 = vsub.f32 %v32, %v550
    %v552 = vand.u32 %v551, 4294901760
    %553 = vmatpush1.msra.mxu0 %v552
    %554 = vmatprep.subr.mxu0 0.0
    %555 = vmatpush1.msra.mxu0 0.0
    %556 = vmatprep.subr.mxu0 0.0
    %557 = vmatpush1.msra.mxu0 0.0
    %558 = vmatprep.subr.mxu0 0.0
    %559 = vmatpush1.msra.mxu0 0.0
    %560 = vmatprep.subr.mxu0 0.0
    %561 = vmatpush1.msra.mxu0 0.0
    %562 = vmatprep.subr.mxu0 0.0
    %563 = vmatpush1.msra.mxu0 0.0
    %564 = vmatprep.subr.mxu0 0.0
    %565 = vmatpush1.msra.mxu0 0.0
    %566 = vmatprep.subr.mxu0 0.0
    %567 = vmatpush1.msra.mxu0 0.0
    %568 = vmatprep.subr.mxu0 0.0
    %569 = vmatpush1.msra.mxu0 0.0
    %570 = vmatprep.subr.mxu0 0.0
    %571 = vmatpush1.msra.mxu0 0.0
    %572 = vmatprep.subr.mxu0 0.0
    %573 = vmatpush1.msra.mxu0 0.0
    %574 = vmatprep.subr.mxu0 0.0
    %575 = vmatpush1.msra.mxu0 0.0
    %576 = vmatprep.subr.mxu0 0.0
    %577 = vmatpush1.msra.mxu0 0.0
    %578 = vmatprep.subr.mxu0 0.0
    %579 = vmatpush1.msra.mxu0 0.0
    %580 = vmatprep.subr.mxu0 0.0
    %581 = vmatpush1.msra.mxu0 0.0
    %582 = vmatprep.subr.mxu0 0.0
    %583 = vmatpush1.msra.mxu0 0.0
    %584 = vmatprep.subr.mxu0 0.0
    %585 = vmatpush1.msra.mxu0 0.0
    %586 = vmatprep.subr.mxu0 0.0
    %587 = vmatpush1.msra.mxu0 0.0
    %588 = vmatprep.subr.mxu0 0.0
    %589 = vmatpush1.msra.mxu0 0.0
    %590 = vmatprep.subr.mxu0 0.0
    %591 = vmatpush1.msra.mxu0 0.0
    %592 = vmatprep.subr.mxu0 0.0
    %593 = vmatpush1.msra.mxu0 0.0
    %594 = vmatprep.subr.mxu0 0.0
    %595 = vmatpush1.msra.mxu0 0.0
    %596 = vmatprep.subr.mxu0 0.0
    %597 = vmatpush1.msra.mxu0 0.0
    %598 = vmatprep.subr.mxu0 0.0
    %599 = vmatpush1.msra.mxu0 0.0
    %600 = vmatprep.subr.mxu0 0.0
    %601 = vmatpush1.msra.mxu0 0.0
    %602 = vmatprep.mubr.f32.mxu0 0.0
    %v603 = vand.u32 %v49, 4294901760
    %604 = vmatmul.mubr.f32.gmra.mrb[0].mxu0 %v603
    %v605 = vpop.f32.mrb[0].mxu0
    %v606 = vadd.f32 %v486, %v605
    %v607 = vpop.f32.mrb[0].mxu0
    %v608 = vadd.f32 %v488, %v607
    %609 = vdwg.mxu0
    %v610 = vand.u32 %v19, 4294901760
    %611 = vmatprep.subr.mxu0 %v610
    %v612 = vand.u32 %v18, 4294901760
    %613 = vmatpush1.msra.mxu0 %v612
    %v614 = vand.u32 %v21, 4294901760
    %615 = vmatprep.subr.mxu0 %v614
    %v616 = vand.u32 %v20, 4294901760
    %617 = vmatpush1.msra.mxu0 %v616
    %v618 = vand.u32 %v23, 4294901760
    %619 = vmatprep.subr.mxu0 %v618
    %v620 = vand.u32 %v22, 4294901760
    %621 = vmatpush1.msra.mxu0 %v620
    %v622 = vand.u32 %v25, 4294901760
    %623 = vmatprep.subr.mxu0 %v622
    %v624 = vand.u32 %v24, 4294901760
    %625 = vmatpush1.msra.mxu0 %v624
    %v626 = vand.u32 %v27, 4294901760
    %627 = vmatprep.subr.mxu0 %v626
    %v628 = vand.u32 %v26, 4294901760
    %629 = vmatpush1.msra.mxu0 %v628
    %v630 = vand.u32 %v29, 4294901760
    %631 = vmatprep.subr.mxu0 %v630
    %v632 = vand.u32 %v28, 4294901760
    %633 = vmatpush1.msra.mxu0 %v632
    %v634 = vand.u32 %v31, 4294901760
    %635 = vmatprep.subr.mxu0 %v634
    %v636 = vand.u32 %v30, 4294901760
    %637 = vmatpush1.msra.mxu0 %v636
    %v638 = vand.u32 %v33, 4294901760
    %639 = vmatprep.subr.mxu0 %v638
    %v640 = vand.u32 %v32, 4294901760
    %641 = vmatpush1.msra.mxu0 %v640
    %642 = vmatprep.subr.mxu0 0.0
    %643 = vmatpush1.msra.mxu0 0.0
    %644 = vmatprep.subr.mxu0 0.0
    %645 = vmatpush1.msra.mxu0 0.0
    %646 = vmatprep.subr.mxu0 0.0
    %647 = vmatpush1.msra.mxu0 0.0
    %648 = vmatprep.subr.mxu0 0.0
    %649 = vmatpush1.msra.mxu0 0.0
    %650 = vmatprep.subr.mxu0 0.0
    %651 = vmatpush1.msra.mxu0 0.0
    %652 = vmatprep.subr.mxu0 0.0
    %653 = vmatpush1.msra.mxu0 0.0
    %654 = vmatprep.subr.mxu0 0.0
    %655 = vmatpush1.msra.mxu0 0.0
    %656 = vmatprep.subr.mxu0 0.0
    %657 = vmatpush1.msra.mxu0 0.0
    %658 = vmatprep.subr.mxu0 0.0
    %659 = vmatpush1.msra.mxu0 0.0
    %660 = vmatprep.subr.mxu0 0.0
    %661 = vmatpush1.msra.mxu0 0.0
    %662 = vmatprep.subr.mxu0 0.0
    %663 = vmatpush1.msra.mxu0 0.0
    %664 = vmatprep.subr.mxu0 0.0
    %665 = vmatpush1.msra.mxu0 0.0
    %666 = vmatprep.subr.mxu0 0.0
    %667 = vmatpush1.msra.mxu0 0.0
    %668 = vmatprep.subr.mxu0 0.0
    %669 = vmatpush1.msra.mxu0 0.0
    %670 = vmatprep.subr.mxu0 0.0
    %671 = vmatpush1.msra.mxu0 0.0
    %672 = vmatprep.subr.mxu0 0.0
    %673 = vmatpush1.msra.mxu0 0.0
    %674 = vmatprep.subr.mxu0 0.0
    %675 = vmatpush1.msra.mxu0 0.0
    %676 = vmatprep.subr.mxu0 0.0
    %677 = vmatpush1.msra.mxu0 0.0
    %678 = vmatprep.subr.mxu0 0.0
    %679 = vmatpush1.msra.mxu0 0.0
    %680 = vmatprep.subr.mxu0 0.0
    %681 = vmatpush1.msra.mxu0 0.0
    %682 = vmatprep.subr.mxu0 0.0
    %683 = vmatpush1.msra.mxu0 0.0
    %684 = vmatprep.subr.mxu0 0.0
    %685 = vmatpush1.msra.mxu0 0.0
    %686 = vmatprep.subr.mxu0 0.0
    %687 = vmatpush1.msra.mxu0 0.0
    %688 = vmatprep.subr.mxu0 0.0
    %689 = vmatpush1.msra.mxu0 0.0
    %690 = vmatprep.mubr.f32.mxu0 0.0
    %v691 = vand.u32 %v49, 4294901760
    %692 = vmatmul.mubr.f32.gmra.mrb[0].mxu0 %v691
    %v693 = vpop.f32.mrb[0].mxu0
    %v694 = vadd.f32 %v606, %v693
    %v695 = vpop.f32.mrb[0].mxu0
    %v696 = vadd.f32 %v608, %v695
    %697 = vdwg.mxu0
    %v700 = vcombine.low %v694, %v696
    %v702 = vadd.f32 %v46, %v700
    %v703 = vxor.u32 %v702, 2147483648
    %v704 = vmul.f32 %v703, 1.442695
    %v705 = vpow.pop %v704
    %v706 = vadd.f32 %v705, 1.0
    %v707 = vrcp.pop %v706
    %v708 = vmul.f32 1.0, %v707
    %v709 = vmul.f32 %v708, %v696
    %v711 = vrot.slane %v46, 4
    %v713 = vadd.f32 %v711, %v709
    %v714 = vtanh.pop %v713
    %v715 = vsub.f32 1.0, %v708
    %717 = vrot.lane.b32.xlu0 %v714, 64
    %v718 = vpop.permute.xlu0 %717
    %v720 = vmul.f32 %v715, %v718
    %v721 = vmul.f32 %v708, 0.0
    %v722 = vadd.f32 %v720, %v721
    %724 = vrot.lane.b32.xlu0 %v722, 64
    %v725 = vpop.permute.xlu0 %724
    %vm727 = vcmask 257024
    %728 = vst.msk [vmem:[#allocation3] sm:$0xf] %vm727, %v725
    %729 = vrot.lane.b32.xlu0 %v722, 32
    %v730 = vpop.permute.xlu0 %729
    %s732 = scalar_lea.vmem [#allocation2], 28
    %733 = vst.msk [vmem:[%s732] sm:$0xf] %vm727, %v730
    %s734 = scalar_lea.vmem %s0, 8
    %v735 = vld [vmem:[%s734] sm:$0xff]
    %v736 = vsel %vm47, %v725, 0
    %v738 = vand.u32 %v19, 4294901760
    %739 = vmatprep.subr.mxu0 %v738
    %v740 = vand.u32 %v18, 4294901760
    %741 = vmatpush1.msra.mxu0 %v740
    %v742 = vand.u32 %v21, 4294901760
    %743 = vmatprep.subr.mxu0 %v742
    %v744 = vand.u32 %v20, 4294901760
    %745 = vmatpush1.msra.mxu0 %v744
    %v746 = vand.u32 %v23, 4294901760
    %747 = vmatprep.subr.mxu0 %v746
    %v748 = vand.u32 %v22, 4294901760
    %749 = vmatpush1.msra.mxu0 %v748
    %v750 = vand.u32 %v25, 4294901760
    %751 = vmatprep.subr.mxu0 %v750
    %v752 = vand.u32 %v24, 4294901760
    %753 = vmatpush1.msra.mxu0 %v752
    %v754 = vand.u32 %v27, 4294901760
    %755 = vmatprep.subr.mxu0 %v754
    %v756 = vand.u32 %v26, 4294901760
    %757 = vmatpush1.msra.mxu0 %v756
    %v758 = vand.u32 %v29, 4294901760
    %759 = vmatprep.subr.mxu0 %v758
    %v760 = vand.u32 %v28, 4294901760
    %761 = vmatpush1.msra.mxu0 %v760
    %v762 = vand.u32 %v31, 4294901760
    %763 = vmatprep.subr.mxu0 %v762
    %v764 = vand.u32 %v30, 4294901760
    %765 = vmatpush1.msra.mxu0 %v764
    %v766 = vand.u32 %v33, 4294901760
    %767 = vmatprep.subr.mxu0 %v766
    %v768 = vand.u32 %v32, 4294901760
    %769 = vmatpush1.msra.mxu0 %v768
    %770 = vmatprep.subr.mxu0 0.0
    %771 = vmatpush1.msra.mxu0 0.0
    %772 = vmatprep.subr.mxu0 0.0
    %773 = vmatpush1.msra.mxu0 0.0
    %774 = vmatprep.subr.mxu0 0.0
    %775 = vmatpush1.msra.mxu0 0.0
    %776 = vmatprep.subr.mxu0 0.0
    %777 = vmatpush1.msra.mxu0 0.0
    %778 = vmatprep.subr.mxu0 0.0
    %779 = vmatpush1.msra.mxu0 0.0
    %780 = vmatprep.subr.mxu0 0.0
    %781 = vmatpush1.msra.mxu0 0.0
    %782 = vmatprep.subr.mxu0 0.0
    %783 = vmatpush1.msra.mxu0 0.0
    %784 = vmatprep.subr.mxu0 0.0
    %785 = vmatpush1.msra.mxu0 0.0
    %786 = vmatprep.subr.mxu0 0.0
    %787 = vmatpush1.msra.mxu0 0.0
    %788 = vmatprep.subr.mxu0 0.0
    %789 = vmatpush1.msra.mxu0 0.0
    %790 = vmatprep.subr.mxu0 0.0
    %791 = vmatpush1.msra.mxu0 0.0
    %792 = vmatprep.subr.mxu0 0.0
    %793 = vmatpush1.msra.mxu0 0.0
    %794 = vmatprep.subr.mxu0 0.0
    %795 = vmatpush1.msra.mxu0 0.0
    %796 = vmatprep.subr.mxu0 0.0
    %797 = vmatpush1.msra.mxu0 0.0
    %798 = vmatprep.subr.mxu0 0.0
    %799 = vmatpush1.msra.mxu0 0.0
    %800 = vmatprep.subr.mxu0 0.0
    %801 = vmatpush1.msra.mxu0 0.0
    %802 = vmatprep.subr.mxu0 0.0
    %803 = vmatpush1.msra.mxu0 0.0
    %804 = vmatprep.subr.mxu0 0.0
    %805 = vmatpush1.msra.mxu0 0.0
    %806 = vmatprep.subr.mxu0 0.0
    %807 = vmatpush1.msra.mxu0 0.0
    %808 = vmatprep.subr.mxu0 0.0
    %809 = vmatpush1.msra.mxu0 0.0
    %810 = vmatprep.subr.mxu0 0.0
    %811 = vmatpush1.msra.mxu0 0.0
    %812 = vmatprep.subr.mxu0 0.0
    %813 = vmatpush1.msra.mxu0 0.0
    %814 = vmatprep.subr.mxu0 0.0
    %815 = vmatpush1.msra.mxu0 0.0
    %816 = vmatprep.subr.mxu0 0.0
    %817 = vmatpush1.msra.mxu0 0.0
    %818 = vmatprep.mubr.f32.mxu0 0.0
    %v819 = vand.u32 %v736, 4294901760
    %v820 = vsub.f32 %v736, %v819
    %v821 = vand.u32 %v820, 4294901760
    %v822 = vsub.f32 %v820, %v821
    %v823 = vand.u32 %v822, 4294901760
    %824 = vmatmul.mubr.f32.gmra.mrb[0].mxu0 %v823
    %v825 = vpop.f32.mrb[0].mxu0
    %v826 = vadd.f32 %v39, %v825
    %v827 = vpop.f32.mrb[0].mxu0
    %v828 = vadd.f32 %v43, %v827
    %829 = vdwg.mxu0
    %v830 = vand.u32 %v19, 4294901760
    %v831 = vsub.f32 %v19, %v830
    %v832 = vand.u32 %v831, 4294901760
    %v833 = vsub.f32 %v831, %v832
    %v834 = vand.u32 %v833, 4294901760
    %835 = vmatprep.subr.mxu0 %v834
    %v836 = vand.u32 %v18, 4294901760
    %v837 = vsub.f32 %v18, %v836
    %v838 = vand.u32 %v837, 4294901760
    %v839 = vsub.f32 %v837, %v838
    %v840 = vand.u32 %v839, 4294901760
    %841 = vmatpush1.msra.mxu0 %v840
    %v842 = vand.u32 %v21, 4294901760
    %v843 = vsub.f32 %v21, %v842
    %v844 = vand.u32 %v843, 4294901760
    %v845 = vsub.f32 %v843, %v844
    %v846 = vand.u32 %v845, 4294901760
    %847 = vmatprep.subr.mxu0 %v846
    %v848 = vand.u32 %v20, 4294901760
    %v849 = vsub.f32 %v20, %v848
    %v850 = vand.u32 %v849, 4294901760
    %v851 = vsub.f32 %v849, %v850
    %v852 = vand.u32 %v851, 4294901760
    %853 = vmatpush1.msra.mxu0 %v852
    %v854 = vand.u32 %v23, 4294901760
    %v855 = vsub.f32 %v23, %v854
    %v856 = vand.u32 %v855, 4294901760
    %v857 = vsub.f32 %v855, %v856
    %v858 = vand.u32 %v857, 4294901760
    %859 = vmatprep.subr.mxu0 %v858
    %v860 = vand.u32 %v22, 4294901760
    %v861 = vsub.f32 %v22, %v860
    %v862 = vand.u32 %v861, 4294901760
    %v863 = vsub.f32 %v861, %v862
    %v864 = vand.u32 %v863, 4294901760
    %865 = vmatpush1.msra.mxu0 %v864
    %v866 = vand.u32 %v25, 4294901760
    %v867 = vsub.f32 %v25, %v866
    %v868 = vand.u32 %v867, 4294901760
    %v869 = vsub.f32 %v867, %v868
    %v870 = vand.u32 %v869, 4294901760
    %871 = vmatprep.subr.mxu0 %v870
    %v872 = vand.u32 %v24, 4294901760
    %v873 = vsub.f32 %v24, %v872
    %v874 = vand.u32 %v873, 4294901760
    %v875 = vsub.f32 %v873, %v874
    %v876 = vand.u32 %v875, 4294901760
    %877 = vmatpush1.msra.mxu0 %v876
    %v878 = vand.u32 %v27, 4294901760
    %v879 = vsub.f32 %v27, %v878
    %v880 = vand.u32 %v879, 4294901760
    %v881 = vsub.f32 %v879, %v880
    %v882 = vand.u32 %v881, 4294901760
    %883 = vmatprep.subr.mxu0 %v882
    %v884 = vand.u32 %v26, 4294901760
    %v885 = vsub.f32 %v26, %v884
    %v886 = vand.u32 %v885, 4294901760
    %v887 = vsub.f32 %v885, %v886
    %v888 = vand.u32 %v887, 4294901760
    %889 = vmatpush1.msra.mxu0 %v888
    %v890 = vand.u32 %v29, 4294901760
    %v891 = vsub.f32 %v29, %v890
    %v892 = vand.u32 %v891, 4294901760
    %v893 = vsub.f32 %v891, %v892
    %v894 = vand.u32 %v893, 4294901760
    %895 = vmatprep.subr.mxu0 %v894
    %v896 = vand.u32 %v28, 4294901760
    %v897 = vsub.f32 %v28, %v896
    %v898 = vand.u32 %v897, 4294901760
    %v899 = vsub.f32 %v897, %v898
    %v900 = vand.u32 %v899, 4294901760
    %901 = vmatpush1.msra.mxu0 %v900
    %v902 = vand.u32 %v31, 4294901760
    %v903 = vsub.f32 %v31, %v902
    %v904 = vand.u32 %v903, 4294901760
    %v905 = vsub.f32 %v903, %v904
    %v906 = vand.u32 %v905, 4294901760
    %907 = vmatprep.subr.mxu0 %v906
    %v908 = vand.u32 %v30, 4294901760
    %v909 = vsub.f32 %v30, %v908
    %v910 = vand.u32 %v909, 4294901760
    %v911 = vsub.f32 %v909, %v910
    %v912 = vand.u32 %v911, 4294901760
    %913 = vmatpush1.msra.mxu0 %v912
    %v914 = vand.u32 %v33, 4294901760
    %v915 = vsub.f32 %v33, %v914
    %v916 = vand.u32 %v915, 4294901760
    %v917 = vsub.f32 %v915, %v916
    %v918 = vand.u32 %v917, 4294901760
    %919 = vmatprep.subr.mxu0 %v918
    %v920 = vand.u32 %v32, 4294901760
    %v921 = vsub.f32 %v32, %v920
    %v922 = vand.u32 %v921, 4294901760
    %v923 = vsub.f32 %v921, %v922
    %v924 = vand.u32 %v923, 4294901760
    %925 = vmatpush1.msra.mxu0 %v924
    %926 = vmatprep.subr.mxu0 0.0
    %927 = vmatpush1.msra.mxu0 0.0
    %928 = vmatprep.subr.mxu0 0.0
    %929 = vmatpush1.msra.mxu0 0.0
    %930 = vmatprep.subr.mxu0 0.0
    %931 = vmatpush1.msra.mxu0 0.0
    %932 = vmatprep.subr.mxu0 0.0
    %933 = vmatpush1.msra.mxu0 0.0
    %934 = vmatprep.subr.mxu0 0.0
    %935 = vmatpush1.msra.mxu0 0.0
    %936 = vmatprep.subr.mxu0 0.0
    %937 = vmatpush1.msra.mxu0 0.0
    %938 = vmatprep.subr.mxu0 0.0
    %939 = vmatpush1.msra.mxu0 0.0
    %940 = vmatprep.subr.mxu0 0.0
    %941 = vmatpush1.msra.mxu0 0.0
    %942 = vmatprep.subr.mxu0 0.0
    %943 = vmatpush1.msra.mxu0 0.0
    %944 = vmatprep.subr.mxu0 0.0
    %945 = vmatpush1.msra.mxu0 0.0
    %946 = vmatprep.subr.mxu0 0.0
    %947 = vmatpush1.msra.mxu0 0.0
    %948 = vmatprep.subr.mxu0 0.0
    %949 = vmatpush1.msra.mxu0 0.0
    %950 = vmatprep.subr.mxu0 0.0
    %951 = vmatpush1.msra.mxu0 0.0
    %952 = vmatprep.subr.mxu0 0.0
    %953 = vmatpush1.msra.mxu0 0.0
    %954 = vmatprep.subr.mxu0 0.0
    %955 = vmatpush1.msra.mxu0 0.0
    %956 = vmatprep.subr.mxu0 0.0
    %957 = vmatpush1.msra.mxu0 0.0
    %958 = vmatprep.subr.mxu0 0.0
    %959 = vmatpush1.msra.mxu0 0.0
    %960 = vmatprep.subr.mxu0 0.0
    %961 = vmatpush1.msra.mxu0 0.0
    %962 = vmatprep.subr.mxu0 0.0
    %963 = vmatpush1.msra.mxu0 0.0
    %964 = vmatprep.subr.mxu0 0.0
    %965 = vmatpush1.msra.mxu0 0.0
    %966 = vmatprep.subr.mxu0 0.0
    %967 = vmatpush1.msra.mxu0 0.0
    %968 = vmatprep.subr.mxu0 0.0
    %969 = vmatpush1.msra.mxu0 0.0
    %970 = vmatprep.subr.mxu0 0.0
    %971 = vmatpush1.msra.mxu0 0.0
    %972 = vmatprep.subr.mxu0 0.0
    %973 = vmatpush1.msra.mxu0 0.0
    %974 = vmatprep.mubr.f32.mxu0 0.0
    %v975 = vand.u32 %v736, 4294901760
    %976 = vmatmul.mubr.f32.gmra.mrb[0].mxu0 %v975
    %v977 = vpop.f32.mrb[0].mxu0
    %v978 = vadd.f32 %v826, %v977
    %v979 = vpop.f32.mrb[0].mxu0
    %v980 = vadd.f32 %v828, %v979
    %981 = vdwg.mxu0
    %v982 = vand.u32 %v19, 4294901760
    %v983 = vsub.f32 %v19, %v982
    %984 = vmatprep.subr.mxu0 %v983
    %v985 = vand.u32 %v18, 4294901760
    %v986 = vsub.f32 %v18, %v985
    %987 = vmatpush1.msra.mxu0 %v986
    %v988 = vand.u32 %v21, 4294901760
    %v989 = vsub.f32 %v21, %v988
    %990 = vmatprep.subr.mxu0 %v989
    %v991 = vand.u32 %v20, 4294901760
    %v992 = vsub.f32 %v20, %v991
    %993 = vmatpush1.msra.mxu0 %v992
    %v994 = vand.u32 %v23, 4294901760
    %v995 = vsub.f32 %v23, %v994
    %996 = vmatprep.subr.mxu0 %v995
    %v997 = vand.u32 %v22, 4294901760
    %v998 = vsub.f32 %v22, %v997
    %999 = vmatpush1.msra.mxu0 %v998
    %v1000 = vand.u32 %v25, 4294901760
    %v1001 = vsub.f32 %v25, %v1000
    %1002 = vmatprep.subr.mxu0 %v1001
    %v1003 = vand.u32 %v24, 4294901760
    %v1004 = vsub.f32 %v24, %v1003
    %1005 = vmatpush1.msra.mxu0 %v1004
    %v1006 = vand.u32 %v27, 4294901760
    %v1007 = vsub.f32 %v27, %v1006
    %1008 = vmatprep.subr.mxu0 %v1007
    %v1009 = vand.u32 %v26, 4294901760
    %v1010 = vsub.f32 %v26, %v1009
    %1011 = vmatpush1.msra.mxu0 %v1010
    %v1012 = vand.u32 %v29, 4294901760
    %v1013 = vsub.f32 %v29, %v1012
    %1014 = vmatprep.subr.mxu0 %v1013
    %v1015 = vand.u32 %v28, 4294901760
    %v1016 = vsub.f32 %v28, %v1015
    %1017 = vmatpush1.msra.mxu0 %v1016
    %v1018 = vand.u32 %v31, 4294901760
    %v1019 = vsub.f32 %v31, %v1018
    %1020 = vmatprep.subr.mxu0 %v1019
    %v1021 = vand.u32 %v30, 4294901760
    %v1022 = vsub.f32 %v30, %v1021
    %1023 = vmatpush1.msra.mxu0 %v1022
    %v1024 = vand.u32 %v33, 4294901760
    %v1025 = vsub.f32 %v33, %v1024
    %1026 = vmatprep.subr.mxu0 %v1025
    %v1027 = vand.u32 %v32, 4294901760
    %v1028 = vsub.f32 %v32, %v1027
    %1029 = vmatpush1.msra.mxu0 %v1028
    %1030 = vmatprep.subr.mxu0 0.0
    %1031 = vmatpush1.msra.mxu0 0.0
    %1032 = vmatprep.subr.mxu0 0.0
    %1033 = vmatpush1.msra.mxu0 0.0
    %1034 = vmatprep.subr.mxu0 0.0
    %1035 = vmatpush1.msra.mxu0 0.0
    %1036 = vmatprep.subr.mxu0 0.0
    %1037 = vmatpush1.msra.mxu0 0.0
    %1038 = vmatprep.subr.mxu0 0.0
    %1039 = vmatpush1.msra.mxu0 0.0
    %1040 = vmatprep.subr.mxu0 0.0
    %1041 = vmatpush1.msra.mxu0 0.0
    %1042 = vmatprep.subr.mxu0 0.0
    %1043 = vmatpush1.msra.mxu0 0.0
    %1044 = vmatprep.subr.mxu0 0.0
    %1045 = vmatpush1.msra.mxu0 0.0
    %1046 = vmatprep.subr.mxu0 0.0
    %1047 = vmatpush1.msra.mxu0 0.0
    %1048 = vmatprep.subr.mxu0 0.0
    %1049 = vmatpush1.msra.mxu0 0.0
    %1050 = vmatprep.subr.mxu0 0.0
    %1051 = vmatpush1.msra.mxu0 0.0
    %1052 = vmatprep.subr.mxu0 0.0
    %1053 = vmatpush1.msra.mxu0 0.0
    %1054 = vmatprep.subr.mxu0 0.0
    %1055 = vmatpush1.msra.mxu0 0.0
    %1056 = vmatprep.subr.mxu0 0.0
    %1057 = vmatpush1.msra.mxu0 0.0
    %1058 = vmatprep.subr.mxu0 0.0
    %1059 = vmatpush1.msra.mxu0 0.0
    %1060 = vmatprep.subr.mxu0 0.0
    %1061 = vmatpush1.msra.mxu0 0.0
    %1062 = vmatprep.subr.mxu0 0.0
    %1063 = vmatpush1.msra.mxu0 0.0
    %1064 = vmatprep.subr.mxu0 0.0
    %1065 = vmatpush1.msra.mxu0 0.0
    %1066 = vmatprep.subr.mxu0 0.0
    %1067 = vmatpush1.msra.mxu0 0.0
    %1068 = vmatprep.subr.mxu0 0.0
    %1069 = vmatpush1.msra.mxu0 0.0
    %1070 = vmatprep.subr.mxu0 0.0
    %1071 = vmatpush1.msra.mxu0 0.0
    %1072 = vmatprep.subr.mxu0 0.0
    %1073 = vmatpush1.msra.mxu0 0.0
    %1074 = vmatprep.subr.mxu0 0.0
    %1075 = vmatpush1.msra.mxu0 0.0
    %1076 = vmatprep.subr.mxu0 0.0
    %1077 = vmatpush1.msra.mxu0 0.0
    %1078 = vmatprep.mubr.f32.mxu0 0.0
    %v1079 = vand.u32 %v736, 4294901760
    %v1080 = vsub.f32 %v736, %v1079
    %1081 = vmatmul.mubr.f32.gmra.mrb[0].mxu0 %v1080
    %v1082 = vpop.f32.mrb[0].mxu0
    %v1083 = vadd.f32 %v978, %v1082
    %v1084 = vpop.f32.mrb[0].mxu0
    %v1085 = vadd.f32 %v980, %v1084
    %1086 = vdwg.mxu0
    %v1087 = vand.u32 %v19, 4294901760
    %1088 = vmatprep.subr.mxu0 %v1087
    %v1089 = vand.u32 %v18, 4294901760
    %1090 = vmatpush1.msra.mxu0 %v1089
    %v1091 = vand.u32 %v21, 4294901760
    %1092 = vmatprep.subr.mxu0 %v1091
    %v1093 = vand.u32 %v20, 4294901760
    %1094 = vmatpush1.msra.mxu0 %v1093
    %v1095 = vand.u32 %v23, 4294901760
    %1096 = vmatprep.subr.mxu0 %v1095
    %v1097 = vand.u32 %v22, 4294901760
    %1098 = vmatpush1.msra.mxu0 %v1097
    %v1099 = vand.u32 %v25, 4294901760
    %1100 = vmatprep.subr.mxu0 %v1099
    %v1101 = vand.u32 %v24, 4294901760
    %1102 = vmatpush1.msra.mxu0 %v1101
    %v1103 = vand.u32 %v27, 4294901760
    %1104 = vmatprep.subr.mxu0 %v1103
    %v1105 = vand.u32 %v26, 4294901760
    %1106 = vmatpush1.msra.mxu0 %v1105
    %v1107 = vand.u32 %v29, 4294901760
    %1108 = vmatprep.subr.mxu0 %v1107
    %v1109 = vand.u32 %v28, 4294901760
    %1110 = vmatpush1.msra.mxu0 %v1109
    %v1111 = vand.u32 %v31, 4294901760
    %1112 = vmatprep.subr.mxu0 %v1111
    %v1113 = vand.u32 %v30, 4294901760
    %1114 = vmatpush1.msra.mxu0 %v1113
    %v1115 = vand.u32 %v33, 4294901760
    %1116 = vmatprep.subr.mxu0 %v1115
    %v1117 = vand.u32 %v32, 4294901760
    %1118 = vmatpush1.msra.mxu0 %v1117
    %1119 = vmatprep.subr.mxu0 0.0
    %1120 = vmatpush1.msra.mxu0 0.0
    %1121 = vmatprep.subr.mxu0 0.0
    %1122 = vmatpush1.msra.mxu0 0.0
    %1123 = vmatprep.subr.mxu0 0.0
    %1124 = vmatpush1.msra.mxu0 0.0
    %1125 = vmatprep.subr.mxu0 0.0
    %1126 = vmatpush1.msra.mxu0 0.0
    %1127 = vmatprep.subr.mxu0 0.0
    %1128 = vmatpush1.msra.mxu0 0.0
    %1129 = vmatprep.subr.mxu0 0.0
    %1130 = vmatpush1.msra.mxu0 0.0
    %1131 = vmatprep.subr.mxu0 0.0
    %1132 = vmatpush1.msra.mxu0 0.0
    %1133 = vmatprep.subr.mxu0 0.0
    %1134 = vmatpush1.msra.mxu0 0.0
    %1135 = vmatprep.subr.mxu0 0.0
    %1136 = vmatpush1.msra.mxu0 0.0
    %1137 = vmatprep.subr.mxu0 0.0
    %1138 = vmatpush1.msra.mxu0 0.0
    %1139 = vmatprep.subr.mxu0 0.0
    %1140 = vmatpush1.msra.mxu0 0.0
    %1141 = vmatprep.subr.mxu0 0.0
    %1142 = vmatpush1.msra.mxu0 0.0
    %1143 = vmatprep.subr.mxu0 0.0
    %1144 = vmatpush1.msra.mxu0 0.0
    %1145 = vmatprep.subr.mxu0 0.0
    %1146 = vmatpush1.msra.mxu0 0.0
    %1147 = vmatprep.subr.mxu0 0.0
    %1148 = vmatpush1.msra.mxu0 0.0
    %1149 = vmatprep.subr.mxu0 0.0
    %1150 = vmatpush1.msra.mxu0 0.0
    %1151 = vmatprep.subr.mxu0 0.0
    %1152 = vmatpush1.msra.mxu0 0.0
    %1153 = vmatprep.subr.mxu0 0.0
    %1154 = vmatpush1.msra.mxu0 0.0
    %1155 = vmatprep.subr.mxu0 0.0
    %1156 = vmatpush1.msra.mxu0 0.0
    %1157 = vmatprep.subr.mxu0 0.0
    %1158 = vmatpush1.msra.mxu0 0.0
    %1159 = vmatprep.subr.mxu0 0.0
    %1160 = vmatpush1.msra.mxu0 0.0
    %1161 = vmatprep.subr.mxu0 0.0
    %1162 = vmatpush1.msra.mxu0 0.0
    %1163 = vmatprep.subr.mxu0 0.0
    %1164 = vmatpush1.msra.mxu0 0.0
    %1165 = vmatprep.subr.mxu0 0.0
    %1166 = vmatpush1.msra.mxu0 0.0
    %1167 = vmatprep.mubr.f32.mxu0 0.0
    %v1168 = vand.u32 %v736, 4294901760
    %v1169 = vsub.f32 %v736, %v1168
    %v1170 = vand.u32 %v1169, 4294901760
    %1171 = vmatmul.mubr.f32.gmra.mrb[0].mxu0 %v1170
    %v1172 = vpop.f32.mrb[0].mxu0
    %v1173 = vadd.f32 %v1083, %v1172
    %v1174 = vpop.f32.mrb[0].mxu0
    %v1175 = vadd.f32 %v1085, %v1174
    %1176 = vdwg.mxu0
    %v1177 = vand.u32 %v19, 4294901760
    %v1178 = vsub.f32 %v19, %v1177
    %v1179 = vand.u32 %v1178, 4294901760
    %1180 = vmatprep.subr.mxu0 %v1179
    %v1181 = vand.u32 %v18, 4294901760
    %v1182 = vsub.f32 %v18, %v1181
    %v1183 = vand.u32 %v1182, 4294901760
    %1184 = vmatpush1.msra.mxu0 %v1183
    %v1185 = vand.u32 %v21, 4294901760
    %v1186 = vsub.f32 %v21, %v1185
    %v1187 = vand.u32 %v1186, 4294901760
    %1188 = vmatprep.subr.mxu0 %v1187
    %v1189 = vand.u32 %v20, 4294901760
    %v1190 = vsub.f32 %v20, %v1189
    %v1191 = vand.u32 %v1190, 4294901760
    %1192 = vmatpush1.msra.mxu0 %v1191
    %v1193 = vand.u32 %v23, 4294901760
    %v1194 = vsub.f32 %v23, %v1193
    %v1195 = vand.u32 %v1194, 4294901760
    %1196 = vmatprep.subr.mxu0 %v1195
    %v1197 = vand.u32 %v22, 4294901760
    %v1198 = vsub.f32 %v22, %v1197
    %v1199 = vand.u32 %v1198, 4294901760
    %1200 = vmatpush1.msra.mxu0 %v1199
    %v1201 = vand.u32 %v25, 4294901760
    %v1202 = vsub.f32 %v25, %v1201
    %v1203 = vand.u32 %v1202, 4294901760
    %1204 = vmatprep.subr.mxu0 %v1203
    %v1205 = vand.u32 %v24, 4294901760
    %v1206 = vsub.f32 %v24, %v1205
    %v1207 = vand.u32 %v1206, 4294901760
    %1208 = vmatpush1.msra.mxu0 %v1207
    %v1209 = vand.u32 %v27, 4294901760
    %v1210 = vsub.f32 %v27, %v1209
    %v1211 = vand.u32 %v1210, 4294901760
    %1212 = vmatprep.subr.mxu0 %v1211
    %v1213 = vand.u32 %v26, 4294901760
    %v1214 = vsub.f32 %v26, %v1213
    %v1215 = vand.u32 %v1214, 4294901760
    %1216 = vmatpush1.msra.mxu0 %v1215
    %v1217 = vand.u32 %v29, 4294901760
    %v1218 = vsub.f32 %v29, %v1217
    %v1219 = vand.u32 %v1218, 4294901760
    %1220 = vmatprep.subr.mxu0 %v1219
    %v1221 = vand.u32 %v28, 4294901760
    %v1222 = vsub.f32 %v28, %v1221
    %v1223 = vand.u32 %v1222, 4294901760
    %1224 = vmatpush1.msra.mxu0 %v1223
    %v1225 = vand.u32 %v31, 4294901760
    %v1226 = vsub.f32 %v31, %v1225
    %v1227 = vand.u32 %v1226, 4294901760
    %1228 = vmatprep.subr.mxu0 %v1227
    %v1229 = vand.u32 %v30, 4294901760
    %v1230 = vsub.f32 %v30, %v1229
    %v1231 = vand.u32 %v1230, 4294901760
    %1232 = vmatpush1.msra.mxu0 %v1231
    %v1233 = vand.u32 %v33, 4294901760
    %v1234 = vsub.f32 %v33, %v1233
    %v1235 = vand.u32 %v1234, 4294901760
    %1236 = vmatprep.subr.mxu0 %v1235
    %v1237 = vand.u32 %v32, 4294901760
    %v1238 = vsub.f32 %v32, %v1237
    %v1239 = vand.u32 %v1238, 4294901760
    %1240 = vmatpush1.msra.mxu0 %v1239
    %1241 = vmatprep.subr.mxu0 0.0
    %1242 = vmatpush1.msra.mxu0 0.0
    %1243 = vmatprep.subr.mxu0 0.0
    %1244 = vmatpush1.msra.mxu0 0.0
    %1245 = vmatprep.subr.mxu0 0.0
    %1246 = vmatpush1.msra.mxu0 0.0
    %1247 = vmatprep.subr.mxu0 0.0
    %1248 = vmatpush1.msra.mxu0 0.0
    %1249 = vmatprep.subr.mxu0 0.0
    %1250 = vmatpush1.msra.mxu0 0.0
    %1251 = vmatprep.subr.mxu0 0.0
    %1252 = vmatpush1.msra.mxu0 0.0
    %1253 = vmatprep.subr.mxu0 0.0
    %1254 = vmatpush1.msra.mxu0 0.0
    %1255 = vmatprep.subr.mxu0 0.0
    %1256 = vmatpush1.msra.mxu0 0.0
    %1257 = vmatprep.subr.mxu0 0.0
    %1258 = vmatpush1.msra.mxu0 0.0
    %1259 = vmatprep.subr.mxu0 0.0
    %1260 = vmatpush1.msra.mxu0 0.0
    %1261 = vmatprep.subr.mxu0 0.0
    %1262 = vmatpush1.msra.mxu0 0.0
    %1263 = vmatprep.subr.mxu0 0.0
    %1264 = vmatpush1.msra.mxu0 0.0
    %1265 = vmatprep.subr.mxu0 0.0
    %1266 = vmatpush1.msra.mxu0 0.0
    %1267 = vmatprep.subr.mxu0 0.0
    %1268 = vmatpush1.msra.mxu0 0.0
    %1269 = vmatprep.subr.mxu0 0.0
    %1270 = vmatpush1.msra.mxu0 0.0
    %1271 = vmatprep.subr.mxu0 0.0
    %1272 = vmatpush1.msra.mxu0 0.0
    %1273 = vmatprep.subr.mxu0 0.0
    %1274 = vmatpush1.msra.mxu0 0.0
    %1275 = vmatprep.subr.mxu0 0.0
    %1276 = vmatpush1.msra.mxu0 0.0
    %1277 = vmatprep.subr.mxu0 0.0
    %1278 = vmatpush1.msra.mxu0 0.0
    %1279 = vmatprep.subr.mxu0 0.0
    %1280 = vmatpush1.msra.mxu0 0.0
    %1281 = vmatprep.subr.mxu0 0.0
    %1282 = vmatpush1.msra.mxu0 0.0
    %1283 = vmatprep.subr.mxu0 0.0
    %1284 = vmatpush1.msra.mxu0 0.0
    %1285 = vmatprep.subr.mxu0 0.0
    %1286 = vmatpush1.msra.mxu0 0.0
    %1287 = vmatprep.subr.mxu0 0.0
    %1288 = vmatpush1.msra.mxu0 0.0
    %1289 = vmatprep.mubr.f32.mxu0 0.0
    %v1290 = vand.u32 %v736, 4294901760
    %1291 = vmatmul.mubr.f32.gmra.mrb[0].mxu0 %v1290
    %v1292 = vpop.f32.mrb[0].mxu0
    %v1293 = vadd.f32 %v1173, %v1292
    %v1294 = vpop.f32.mrb[0].mxu0
    %v1295 = vadd.f32 %v1175, %v1294
    %1296 = vdwg.mxu0
    %v1297 = vand.u32 %v19, 4294901760
    %1298 = vmatprep.subr.mxu0 %v1297
    %v1299 = vand.u32 %v18, 4294901760
    %1300 = vmatpush1.msra.mxu0 %v1299
    %v1301 = vand.u32 %v21, 4294901760
    %1302 = vmatprep.subr.mxu0 %v1301
    %v1303 = vand.u32 %v20, 4294901760
    %1304 = vmatpush1.msra.mxu0 %v1303
    %v1305 = vand.u32 %v23, 4294901760
    %1306 = vmatprep.subr.mxu0 %v1305
    %v1307 = vand.u32 %v22, 4294901760
    %1308 = vmatpush1.msra.mxu0 %v1307
    %v1309 = vand.u32 %v25, 4294901760
    %1310 = vmatprep.subr.mxu0 %v1309
    %v1311 = vand.u32 %v24, 4294901760
    %1312 = vmatpush1.msra.mxu0 %v1311
    %v1313 = vand.u32 %v27, 4294901760
    %1314 = vmatprep.subr.mxu0 %v1313
    %v1315 = vand.u32 %v26, 4294901760
    %1316 = vmatpush1.msra.mxu0 %v1315
    %v1317 = vand.u32 %v29, 4294901760
    %1318 = vmatprep.subr.mxu0 %v1317
    %v1319 = vand.u32 %v28, 4294901760
    %1320 = vmatpush1.msra.mxu0 %v1319
    %v1321 = vand.u32 %v31, 4294901760
    %1322 = vmatprep.subr.mxu0 %v1321
    %v1323 = vand.u32 %v30, 4294901760
    %1324 = vmatpush1.msra.mxu0 %v1323
    %v1325 = vand.u32 %v33, 4294901760
    %1326 = vmatprep.subr.mxu0 %v1325
    %v1327 = vand.u32 %v32, 4294901760
    %1328 = vmatpush1.msra.mxu0 %v1327
    %1329 = vmatprep.subr.mxu0 0.0
    %1330 = vmatpush1.msra.mxu0 0.0
    %1331 = vmatprep.subr.mxu0 0.0
    %1332 = vmatpush1.msra.mxu0 0.0
    %1333 = vmatprep.subr.mxu0 0.0
    %1334 = vmatpush1.msra.mxu0 0.0
    %1335 = vmatprep.subr.mxu0 0.0
    %1336 = vmatpush1.msra.mxu0 0.0
    %1337 = vmatprep.subr.mxu0 0.0
    %1338 = vmatpush1.msra.mxu0 0.0
    %1339 = vmatprep.subr.mxu0 0.0
    %1340 = vmatpush1.msra.mxu0 0.0
    %1341 = vmatprep.subr.mxu0 0.0
    %1342 = vmatpush1.msra.mxu0 0.0
    %1343 = vmatprep.subr.mxu0 0.0
    %1344 = vmatpush1.msra.mxu0 0.0
    %1345 = vmatprep.subr.mxu0 0.0
    %1346 = vmatpush1.msra.mxu0 0.0
    %1347 = vmatprep.subr.mxu0 0.0
    %1348 = vmatpush1.msra.mxu0 0.0
    %1349 = vmatprep.subr.mxu0 0.0
    %1350 = vmatpush1.msra.mxu0 0.0
    %1351 = vmatprep.subr.mxu0 0.0
    %1352 = vmatpush1.msra.mxu0 0.0
    %1353 = vmatprep.subr.mxu0 0.0
    %1354 = vmatpush1.msra.mxu0 0.0
    %1355 = vmatprep.subr.mxu0 0.0
    %1356 = vmatpush1.msra.mxu0 0.0
    %1357 = vmatprep.subr.mxu0 0.0
    %1358 = vmatpush1.msra.mxu0 0.0
    %1359 = vmatprep.subr.mxu0 0.0
    %1360 = vmatpush1.msra.mxu0 0.0
    %1361 = vmatprep.subr.mxu0 0.0
    %1362 = vmatpush1.msra.mxu0 0.0
    %1363 = vmatprep.subr.mxu0 0.0
    %1364 = vmatpush1.msra.mxu0 0.0
    %1365 = vmatprep.subr.mxu0 0.0
    %1366 = vmatpush1.msra.mxu0 0.0
    %1367 = vmatprep.subr.mxu0 0.0
    %1368 = vmatpush1.msra.mxu0 0.0
    %1369 = vmatprep.subr.mxu0 0.0
    %1370 = vmatpush1.msra.mxu0 0.0
    %1371 = vmatprep.subr.mxu0 0.0
    %1372 = vmatpush1.msra.mxu0 0.0
    %1373 = vmatprep.subr.mxu0 0.0
    %1374 = vmatpush1.msra.mxu0 0.0
    %1375 = vmatprep.subr.mxu0 0.0
    %1376 = vmatpush1.msra.mxu0 0.0
    %1377 = vmatprep.mubr.f32.mxu0 0.0
    %v1378 = vand.u32 %v736, 4294901760
    %1379 = vmatmul.mubr.f32.gmra.mrb[0].mxu0 %v1378
    %v1380 = vpop.f32.mrb[0].mxu0
    %v1381 = vadd.f32 %v1293, %v1380
    %v1382 = vpop.f32.mrb[0].mxu0
    %v1383 = vadd.f32 %v1295, %v1382
    %1384 = vdwg.mxu0
    %v1387 = vcombine.low %v1381, %v1383
    %v1389 = vadd.f32 %v735, %v1387
    %v1390 = vxor.u32 %v1389, 2147483648
    %v1391 = vmul.f32 %v1390, 1.442695
    %v1392 = vpow.pop %v1391
    %v1393 = vadd.f32 %v1392, 1.0
    %v1394 = vrcp.pop %v1393
    %v1395 = vmul.f32 1.0, %v1394
    %v1396 = vmul.f32 %v1395, %v1383
    %v1398 = vrot.slane %v735, 4
    %v1400 = vadd.f32 %v1398, %v1396
    %v1401 = vtanh.pop %v1400
    %v1402 = vsub.f32 1.0, %v1395
    %1404 = vrot.lane.b32.xlu0 %v1401, 64
    %v1405 = vpop.permute.xlu0 %1404
    %v1407 = vmul.f32 %v1402, %v1405
    %v1408 = vmul.f32 %v1395, %v722
    %v1409 = vadd.f32 %v1407, %v1408
    %1411 = vrot.lane.b32.xlu0 %v1409, 64
    %v1412 = vpop.permute.xlu0 %1411
    %s1414 = scalar_lea.vmem [#allocation3], 4
    %1415 = vst.msk [vmem:[%s1414] sm:$0xf] %vm727, %v1412
    %1416 = vrot.lane.b32.xlu0 %v1409, 32
    %v1417 = vpop.permute.xlu0 %1416
    %s1419 = scalar_lea.vmem [#allocation2], 24
    %1420 = vst.msk [vmem:[%s1419] sm:$0xf] %vm727, %v1417
    %s1421 = scalar_lea.vmem %s0, 16
    %v1422 = vld [vmem:[%s1421] sm:$0xff]
    %v1423 = vsel %vm47, %v1412, 0
    %v1425 = vand.u32 %v19, 4294901760
    %1426 = vmatprep.subr.mxu0 %v1425
    %v1427 = vand.u32 %v18, 4294901760
    %1428 = vmatpush1.msra.mxu0 %v1427
    %v1429 = vand.u32 %v21, 4294901760
    %1430 = vmatprep.subr.mxu0 %v1429
    %v1431 = vand.u32 %v20, 4294901760
    %1432 = vmatpush1.msra.mxu0 %v1431
    %v1433 = vand.u32 %v23, 4294901760
    %1434 = vmatprep.subr.mxu0 %v1433
    %v1435 = vand.u32 %v22, 4294901760
    %1436 = vmatpush1.msra.mxu0 %v1435
    %v1437 = vand.u32 %v25, 4294901760
    %1438 = vmatprep.subr.mxu0 %v1437
    %v1439 = vand.u32 %v24, 4294901760
    %1440 = vmatpush1.msra.mxu0 %v1439
    %v1441 = vand.u32 %v27, 4294901760
    %1442 = vmatprep.subr.mxu0 %v1441
    %v1443 = vand.u32 %v26, 4294901760
    %1444 = vmatpush1.msra.mxu0 %v1443
    %v1445 = vand.u32 %v29, 4294901760
    %1446 = vmatprep.subr.mxu0 %v1445
    %v1447 = vand.u32 %v28, 4294901760
    %1448 = vmatpush1.msra.mxu0 %v1447
    %v1449 = vand.u32 %v31, 4294901760
    %1450 = vmatprep.subr.mxu0 %v1449
    %v1451 = vand.u32 %v30, 4294901760
    %1452 = vmatpush1.msra.mxu0 %v1451
    %v1453 = vand.u32 %v33, 4294901760
    %1454 = vmatprep.subr.mxu0 %v1453
    %v1455 = vand.u32 %v32, 4294901760
    %1456 = vmatpush1.msra.mxu0 %v1455
    %1457 = vmatprep.subr.mxu0 0.0
    %1458 = vmatpush1.msra.mxu0 0.0
    %1459 = vmatprep.subr.mxu0 0.0
    %1460 = vmatpush1.msra.mxu0 0.0
    %1461 = vmatprep.subr.mxu0 0.0
    %1462 = vmatpush1.msra.mxu0 0.0
    %1463 = vmatprep.subr.mxu0 0.0
    %1464 = vmatpush1.msra.mxu0 0.0
    %1465 = vmatprep.subr.mxu0 0.0
    %1466 = vmatpush1.msra.mxu0 0.0
    %1467 = vmatprep.subr.mxu0 0.0
    %1468 = vmatpush1.msra.mxu0 0.0
    %1469 = vmatprep.subr.mxu0 0.0
    %1470 = vmatpush1.msra.mxu0 0.0
    %1471 = vmatprep.subr.mxu0 0.0
    %1472 = vmatpush1.msra.mxu0 0.0
    %1473 = vmatprep.subr.mxu0 0.0
    %1474 = vmatpush1.msra.mxu0 0.0
    %1475 = vmatprep.subr.mxu0 0.0
    %1476 = vmatpush1.msra.mxu0 0.0
    %1477 = vmatprep.subr.mxu0 0.0
    %1478 = vmatpush1.msra.mxu0 0.0
    %1479 = vmatprep.subr.mxu0 0.0
    %1480 = vmatpush1.msra.mxu0 0.0
    %1481 = vmatprep.subr.mxu0 0.0
    %1482 = vmatpush1.msra.mxu0 0.0
    %1483 = vmatprep.subr.mxu0 0.0
    %1484 = vmatpush1.msra.mxu0 0.0
    %1485 = vmatprep.subr.mxu0 0.0
    %1486 = vmatpush1.msra.mxu0 0.0
    %1487 = vmatprep.subr.mxu0 0.0
    %1488 = vmatpush1.msra.mxu0 0.0
    %1489 = vmatprep.subr.mxu0 0.0
    %1490 = vmatpush1.msra.mxu0 0.0
    %1491 = vmatprep.subr.mxu0 0.0
    %1492 = vmatpush1.msra.mxu0 0.0
    %1493 = vmatprep.subr.mxu0 0.0
    %1494 = vmatpush1.msra.mxu0 0.0
    %1495 = vmatprep.subr.mxu0 0.0
    %1496 = vmatpush1.msra.mxu0 0.0
    %1497 = vmatprep.subr.mxu0 0.0
    %1498 = vmatpush1.msra.mxu0 0.0
    %1499 = vmatprep.subr.mxu0 0.0
    %1500 = vmatpush1.msra.mxu0 0.0
    %1501 = vmatprep.subr.mxu0 0.0
    %1502 = vmatpush1.msra.mxu0 0.0
    %1503 = vmatprep.subr.mxu0 0.0
    %1504 = vmatpush1.msra.mxu0 0.0
    %1505 = vmatprep.mubr.f32.mxu0 0.0
    %v1506 = vand.u32 %v1423, 4294901760
    %v1507 = vsub.f32 %v1423, %v1506
    %v1508 = vand.u32 %v1507, 4294901760
    %v1509 = vsub.f32 %v1507, %v1508
    %v1510 = vand.u32 %v1509, 4294901760
    %1511 = vmatmul.mubr.f32.gmra.mrb[0].mxu0 %v1510
    %v1512 = vpop.f32.mrb[0].mxu0
    %v1513 = vadd.f32 %v39, %v1512
    %v1514 = vpop.f32.mrb[0].mxu0
    %v1515 = vadd.f32 %v43, %v1514
    %1516 = vdwg.mxu0
    %v1517 = vand.u32 %v19, 4294901760
    %v1518 = vsub.f32 %v19, %v1517
    %v1519 = vand.u32 %v1518, 4294901760
    %v1520 = vsub.f32 %v1518, %v1519
    %v1521 = vand.u32 %v1520, 4294901760
    %1522 = vmatprep.subr.mxu0 %v1521
    %v1523 = vand.u32 %v18, 4294901760
    %v1524 = vsub.f32 %v18, %v1523
    %v1525 = vand.u32 %v1524, 4294901760
    %v1526 = vsub.f32 %v1524, %v1525
    %v1527 = vand.u32 %v1526, 4294901760
    %1528 = vmatpush1.msra.mxu0 %v1527
    %v1529 = vand.u32 %v21, 4294901760
    %v1530 = vsub.f32 %v21, %v1529
    %v1531 = vand.u32 %v1530, 4294901760
    %v1532 = vsub.f32 %v1530, %v1531
    %v1533 = vand.u32 %v1532, 4294901760
    %1534 = vmatprep.subr.mxu0 %v1533
    %v1535 = vand.u32 %v20, 4294901760
    %v1536 = vsub.f32 %v20, %v1535
    %v1537 = vand.u32 %v1536, 4294901760
    %v1538 = vsub.f32 %v1536, %v1537
    %v1539 = vand.u32 %v1538, 4294901760
    %1540 = vmatpush1.msra.mxu0 %v1539
    %v1541 = vand.u32 %v23, 4294901760
    %v1542 = vsub.f32 %v23, %v1541
    %v1543 = vand.u32 %v1542, 4294901760
    %v1544 = vsub.f32 %v1542, %v1543
    %v1545 = vand.u32 %v1544, 4294901760
    %1546 = vmatprep.subr.mxu0 %v1545
    %v1547 = vand.u32 %v22, 4294901760
    %v1548 = vsub.f32 %v22, %v1547
    %v1549 = vand.u32 %v1548, 4294901760
    %v1550 = vsub.f32 %v1548, %v1549
    %v1551 = vand.u32 %v1550, 4294901760
    %1552 = vmatpush1.msra.mxu0 %v1551
    %v1553 = vand.u32 %v25, 4294901760
    %v1554 = vsub.f32 %v25, %v1553
    %v1555 = vand.u32 %v1554, 4294901760
    %v1556 = vsub.f32 %v1554, %v1555
    %v1557 = vand.u32 %v1556, 4294901760
    %1558 = vmatprep.subr.mxu0 %v1557
    %v1559 = vand.u32 %v24, 4294901760
    %v1560 = vsub.f32 %v24, %v1559
    %v1561 = vand.u32 %v1560, 4294901760
    %v1562 = vsub.f32 %v1560, %v1561
    %v1563 = vand.u32 %v1562, 4294901760
    %1564 = vmatpush1.msra.mxu0 %v1563
    %v1565 = vand.u32 %v27, 4294901760
    %v1566 = vsub.f32 %v27, %v1565
    %v1567 = vand.u32 %v1566, 4294901760
    %v1568 = vsub.f32 %v1566, %v1567
    %v1569 = vand.u32 %v1568, 4294901760
    %1570 = vmatprep.subr.mxu0 %v1569
    %v1571 = vand.u32 %v26, 4294901760
    %v1572 = vsub.f32 %v26, %v1571
    %v1573 = vand.u32 %v1572, 4294901760
    %v1574 = vsub.f32 %v1572, %v1573
    %v1575 = vand.u32 %v1574, 4294901760
    %1576 = vmatpush1.msra.mxu0 %v1575
    %v1577 = vand.u32 %v29, 4294901760
    %v1578 = vsub.f32 %v29, %v1577
    %v1579 = vand.u32 %v1578, 4294901760
    %v1580 = vsub.f32 %v1578, %v1579
    %v1581 = vand.u32 %v1580, 4294901760
    %1582 = vmatprep.subr.mxu0 %v1581
    %v1583 = vand.u32 %v28, 4294901760
    %v1584 = vsub.f32 %v28, %v1583
    %v1585 = vand.u32 %v1584, 4294901760
    %v1586 = vsub.f32 %v1584, %v1585
    %v1587 = vand.u32 %v1586, 4294901760
    %1588 = vmatpush1.msra.mxu0 %v1587
    %v1589 = vand.u32 %v31, 4294901760
    %v1590 = vsub.f32 %v31, %v1589
    %v1591 = vand.u32 %v1590, 4294901760
    %v1592 = vsub.f32 %v1590, %v1591
    %v1593 = vand.u32 %v1592, 4294901760
    %1594 = vmatprep.subr.mxu0 %v1593
    %v1595 = vand.u32 %v30, 4294901760
    %v1596 = vsub.f32 %v30, %v1595
    %v1597 = vand.u32 %v1596, 4294901760
    %v1598 = vsub.f32 %v1596, %v1597
    %v1599 = vand.u32 %v1598, 4294901760
    %1600 = vmatpush1.msra.mxu0 %v1599
    %v1601 = vand.u32 %v33, 4294901760
    %v1602 = vsub.f32 %v33, %v1601
    %v1603 = vand.u32 %v1602, 4294901760
    %v1604 = vsub.f32 %v1602, %v1603
    %v1605 = vand.u32 %v1604, 4294901760
    %1606 = vmatprep.subr.mxu0 %v1605
    %v1607 = vand.u32 %v32, 4294901760
    %v1608 = vsub.f32 %v32, %v1607
    %v1609 = vand.u32 %v1608, 4294901760
    %v1610 = vsub.f32 %v1608, %v1609
    %v1611 = vand.u32 %v1610, 4294901760
    %1612 = vmatpush1.msra.mxu0 %v1611
    %1613 = vmatprep.subr.mxu0 0.0
    %1614 = vmatpush1.msra.mxu0 0.0
    %1615 = vmatprep.subr.mxu0 0.0
    %1616 = vmatpush1.msra.mxu0 0.0
    %1617 = vmatprep.subr.mxu0 0.0
    %1618 = vmatpush1.msra.mxu0 0.0
    %1619 = vmatprep.subr.mxu0 0.0
    %1620 = vmatpush1.msra.mxu0 0.0
    %1621 = vmatprep.subr.mxu0 0.0
    %1622 = vmatpush1.msra.mxu0 0.0
    %1623 = vmatprep.subr.mxu0 0.0
    %1624 = vmatpush1.msra.mxu0 0.0
    %1625 = vmatprep.subr.mxu0 0.0
    %1626 = vmatpush1.msra.mxu0 0.0
    %1627 = vmatprep.subr.mxu0 0.0
    %1628 = vmatpush1.msra.mxu0 0.0
    %1629 = vmatprep.subr.mxu0 0.0
    %1630 = vmatpush1.msra.mxu0 0.0
    %1631 = vmatprep.subr.mxu0 0.0
    %1632 = vmatpush1.msra.mxu0 0.0
    %1633 = vmatprep.subr.mxu0 0.0
    %1634 = vmatpush1.msra.mxu0 0.0
    %1635 = vmatprep.subr.mxu0 0.0
    %1636 = vmatpush1.msra.mxu0 0.0
    %1637 = vmatprep.subr.mxu0 0.0
    %1638 = vmatpush1.msra.mxu0 0.0
    %1639 = vmatprep.subr.mxu0 0.0
    %1640 = vmatpush1.msra.mxu0 0.0
    %1641 = vmatprep.subr.mxu0 0.0
    %1642 = vmatpush1.msra.mxu0 0.0
    %1643 = vmatprep.subr.mxu0 0.0
    %1644 = vmatpush1.msra.mxu0 0.0
    %1645 = vmatprep.subr.mxu0 0.0
    %1646 = vmatpush1.msra.mxu0 0.0
    %1647 = vmatprep.subr.mxu0 0.0
    %1648 = vmatpush1.msra.mxu0 0.0
    %1649 = vmatprep.subr.mxu0 0.0
    %1650 = vmatpush1.msra.mxu0 0.0
    %1651 = vmatprep.subr.mxu0 0.0
    %1652 = vmatpush1.msra.mxu0 0.0
    %1653 = vmatprep.subr.mxu0 0.0
    %1654 = vmatpush1.msra.mxu0 0.0
    %1655 = vmatprep.subr.mxu0 0.0
    %1656 = vmatpush1.msra.mxu0 0.0
    %1657 = vmatprep.subr.mxu0 0.0
    %1658 = vmatpush1.msra.mxu0 0.0
    %1659 = vmatprep.subr.mxu0 0.0
    %1660 = vmatpush1.msra.mxu0 0.0
    %1661 = vmatprep.mubr.f32.mxu0 0.0
    %v1662 = vand.u32 %v1423, 4294901760
    %1663 = vmatmul.mubr.f32.gmra.mrb[0].mxu0 %v1662
    %v1664 = vpop.f32.mrb[0].mxu0
    %v1665 = vadd.f32 %v1513, %v1664
    %v1666 = vpop.f32.mrb[0].mxu0
    %v1667 = vadd.f32 %v1515, %v1666
    %1668 = vdwg.mxu0
    %v1669 = vand.u32 %v19, 4294901760
    %v1670 = vsub.f32 %v19, %v1669
    %1671 = vmatprep.subr.mxu0 %v1670
    %v1672 = vand.u32 %v18, 4294901760
    %v1673 = vsub.f32 %v18, %v1672
    %1674 = vmatpush1.msra.mxu0 %v1673
    %v1675 = vand.u32 %v21, 4294901760
    %v1676 = vsub.f32 %v21, %v1675
    %1677 = vmatprep.subr.mxu0 %v1676
    %v1678 = vand.u32 %v20, 4294901760
    %v1679 = vsub.f32 %v20, %v1678
    %1680 = vmatpush1.msra.mxu0 %v1679
    %v1681 = vand.u32 %v23, 4294901760
    %v1682 = vsub.f32 %v23, %v1681
    %1683 = vmatprep.subr.mxu0 %v1682
    %v1684 = vand.u32 %v22, 4294901760
    %v1685 = vsub.f32 %v22, %v1684
    %1686 = vmatpush1.msra.mxu0 %v1685
    %v1687 = vand.u32 %v25, 4294901760
    %v1688 = vsub.f32 %v25, %v1687
    %1689 = vmatprep.subr.mxu0 %v1688
    %v1690 = vand.u32 %v24, 4294901760
    %v1691 = vsub.f32 %v24, %v1690
    %1692 = vmatpush1.msra.mxu0 %v1691
    %v1693 = vand.u32 %v27, 4294901760
    %v1694 = vsub.f32 %v27, %v1693
    %1695 = vmatprep.subr.mxu0 %v1694
    %v1696 = vand.u32 %v26, 4294901760
    %v1697 = vsub.f32 %v26, %v1696
    %1698 = vmatpush1.msra.mxu0 %v1697
    %v1699 = vand.u32 %v29, 4294901760
    %v1700 = vsub.f32 %v29, %v1699
    %1701 = vmatprep.subr.mxu0 %v1700
    %v1702 = vand.u32 %v28, 4294901760
    %v1703 = vsub.f32 %v28, %v1702
    %1704 = vmatpush1.msra.mxu0 %v1703
    %v1705 = vand.u32 %v31, 4294901760
    %v1706 = vsub.f32 %v31, %v1705
    %1707 = vmatprep.subr.mxu0 %v1706
    %v1708 = vand.u32 %v30, 4294901760
    %v1709 = vsub.f32 %v30, %v1708
    %1710 = vmatpush1.msra.mxu0 %v1709
    %v1711 = vand.u32 %v33, 4294901760
    %v1712 = vsub.f32 %v33, %v1711
    %1713 = vmatprep.subr.mxu0 %v1712
    %v1714 = vand.u32 %v32, 4294901760
    %v1715 = vsub.f32 %v32, %v1714
    %1716 = vmatpush1.msra.mxu0 %v1715
    %1717 = vmatprep.subr.mxu0 0.0
    %1718 = vmatpush1.msra.mxu0 0.0
    %1719 = vmatprep.subr.mxu0 0.0
    %1720 = vmatpush1.msra.mxu0 0.0
    %1721 = vmatprep.subr.mxu0 0.0
    %1722 = vmatpush1.msra.mxu0 0.0
    %1723 = vmatprep.subr.mxu0 0.0
    %1724 = vmatpush1.msra.mxu0 0.0
    %1725 = vmatprep.subr.mxu0 0.0
    %1726 = vmatpush1.msra.mxu0 0.0
    %1727 = vmatprep.subr.mxu0 0.0
    %1728 = vmatpush1.msra.mxu0 0.0
    %1729 = vmatprep.subr.mxu0 0.0
    %1730 = vmatpush1.msra.mxu0 0.0
    %1731 = vmatprep.subr.mxu0 0.0
    %1732 = vmatpush1.msra.mxu0 0.0
    %1733 = vmatprep.subr.mxu0 0.0
    %1734 = vmatpush1.msra.mxu0 0.0
    %1735 = vmatprep.subr.mxu0 0.0
    %1736 = vmatpush1.msra.mxu0 0.0
    %1737 = vmatprep.subr.mxu0 0.0
    %1738 = vmatpush1.msra.mxu0 0.0
    %1739 = vmatprep.subr.mxu0 0.0
    %1740 = vmatpush1.msra.mxu0 0.0
    %1741 = vmatprep.subr.mxu0 0.0
    %1742 = vmatpush1.msra.mxu0 0.0
    %1743 = vmatprep.subr.mxu0 0.0
    %1744 = vmatpush1.msra.mxu0 0.0
    %1745 = vmatprep.subr.mxu0 0.0
    %1746 = vmatpush1.msra.mxu0 0.0
    %1747 = vmatprep.subr.mxu0 0.0
    %1748 = vmatpush1.msra.mxu0 0.0
    %1749 = vmatprep.subr.mxu0 0.0
    %1750 = vmatpush1.msra.mxu0 0.0
    %1751 = vmatprep.subr.mxu0 0.0
    %1752 = vmatpush1.msra.mxu0 0.0
    %1753 = vmatprep.subr.mxu0 0.0
    %1754 = vmatpush1.msra.mxu0 0.0
    %1755 = vmatprep.subr.mxu0 0.0
    %1756 = vmatpush1.msra.mxu0 0.0
    %1757 = vmatprep.subr.mxu0 0.0
    %1758 = vmatpush1.msra.mxu0 0.0
    %1759 = vmatprep.subr.mxu0 0.0
    %1760 = vmatpush1.msra.mxu0 0.0
    %1761 = vmatprep.subr.mxu0 0.0
    %1762 = vmatpush1.msra.mxu0 0.0
    %1763 = vmatprep.subr.mxu0 0.0
    %1764 = vmatpush1.msra.mxu0 0.0
    %1765 = vmatprep.mubr.f32.mxu0 0.0
    %v1766 = vand.u32 %v1423, 4294901760
    %v1767 = vsub.f32 %v1423, %v1766
    %1768 = vmatmul.mubr.f32.gmra.mrb[0].mxu0 %v1767
    %v1769 = vpop.f32.mrb[0].mxu0
    %v1770 = vadd.f32 %v1665, %v1769
    %v1771 = vpop.f32.mrb[0].mxu0
    %v1772 = vadd.f32 %v1667, %v1771
    %1773 = vdwg.mxu0
    %v1774 = vand.u32 %v19, 4294901760
    %1775 = vmatprep.subr.mxu0 %v1774
    %v1776 = vand.u32 %v18, 4294901760
    %1777 = vmatpush1.msra.mxu0 %v1776
    %v1778 = vand.u32 %v21, 4294901760
    %1779 = vmatprep.subr.mxu0 %v1778
    %v1780 = vand.u32 %v20, 4294901760
    %1781 = vmatpush1.msra.mxu0 %v1780
    %v1782 = vand.u32 %v23, 4294901760
    %1783 = vmatprep.subr.mxu0 %v1782
    %v1784 = vand.u32 %v22, 4294901760
    %1785 = vmatpush1.msra.mxu0 %v1784
    %v1786 = vand.u32 %v25, 4294901760
    %1787 = vmatprep.subr.mxu0 %v1786
    %v1788 = vand.u32 %v24, 4294901760
    %1789 = vmatpush1.msra.mxu0 %v1788
    %v1790 = vand.u32 %v27, 4294901760
    %1791 = vmatprep.subr.mxu0 %v1790
    %v1792 = vand.u32 %v26, 4294901760
    %1793 = vmatpush1.msra.mxu0 %v1792
    %v1794 = vand.u32 %v29, 4294901760
    %1795 = vmatprep.subr.mxu0 %v1794
    %v1796 = vand.u32 %v28, 4294901760
    %1797 = vmatpush1.msra.mxu0 %v1796
    %v1798 = vand.u32 %v31, 4294901760
    %1799 = vmatprep.subr.mxu0 %v1798
    %v1800 = vand.u32 %v30, 4294901760
    %1801 = vmatpush1.msra.mxu0 %v1800
    %v1802 = vand.u32 %v33, 4294901760
    %1803 = vmatprep.subr.mxu0 %v1802
    %v1804 = vand.u32 %v32, 4294901760
    %1805 = vmatpush1.msra.mxu0 %v1804
    %1806 = vmatprep.subr.mxu0 0.0
    %1807 = vmatpush1.msra.mxu0 0.0
    %1808 = vmatprep.subr.mxu0 0.0
    %1809 = vmatpush1.msra.mxu0 0.0
    %1810 = vmatprep.subr.mxu0 0.0
    %1811 = vmatpush1.msra.mxu0 0.0
    %1812 = vmatprep.subr.mxu0 0.0
    %1813 = vmatpush1.msra.mxu0 0.0
    %1814 = vmatprep.subr.mxu0 0.0
    %1815 = vmatpush1.msra.mxu0 0.0
    %1816 = vmatprep.subr.mxu0 0.0
    %1817 = vmatpush1.msra.mxu0 0.0
    %1818 = vmatprep.subr.mxu0 0.0
    %1819 = vmatpush1.msra.mxu0 0.0
    %1820 = vmatprep.subr.mxu0 0.0
    %1821 = vmatpush1.msra.mxu0 0.0
    %1822 = vmatprep.subr.mxu0 0.0
    %1823 = vmatpush1.msra.mxu0 0.0
    %1824 = vmatprep.subr.mxu0 0.0
    %1825 = vmatpush1.msra.mxu0 0.0
    %1826 = vmatprep.subr.mxu0 0.0
    %1827 = vmatpush1.msra.mxu0 0.0
    %1828 = vmatprep.subr.mxu0 0.0
    %1829 = vmatpush1.msra.mxu0 0.0
    %1830 = vmatprep.subr.mxu0 0.0
    %1831 = vmatpush1.msra.mxu0 0.0
    %1832 = vmatprep.subr.mxu0 0.0
    %1833 = vmatpush1.msra.mxu0 0.0
    %1834 = vmatprep.subr.mxu0 0.0
    %1835 = vmatpush1.msra.mxu0 0.0
    %1836 = vmatprep.subr.mxu0 0.0
    %1837 = vmatpush1.msra.mxu0 0.0
    %1838 = vmatprep.subr.mxu0 0.0
    %1839 = vmatpush1.msra.mxu0 0.0
    %1840 = vmatprep.subr.mxu0 0.0
    %1841 = vmatpush1.msra.mxu0 0.0
    %1842 = vmatprep.subr.mxu0 0.0
    %1843 = vmatpush1.msra.mxu0 0.0
    %1844 = vmatprep.subr.mxu0 0.0
    %1845 = vmatpush1.msra.mxu0 0.0
    %1846 = vmatprep.subr.mxu0 0.0
    %1847 = vmatpush1.msra.mxu0 0.0
    %1848 = vmatprep.subr.mxu0 0.0
    %1849 = vmatpush1.msra.mxu0 0.0
    %1850 = vmatprep.subr.mxu0 0.0
    %1851 = vmatpush1.msra.mxu0 0.0
    %1852 = vmatprep.subr.mxu0 0.0
    %1853 = vmatpush1.msra.mxu0 0.0
    %1854 = vmatprep.mubr.f32.mxu0 0.0
    %v1855 = vand.u32 %v1423, 4294901760
    %v1856 = vsub.f32 %v1423, %v1855
    %v1857 = vand.u32 %v1856, 4294901760
    %1858 = vmatmul.mubr.f32.gmra.mrb[0].mxu0 %v1857
    %v1859 = vpop.f32.mrb[0].mxu0
    %v1860 = vadd.f32 %v1770, %v1859
    %v1861 = vpop.f32.mrb[0].mxu0
    %v1862 = vadd.f32 %v1772, %v1861
    %1863 = vdwg.mxu0
    %v1864 = vand.u32 %v19, 4294901760
    %v1865 = vsub.f32 %v19, %v1864
    %v1866 = vand.u32 %v1865, 4294901760
    %1867 = vmatprep.subr.mxu0 %v1866
    %v1868 = vand.u32 %v18, 4294901760
    %v1869 = vsub.f32 %v18, %v1868
    %v1870 = vand.u32 %v1869, 4294901760
    %1871 = vmatpush1.msra.mxu0 %v1870
    %v1872 = vand.u32 %v21, 4294901760
    %v1873 = vsub.f32 %v21, %v1872
    %v1874 = vand.u32 %v1873, 4294901760
    %1875 = vmatprep.subr.mxu0 %v1874
    %v1876 = vand.u32 %v20, 4294901760
    %v1877 = vsub.f32 %v20, %v1876
    %v1878 = vand.u32 %v1877, 4294901760
    %1879 = vmatpush1.msra.mxu0 %v1878
    %v1880 = vand.u32 %v23, 4294901760
    %v1881 = vsub.f32 %v23, %v1880
    %v1882 = vand.u32 %v1881, 4294901760
    %1883 = vmatprep.subr.mxu0 %v1882
    %v1884 = vand.u32 %v22, 4294901760
    %v1885 = vsub.f32 %v22, %v1884
    %v1886 = vand.u32 %v1885, 4294901760
    %1887 = vmatpush1.msra.mxu0 %v1886
    %v1888 = vand.u32 %v25, 4294901760
    %v1889 = vsub.f32 %v25, %v1888
    %v1890 = vand.u32 %v1889, 4294901760
    %1891 = vmatprep.subr.mxu0 %v1890
    %v1892 = vand.u32 %v24, 4294901760
    %v1893 = vsub.f32 %v24, %v1892
    %v1894 = vand.u32 %v1893, 4294901760
    %1895 = vmatpush1.msra.mxu0 %v1894
    %v1896 = vand.u32 %v27, 4294901760
    %v1897 = vsub.f32 %v27, %v1896
    %v1898 = vand.u32 %v1897, 4294901760
    %1899 = vmatprep.subr.mxu0 %v1898
    %v1900 = vand.u32 %v26, 4294901760
    %v1901 = vsub.f32 %v26, %v1900
    %v1902 = vand.u32 %v1901, 4294901760
    %1903 = vmatpush1.msra.mxu0 %v1902
    %v1904 = vand.u32 %v29, 4294901760
    %v1905 = vsub.f32 %v29, %v1904
    %v1906 = vand.u32 %v1905, 4294901760
    %1907 = vmatprep.subr.mxu0 %v1906
    %v1908 = vand.u32 %v28, 4294901760
    %v1909 = vsub.f32 %v28, %v1908
    %v1910 = vand.u32 %v1909, 4294901760
    %1911 = vmatpush1.msra.mxu0 %v1910
    %v1912 = vand.u32 %v31, 4294901760
    %v1913 = vsub.f32 %v31, %v1912
    %v1914 = vand.u32 %v1913, 4294901760
    %1915 = vmatprep.subr.mxu0 %v1914
    %v1916 = vand.u32 %v30, 4294901760
    %v1917 = vsub.f32 %v30, %v1916
    %v1918 = vand.u32 %v1917, 4294901760
    %1919 = vmatpush1.msra.mxu0 %v1918
    %v1920 = vand.u32 %v33, 4294901760
    %v1921 = vsub.f32 %v33, %v1920
    %v1922 = vand.u32 %v1921, 4294901760
    %1923 = vmatprep.subr.mxu0 %v1922
    %v1924 = vand.u32 %v32, 4294901760
    %v1925 = vsub.f32 %v32, %v1924
    %v1926 = vand.u32 %v1925, 4294901760
    %1927 = vmatpush1.msra.mxu0 %v1926
    %1928 = vmatprep.subr.mxu0 0.0
    %1929 = vmatpush1.msra.mxu0 0.0
    %1930 = vmatprep.subr.mxu0 0.0
    %1931 = vmatpush1.msra.mxu0 0.0
    %1932 = vmatprep.subr.mxu0 0.0
    %1933 = vmatpush1.msra.mxu0 0.0
    %1934 = vmatprep.subr.mxu0 0.0
    %1935 = vmatpush1.msra.mxu0 0.0
    %1936 = vmatprep.subr.mxu0 0.0
    %1937 = vmatpush1.msra.mxu0 0.0
    %1938 = vmatprep.subr.mxu0 0.0
    %1939 = vmatpush1.msra.mxu0 0.0
    %1940 = vmatprep.subr.mxu0 0.0
    %1941 = vmatpush1.msra.mxu0 0.0
    %1942 = vmatprep.subr.mxu0 0.0
    %1943 = vmatpush1.msra.mxu0 0.0
    %1944 = vmatprep.subr.mxu0 0.0
    %1945 = vmatpush1.msra.mxu0 0.0
    %1946 = vmatprep.subr.mxu0 0.0
    %1947 = vmatpush1.msra.mxu0 0.0
    %1948 = vmatprep.subr.mxu0 0.0
    %1949 = vmatpush1.msra.mxu0 0.0
    %1950 = vmatprep.subr.mxu0 0.0
    %1951 = vmatpush1.msra.mxu0 0.0
    %1952 = vmatprep.subr.mxu0 0.0
    %1953 = vmatpush1.msra.mxu0 0.0
    %1954 = vmatprep.subr.mxu0 0.0
    %1955 = vmatpush1.msra.mxu0 0.0
    %1956 = vmatprep.subr.mxu0 0.0
    %1957 = vmatpush1.msra.mxu0 0.0
    %1958 = vmatprep.subr.mxu0 0.0
    %1959 = vmatpush1.msra.mxu0 0.0
    %1960 = vmatprep.subr.mxu0 0.0
    %1961 = vmatpush1.msra.mxu0 0.0
    %1962 = vmatprep.subr.mxu0 0.0
    %1963 = vmatpush1.msra.mxu0 0.0
    %1964 = vmatprep.subr.mxu0 0.0
    %1965 = vmatpush1.msra.mxu0 0.0
    %1966 = vmatprep.subr.mxu0 0.0
    %1967 = vmatpush1.msra.mxu0 0.0
    %1968 = vmatprep.subr.mxu0 0.0
    %1969 = vmatpush1.msra.mxu0 0.0
    %1970 = vmatprep.subr.mxu0 0.0
    %1971 = vmatpush1.msra.mxu0 0.0
    %1972 = vmatprep.subr.mxu0 0.0
    %1973 = vmatpush1.msra.mxu0 0.0
    %1974 = vmatprep.subr.mxu0 0.0
    %1975 = vmatpush1.msra.mxu0 0.0
    %1976 = vmatprep.mubr.f32.mxu0 0.0
    %v1977 = vand.u32 %v1423, 4294901760
    %1978 = vmatmul.mubr.f32.gmra.mrb[0].mxu0 %v1977
    %v1979 = vpop.f32.mrb[0].mxu0
    %v1980 = vadd.f32 %v1860, %v1979
    %v1981 = vpop.f32.mrb[0].mxu0
    %v1982 = vadd.f32 %v1862, %v1981
    %1983 = vdwg.mxu0
    %v1984 = vand.u32 %v19, 4294901760
    %1985 = vmatprep.subr.mxu0 %v1984
    %v1986 = vand.u32 %v18, 4294901760
    %1987 = vmatpush1.msra.mxu0 %v1986
    %v1988 = vand.u32 %v21, 4294901760
    %1989 = vmatprep.subr.mxu0 %v1988
    %v1990 = vand.u32 %v20, 4294901760
    %1991 = vmatpush1.msra.mxu0 %v1990
    %v1992 = vand.u32 %v23, 4294901760
    %1993 = vmatprep.subr.mxu0 %v1992
    %v1994 = vand.u32 %v22, 4294901760
    %1995 = vmatpush1.msra.mxu0 %v1994
    %v1996 = vand.u32 %v25, 4294901760
    %1997 = vmatprep.subr.mxu0 %v1996
    %v1998 = vand.u32 %v24, 4294901760
    %1999 = vmatpush1.msra.mxu0 %v1998
    %v2000 = vand.u32 %v27, 4294901760
    %2001 = vmatprep.subr.mxu0 %v2000
    %v2002 = vand.u32 %v26, 4294901760
    %2003 = vmatpush1.msra.mxu0 %v2002
    %v2004 = vand.u32 %v29, 4294901760
    %2005 = vmatprep.subr.mxu0 %v2004
    %v2006 = vand.u32 %v28, 4294901760
    %2007 = vmatpush1.msra.mxu0 %v2006
    %v2008 = vand.u32 %v31, 4294901760
    %2009 = vmatprep.subr.mxu0 %v2008
    %v2010 = vand.u32 %v30, 4294901760
    %2011 = vmatpush1.msra.mxu0 %v2010
    %v2012 = vand.u32 %v33, 4294901760
    %2013 = vmatprep.subr.mxu0 %v2012
    %v2014 = vand.u32 %v32, 4294901760
    %2015 = vmatpush1.msra.mxu0 %v2014
    %2016 = vmatprep.subr.mxu0 0.0
    %2017 = vmatpush1.msra.mxu0 0.0
    %2018 = vmatprep.subr.mxu0 0.0
    %2019 = vmatpush1.msra.mxu0 0.0
    %2020 = vmatprep.subr.mxu0 0.0
    %2021 = vmatpush1.msra.mxu0 0.0
    %2022 = vmatprep.subr.mxu0 0.0
    %2023 = vmatpush1.msra.mxu0 0.0
    %2024 = vmatprep.subr.mxu0 0.0
    %2025 = vmatpush1.msra.mxu0 0.0
    %2026 = vmatprep.subr.mxu0 0.0
    %2027 = vmatpush1.msra.mxu0 0.0
    %2028 = vmatprep.subr.mxu0 0.0
    %2029 = vmatpush1.msra.mxu0 0.0
    %2030 = vmatprep.subr.mxu0 0.0
    %2031 = vmatpush1.msra.mxu0 0.0
    %2032 = vmatprep.subr.mxu0 0.0
    %2033 = vmatpush1.msra.mxu0 0.0
    %2034 = vmatprep.subr.mxu0 0.0
    %2035 = vmatpush1.msra.mxu0 0.0
    %2036 = vmatprep.subr.mxu0 0.0
    %2037 = vmatpush1.msra.mxu0 0.0
    %2038 = vmatprep.subr.mxu0 0.0
    %2039 = vmatpush1.msra.mxu0 0.0
    %2040 = vmatprep.subr.mxu0 0.0
    %2041 = vmatpush1.msra.mxu0 0.0
    %2042 = vmatprep.subr.mxu0 0.0
    %2043 = vmatpush1.msra.mxu0 0.0
    %2044 = vmatprep.subr.mxu0 0.0
    %2045 = vmatpush1.msra.mxu0 0.0
    %2046 = vmatprep.subr.mxu0 0.0
    %2047 = vmatpush1.msra.mxu0 0.0
    %2048 = vmatprep.subr.mxu0 0.0
    %2049 = vmatpush1.msra.mxu0 0.0
    %2050 = vmatprep.subr.mxu0 0.0
    %2051 = vmatpush1.msra.mxu0 0.0
    %2052 = vmatprep.subr.mxu0 0.0
    %2053 = vmatpush1.msra.mxu0 0.0
    %2054 = vmatprep.subr.mxu0 0.0
    %2055 = vmatpush1.msra.mxu0 0.0
    %2056 = vmatprep.subr.mxu0 0.0
    %2057 = vmatpush1.msra.mxu0 0.0
    %2058 = vmatprep.subr.mxu0 0.0
    %2059 = vmatpush1.msra.mxu0 0.0
    %2060 = vmatprep.subr.mxu0 0.0
    %2061 = vmatpush1.msra.mxu0 0.0
    %2062 = vmatprep.subr.mxu0 0.0
    %2063 = vmatpush1.msra.mxu0 0.0
    %2064 = vmatprep.mubr.f32.mxu0 0.0
    %v2065 = vand.u32 %v1423, 4294901760
    %2066 = vmatmul.mubr.f32.gmra.mrb[0].mxu0 %v2065
    %v2067 = vpop.f32.mrb[0].mxu0
    %v2068 = vadd.f32 %v1980, %v2067
    %v2069 = vpop.f32.mrb[0].mxu0
    %v2070 = vadd.f32 %v1982, %v2069
    %2071 = vdwg.mxu0
    %v2074 = vcombine.low %v2068, %v2070
    %v2076 = vadd.f32 %v1422, %v2074
    %v2077 = vxor.u32 %v2076, 2147483648
    %v2078 = vmul.f32 %v2077, 1.442695
    %v2079 = vpow.pop %v2078
    %v2080 = vadd.f32 %v2079, 1.0
    %v2081 = vrcp.pop %v2080
    %v2082 = vmul.f32 1.0, %v2081
    %v2083 = vmul.f32 %v2082, %v2070
    %v2085 = vrot.slane %v1422, 4
    %v2087 = vadd.f32 %v2085, %v2083
    %v2088 = vtanh.pop %v2087
    %v2089 = vsub.f32 1.0, %v2082
    %2091 = vrot.lane.b32.xlu0 %v2088, 64
    %v2092 = vpop.permute.xlu0 %2091
    %v2094 = vmul.f32 %v2089, %v2092
    %v2095 = vmul.f32 %v2082, %v1409
    %v2096 = vadd.f32 %v2094, %v2095
    %2098 = vrot.lane.b32.xlu0 %v2096, 64
    %v2099 = vpop.permute.xlu0 %2098
    %s2101 = scalar_lea.vmem [#allocation3], 8
    %2102 = vst.msk [vmem:[%s2101] sm:$0xf] %vm727, %v2099
    %2103 = vrot.lane.b32.xlu0 %v2096, 32
    %v2104 = vpop.permute.xlu0 %2103
    %s2106 = scalar_lea.vmem [#allocation2], 20
    %2107 = vst.msk [vmem:[%s2106] sm:$0xf] %vm727, %v2104
    %s2108 = scalar_lea.vmem %s0, 24
    %v2109 = vld [vmem:[%s2108] sm:$0xff]
    %v2110 = vsel %vm47, %v2099, 0
    %v2112 = vand.u32 %v19, 4294901760
    %2113 = vmatprep.subr.mxu0 %v2112
    %v2114 = vand.u32 %v18, 4294901760
    %2115 = vmatpush1.msra.mxu0 %v2114
    %v2116 = vand.u32 %v21, 4294901760
    %2117 = vmatprep.subr.mxu0 %v2116
    %v2118 = vand.u32 %v20, 4294901760
    %2119 = vmatpush1.msra.mxu0 %v2118
    %v2120 = vand.u32 %v23, 4294901760
    %2121 = vmatprep.subr.mxu0 %v2120
    %v2122 = vand.u32 %v22, 4294901760
    %2123 = vmatpush1.msra.mxu0 %v2122
    %v2124 = vand.u32 %v25, 4294901760
    %2125 = vmatprep.subr.mxu0 %v2124
    %v2126 = vand.u32 %v24, 4294901760
    %2127 = vmatpush1.msra.mxu0 %v2126
    %v2128 = vand.u32 %v27, 4294901760
    %2129 = vmatprep.subr.mxu0 %v2128
    %v2130 = vand.u32 %v26, 4294901760
    %2131 = vmatpush1.msra.mxu0 %v2130
    %v2132 = vand.u32 %v29, 4294901760
    %2133 = vmatprep.subr.mxu0 %v2132
    %v2134 = vand.u32 %v28, 4294901760
    %2135 = vmatpush1.msra.mxu0 %v2134
    %v2136 = vand.u32 %v31, 4294901760
    %2137 = vmatprep.subr.mxu0 %v2136
    %v2138 = vand.u32 %v30, 4294901760
    %2139 = vmatpush1.msra.mxu0 %v2138
    %v2140 = vand.u32 %v33, 4294901760
    %2141 = vmatprep.subr.mxu0 %v2140
    %v2142 = vand.u32 %v32, 4294901760
    %2143 = vmatpush1.msra.mxu0 %v2142
    %2144 = vmatprep.subr.mxu0 0.0
    %2145 = vmatpush1.msra.mxu0 0.0
    %2146 = vmatprep.subr.mxu0 0.0
    %2147 = vmatpush1.msra.mxu0 0.0
    %2148 = vmatprep.subr.mxu0 0.0
    %2149 = vmatpush1.msra.mxu0 0.0
    %2150 = vmatprep.subr.mxu0 0.0
    %2151 = vmatpush1.msra.mxu0 0.0
    %2152 = vmatprep.subr.mxu0 0.0
    %2153 = vmatpush1.msra.mxu0 0.0
    %2154 = vmatprep.subr.mxu0 0.0
    %2155 = vmatpush1.msra.mxu0 0.0
    %2156 = vmatprep.subr.mxu0 0.0
    %2157 = vmatpush1.msra.mxu0 0.0
    %2158 = vmatprep.subr.mxu0 0.0
    %2159 = vmatpush1.msra.mxu0 0.0
    %2160 = vmatprep.subr.mxu0 0.0
    %2161 = vmatpush1.msra.mxu0 0.0
    %2162 = vmatprep.subr.mxu0 0.0
    %2163 = vmatpush1.msra.mxu0 0.0
    %2164 = vmatprep.subr.mxu0 0.0
    %2165 = vmatpush1.msra.mxu0 0.0
    %2166 = vmatprep.subr.mxu0 0.0
    %2167 = vmatpush1.msra.mxu0 0.0
    %2168 = vmatprep.subr.mxu0 0.0
    %2169 = vmatpush1.msra.mxu0 0.0
    %2170 = vmatprep.subr.mxu0 0.0
    %2171 = vmatpush1.msra.mxu0 0.0
    %2172 = vmatprep.subr.mxu0 0.0
    %2173 = vmatpush1.msra.mxu0 0.0
    %2174 = vmatprep.subr.mxu0 0.0
    %2175 = vmatpush1.msra.mxu0 0.0
    %2176 = vmatprep.subr.mxu0 0.0
    %2177 = vmatpush1.msra.mxu0 0.0
    %2178 = vmatprep.subr.mxu0 0.0
    %2179 = vmatpush1.msra.mxu0 0.0
    %2180 = vmatprep.subr.mxu0 0.0
    %2181 = vmatpush1.msra.mxu0 0.0
    %2182 = vmatprep.subr.mxu0 0.0
    %2183 = vmatpush1.msra.mxu0 0.0
    %2184 = vmatprep.subr.mxu0 0.0
    %2185 = vmatpush1.msra.mxu0 0.0
    %2186 = vmatprep.subr.mxu0 0.0
    %2187 = vmatpush1.msra.mxu0 0.0
    %2188 = vmatprep.subr.mxu0 0.0
    %2189 = vmatpush1.msra.mxu0 0.0
    %2190 = vmatprep.subr.mxu0 0.0
    %2191 = vmatpush1.msra.mxu0 0.0
    %2192 = vmatprep.mubr.f32.mxu0 0.0
    %v2193 = vand.u32 %v2110, 4294901760
    %v2194 = vsub.f32 %v2110, %v2193
    %v2195 = vand.u32 %v2194, 4294901760
    %v2196 = vsub.f32 %v2194, %v2195
    %v2197 = vand.u32 %v2196, 4294901760
    %2198 = vmatmul.mubr.f32.gmra.mrb[0].mxu0 %v2197
    %v2199 = vpop.f32.mrb[0].mxu0
    %v2200 = vadd.f32 %v39, %v2199
    %v2201 = vpop.f32.mrb[0].mxu0
    %v2202 = vadd.f32 %v43, %v2201
    %2203 = vdwg.mxu0
    %v2204 = vand.u32 %v19, 4294901760
    %v2205 = vsub.f32 %v19, %v2204
    %v2206 = vand.u32 %v2205, 4294901760
    %v2207 = vsub.f32 %v2205, %v2206
    %v2208 = vand.u32 %v2207, 4294901760
    %2209 = vmatprep.subr.mxu0 %v2208
    %v2210 = vand.u32 %v18, 4294901760
    %v2211 = vsub.f32 %v18, %v2210
    %v2212 = vand.u32 %v2211, 4294901760
    %v2213 = vsub.f32 %v2211, %v2212
    %v2214 = vand.u32 %v2213, 4294901760
    %2215 = vmatpush1.msra.mxu0 %v2214
    %v2216 = vand.u32 %v21, 4294901760
    %v2217 = vsub.f32 %v21, %v2216
    %v2218 = vand.u32 %v2217, 4294901760
    %v2219 = vsub.f32 %v2217, %v2218
    %v2220 = vand.u32 %v2219, 4294901760
    %2221 = vmatprep.subr.mxu0 %v2220
    %v2222 = vand.u32 %v20, 4294901760
    %v2223 = vsub.f32 %v20, %v2222
    %v2224 = vand.u32 %v2223, 4294901760
    %v2225 = vsub.f32 %v2223, %v2224
    %v2226 = vand.u32 %v2225, 4294901760
    %2227 = vmatpush1.msra.mxu0 %v2226
    %v2228 = vand.u32 %v23, 4294901760
    %v2229 = vsub.f32 %v23, %v2228
    %v2230 = vand.u32 %v2229, 4294901760
    %v2231 = vsub.f32 %v2229, %v2230
    %v2232 = vand.u32 %v2231, 4294901760
    %2233 = vmatprep.subr.mxu0 %v2232
    %v2234 = vand.u32 %v22, 4294901760
    %v2235 = vsub.f32 %v22, %v2234
    %v2236 = vand.u32 %v2235, 4294901760
    %v2237 = vsub.f32 %v2235, %v2236
    %v2238 = vand.u32 %v2237, 4294901760
    %2239 = vmatpush1.msra.mxu0 %v2238
    %v2240 = vand.u32 %v25, 4294901760
    %v2241 = vsub.f32 %v25, %v2240
    %v2242 = vand.u32 %v2241, 4294901760
    %v2243 = vsub.f32 %v2241, %v2242
    %v2244 = vand.u32 %v2243, 4294901760
    %2245 = vmatprep.subr.mxu0 %v2244
    %v2246 = vand.u32 %v24, 4294901760
    %v2247 = vsub.f32 %v24, %v2246
    %v2248 = vand.u32 %v2247, 4294901760
    %v2249 = vsub.f32 %v2247, %v2248
    %v2250 = vand.u32 %v2249, 4294901760
    %2251 = vmatpush1.msra.mxu0 %v2250
    %v2252 = vand.u32 %v27, 4294901760
    %v2253 = vsub.f32 %v27, %v2252
    %v2254 = vand.u32 %v2253, 4294901760
    %v2255 = vsub.f32 %v2253, %v2254
    %v2256 = vand.u32 %v2255, 4294901760
    %2257 = vmatprep.subr.mxu0 %v2256
    %v2258 = vand.u32 %v26, 4294901760
    %v2259 = vsub.f32 %v26, %v2258
    %v2260 = vand.u32 %v2259, 4294901760
    %v2261 = vsub.f32 %v2259, %v2260
    %v2262 = vand.u32 %v2261, 4294901760
    %2263 = vmatpush1.msra.mxu0 %v2262
    %v2264 = vand.u32 %v29, 4294901760
    %v2265 = vsub.f32 %v29, %v2264
    %v2266 = vand.u32 %v2265, 4294901760
    %v2267 = vsub.f32 %v2265, %v2266
    %v2268 = vand.u32 %v2267, 4294901760
    %2269 = vmatprep.subr.mxu0 %v2268
    %v2270 = vand.u32 %v28, 4294901760
    %v2271 = vsub.f32 %v28, %v2270
    %v2272 = vand.u32 %v2271, 4294901760
    %v2273 = vsub.f32 %v2271, %v2272
    %v2274 = vand.u32 %v2273, 4294901760
    %2275 = vmatpush1.msra.mxu0 %v2274
    %v2276 = vand.u32 %v31, 4294901760
    %v2277 = vsub.f32 %v31, %v2276
    %v2278 = vand.u32 %v2277, 4294901760
    %v2279 = vsub.f32 %v2277, %v2278
    %v2280 = vand.u32 %v2279, 4294901760
    %2281 = vmatprep.subr.mxu0 %v2280
    %v2282 = vand.u32 %v30, 4294901760
    %v2283 = vsub.f32 %v30, %v2282
    %v2284 = vand.u32 %v2283, 4294901760
    %v2285 = vsub.f32 %v2283, %v2284
    %v2286 = vand.u32 %v2285, 4294901760
    %2287 = vmatpush1.msra.mxu0 %v2286
    %v2288 = vand.u32 %v33, 4294901760
    %v2289 = vsub.f32 %v33, %v2288
    %v2290 = vand.u32 %v2289, 4294901760
    %v2291 = vsub.f32 %v2289, %v2290
    %v2292 = vand.u32 %v2291, 4294901760
    %2293 = vmatprep.subr.mxu0 %v2292
    %v2294 = vand.u32 %v32, 4294901760
    %v2295 = vsub.f32 %v32, %v2294
    %v2296 = vand.u32 %v2295, 4294901760
    %v2297 = vsub.f32 %v2295, %v2296
    %v2298 = vand.u32 %v2297, 4294901760
    %2299 = vmatpush1.msra.mxu0 %v2298
    %2300 = vmatprep.subr.mxu0 0.0
    %2301 = vmatpush1.msra.mxu0 0.0
    %2302 = vmatprep.subr.mxu0 0.0
    %2303 = vmatpush1.msra.mxu0 0.0
    %2304 = vmatprep.subr.mxu0 0.0
    %2305 = vmatpush1.msra.mxu0 0.0
    %2306 = vmatprep.subr.mxu0 0.0
    %2307 = vmatpush1.msra.mxu0 0.0
    %2308 = vmatprep.subr.mxu0 0.0
    %2309 = vmatpush1.msra.mxu0 0.0
    %2310 = vmatprep.subr.mxu0 0.0
    %2311 = vmatpush1.msra.mxu0 0.0
    %2312 = vmatprep.subr.mxu0 0.0
    %2313 = vmatpush1.msra.mxu0 0.0
    %2314 = vmatprep.subr.mxu0 0.0
    %2315 = vmatpush1.msra.mxu0 0.0
    %2316 = vmatprep.subr.mxu0 0.0
    %2317 = vmatpush1.msra.mxu0 0.0
    %2318 = vmatprep.subr.mxu0 0.0
    %2319 = vmatpush1.msra.mxu0 0.0
    %2320 = vmatprep.subr.mxu0 0.0
    %2321 = vmatpush1.msra.mxu0 0.0
    %2322 = vmatprep.subr.mxu0 0.0
    %2323 = vmatpush1.msra.mxu0 0.0
    %2324 = vmatprep.subr.mxu0 0.0
    %2325 = vmatpush1.msra.mxu0 0.0
    %2326 = vmatprep.subr.mxu0 0.0
    %2327 = vmatpush1.msra.mxu0 0.0
    %2328 = vmatprep.subr.mxu0 0.0
    %2329 = vmatpush1.msra.mxu0 0.0
    %2330 = vmatprep.subr.mxu0 0.0
    %2331 = vmatpush1.msra.mxu0 0.0
    %2332 = vmatprep.subr.mxu0 0.0
    %2333 = vmatpush1.msra.mxu0 0.0
    %2334 = vmatprep.subr.mxu0 0.0
    %2335 = vmatpush1.msra.mxu0 0.0
    %2336 = vmatprep.subr.mxu0 0.0
    %2337 = vmatpush1.msra.mxu0 0.0
    %2338 = vmatprep.subr.mxu0 0.0
    %2339 = vmatpush1.msra.mxu0 0.0
    %2340 = vmatprep.subr.mxu0 0.0
    %2341 = vmatpush1.msra.mxu0 0.0
    %2342 = vmatprep.subr.mxu0 0.0
    %2343 = vmatpush1.msra.mxu0 0.0
    %2344 = vmatprep.subr.mxu0 0.0
    %2345 = vmatpush1.msra.mxu0 0.0
    %2346 = vmatprep.subr.mxu0 0.0
    %2347 = vmatpush1.msra.mxu0 0.0
    %2348 = vmatprep.mubr.f32.mxu0 0.0
    %v2349 = vand.u32 %v2110, 4294901760
    %2350 = vmatmul.mubr.f32.gmra.mrb[0].mxu0 %v2349
    %v2351 = vpop.f32.mrb[0].mxu0
    %v2352 = vadd.f32 %v2200, %v2351
    %v2353 = vpop.f32.mrb[0].mxu0
    %v2354 = vadd.f32 %v2202, %v2353
    %2355 = vdwg.mxu0
    %v2356 = vand.u32 %v19, 4294901760
    %v2357 = vsub.f32 %v19, %v2356
    %2358 = vmatprep.subr.mxu0 %v2357
    %v2359 = vand.u32 %v18, 4294901760
    %v2360 = vsub.f32 %v18, %v2359
    %2361 = vmatpush1.msra.mxu0 %v2360
    %v2362 = vand.u32 %v21, 4294901760
    %v2363 = vsub.f32 %v21, %v2362
    %2364 = vmatprep.subr.mxu0 %v2363
    %v2365 = vand.u32 %v20, 4294901760
    %v2366 = vsub.f32 %v20, %v2365
    %2367 = vmatpush1.msra.mxu0 %v2366
    %v2368 = vand.u32 %v23, 4294901760
    %v2369 = vsub.f32 %v23, %v2368
    %2370 = vmatprep.subr.mxu0 %v2369
    %v2371 = vand.u32 %v22, 4294901760
    %v2372 = vsub.f32 %v22, %v2371
    %2373 = vmatpush1.msra.mxu0 %v2372
    %v2374 = vand.u32 %v25, 4294901760
    %v2375 = vsub.f32 %v25, %v2374
    %2376 = vmatprep.subr.mxu0 %v2375
    %v2377 = vand.u32 %v24, 4294901760
    %v2378 = vsub.f32 %v24, %v2377
    %2379 = vmatpush1.msra.mxu0 %v2378
    %v2380 = vand.u32 %v27, 4294901760
    %v2381 = vsub.f32 %v27, %v2380
    %2382 = vmatprep.subr.mxu0 %v2381
    %v2383 = vand.u32 %v26, 4294901760
    %v2384 = vsub.f32 %v26, %v2383
    %2385 = vmatpush1.msra.mxu0 %v2384
    %v2386 = vand.u32 %v29, 4294901760
    %v2387 = vsub.f32 %v29, %v2386
    %2388 = vmatprep.subr.mxu0 %v2387
    %v2389 = vand.u32 %v28, 4294901760
    %v2390 = vsub.f32 %v28, %v2389
    %2391 = vmatpush1.msra.mxu0 %v2390
    %v2392 = vand.u32 %v31, 4294901760
    %v2393 = vsub.f32 %v31, %v2392
    %2394 = vmatprep.subr.mxu0 %v2393
    %v2395 = vand.u32 %v30, 4294901760
    %v2396 = vsub.f32 %v30, %v2395
    %2397 = vmatpush1.msra.mxu0 %v2396
    %v2398 = vand.u32 %v33, 4294901760
    %v2399 = vsub.f32 %v33, %v2398
    %2400 = vmatprep.subr.mxu0 %v2399
    %v2401 = vand.u32 %v32, 4294901760
    %v2402 = vsub.f32 %v32, %v2401
    %2403 = vmatpush1.msra.mxu0 %v2402
    %2404 = vmatprep.subr.mxu0 0.0
    %2405 = vmatpush1.msra.mxu0 0.0
    %2406 = vmatprep.subr.mxu0 0.0
    %2407 = vmatpush1.msra.mxu0 0.0
    %2408 = vmatprep.subr.mxu0 0.0
    %2409 = vmatpush1.msra.mxu0 0.0
    %2410 = vmatprep.subr.mxu0 0.0
    %2411 = vmatpush1.msra.mxu0 0.0
    %2412 = vmatprep.subr.mxu0 0.0
    %2413 = vmatpush1.msra.mxu0 0.0
    %2414 = vmatprep.subr.mxu0 0.0
    %2415 = vmatpush1.msra.mxu0 0.0
    %2416 = vmatprep.subr.mxu0 0.0
    %2417 = vmatpush1.msra.mxu0 0.0
    %2418 = vmatprep.subr.mxu0 0.0
    %2419 = vmatpush1.msra.mxu0 0.0
    %2420 = vmatprep.subr.mxu0 0.0
    %2421 = vmatpush1.msra.mxu0 0.0
    %2422 = vmatprep.subr.mxu0 0.0
    %2423 = vmatpush1.msra.mxu0 0.0
    %2424 = vmatprep.subr.mxu0 0.0
    %2425 = vmatpush1.msra.mxu0 0.0
    %2426 = vmatprep.subr.mxu0 0.0
    %2427 = vmatpush1.msra.mxu0 0.0
    %2428 = vmatprep.subr.mxu0 0.0
    %2429 = vmatpush1.msra.mxu0 0.0
    %2430 = vmatprep.subr.mxu0 0.0
    %2431 = vmatpush1.msra.mxu0 0.0
    %2432 = vmatprep.subr.mxu0 0.0
    %2433 = vmatpush1.msra.mxu0 0.0
    %2434 = vmatprep.subr.mxu0 0.0
    %2435 = vmatpush1.msra.mxu0 0.0
    %2436 = vmatprep.subr.mxu0 0.0
    %2437 = vmatpush1.msra.mxu0 0.0
    %2438 = vmatprep.subr.mxu0 0.0
    %2439 = vmatpush1.msra.mxu0 0.0
    %2440 = vmatprep.subr.mxu0 0.0
    %2441 = vmatpush1.msra.mxu0 0.0
    %2442 = vmatprep.subr.mxu0 0.0
    %2443 = vmatpush1.msra.mxu0 0.0
    %2444 = vmatprep.subr.mxu0 0.0
    %2445 = vmatpush1.msra.mxu0 0.0
    %2446 = vmatprep.subr.mxu0 0.0
    %2447 = vmatpush1.msra.mxu0 0.0
    %2448 = vmatprep.subr.mxu0 0.0
    %2449 = vmatpush1.msra.mxu0 0.0
    %2450 = vmatprep.subr.mxu0 0.0
    %2451 = vmatpush1.msra.mxu0 0.0
    %2452 = vmatprep.mubr.f32.mxu0 0.0
    %v2453 = vand.u32 %v2110, 4294901760
    %v2454 = vsub.f32 %v2110, %v2453
    %2455 = vmatmul.mubr.f32.gmra.mrb[0].mxu0 %v2454
    %v2456 = vpop.f32.mrb[0].mxu0
    %v2457 = vadd.f32 %v2352, %v2456
    %v2458 = vpop.f32.mrb[0].mxu0
    %v2459 = vadd.f32 %v2354, %v2458
    %2460 = vdwg.mxu0
    %v2461 = vand.u32 %v19, 4294901760
    %2462 = vmatprep.subr.mxu0 %v2461
    %v2463 = vand.u32 %v18, 4294901760
    %2464 = vmatpush1.msra.mxu0 %v2463
    %v2465 = vand.u32 %v21, 4294901760
    %2466 = vmatprep.subr.mxu0 %v2465
    %v2467 = vand.u32 %v20, 4294901760
    %2468 = vmatpush1.msra.mxu0 %v2467
    %v2469 = vand.u32 %v23, 4294901760
    %2470 = vmatprep.subr.mxu0 %v2469
    %v2471 = vand.u32 %v22, 4294901760
    %2472 = vmatpush1.msra.mxu0 %v2471
    %v2473 = vand.u32 %v25, 4294901760
    %2474 = vmatprep.subr.mxu0 %v2473
    %v2475 = vand.u32 %v24, 4294901760
    %2476 = vmatpush1.msra.mxu0 %v2475
    %v2477 = vand.u32 %v27, 4294901760
    %2478 = vmatprep.subr.mxu0 %v2477
    %v2479 = vand.u32 %v26, 4294901760
    %2480 = vmatpush1.msra.mxu0 %v2479
    %v2481 = vand.u32 %v29, 4294901760
    %2482 = vmatprep.subr.mxu0 %v2481
    %v2483 = vand.u32 %v28, 4294901760
    %2484 = vmatpush1.msra.mxu0 %v2483
    %v2485 = vand.u32 %v31, 4294901760
    %2486 = vmatprep.subr.mxu0 %v2485
    %v2487 = vand.u32 %v30, 4294901760
    %2488 = vmatpush1.msra.mxu0 %v2487
    %v2489 = vand.u32 %v33, 4294901760
    %2490 = vmatprep.subr.mxu0 %v2489
    %v2491 = vand.u32 %v32, 4294901760
    %2492 = vmatpush1.msra.mxu0 %v2491
    %2493 = vmatprep.subr.mxu0 0.0
    %2494 = vmatpush1.msra.mxu0 0.0
    %2495 = vmatprep.subr.mxu0 0.0
    %2496 = vmatpush1.msra.mxu0 0.0
    %2497 = vmatprep.subr.mxu0 0.0
    %2498 = vmatpush1.msra.mxu0 0.0
    %2499 = vmatprep.subr.mxu0 0.0
    %2500 = vmatpush1.msra.mxu0 0.0
    %2501 = vmatprep.subr.mxu0 0.0
    %2502 = vmatpush1.msra.mxu0 0.0
    %2503 = vmatprep.subr.mxu0 0.0
    %2504 = vmatpush1.msra.mxu0 0.0
    %2505 = vmatprep.subr.mxu0 0.0
    %2506 = vmatpush1.msra.mxu0 0.0
    %2507 = vmatprep.subr.mxu0 0.0
    %2508 = vmatpush1.msra.mxu0 0.0
    %2509 = vmatprep.subr.mxu0 0.0
    %2510 = vmatpush1.msra.mxu0 0.0
    %2511 = vmatprep.subr.mxu0 0.0
    %2512 = vmatpush1.msra.mxu0 0.0
    %2513 = vmatprep.subr.mxu0 0.0
    %2514 = vmatpush1.msra.mxu0 0.0
    %2515 = vmatprep.subr.mxu0 0.0
    %2516 = vmatpush1.msra.mxu0 0.0
    %2517 = vmatprep.subr.mxu0 0.0
    %2518 = vmatpush1.msra.mxu0 0.0
    %2519 = vmatprep.subr.mxu0 0.0
    %2520 = vmatpush1.msra.mxu0 0.0
    %2521 = vmatprep.subr.mxu0 0.0
    %2522 = vmatpush1.msra.mxu0 0.0
    %2523 = vmatprep.subr.mxu0 0.0
    %2524 = vmatpush1.msra.mxu0 0.0
    %2525 = vmatprep.subr.mxu0 0.0
    %2526 = vmatpush1.msra.mxu0 0.0
    %2527 = vmatprep.subr.mxu0 0.0
    %2528 = vmatpush1.msra.mxu0 0.0
    %2529 = vmatprep.subr.mxu0 0.0
    %2530 = vmatpush1.msra.mxu0 0.0
    %2531 = vmatprep.subr.mxu0 0.0
    %2532 = vmatpush1.msra.mxu0 0.0
    %2533 = vmatprep.subr.mxu0 0.0
    %2534 = vmatpush1.msra.mxu0 0.0
    %2535 = vmatprep.subr.mxu0 0.0
    %2536 = vmatpush1.msra.mxu0 0.0
    %2537 = vmatprep.subr.mxu0 0.0
    %2538 = vmatpush1.msra.mxu0 0.0
    %2539 = vmatprep.subr.mxu0 0.0
    %2540 = vmatpush1.msra.mxu0 0.0
    %2541 = vmatprep.mubr.f32.mxu0 0.0
    %v2542 = vand.u32 %v2110, 4294901760
    %v2543 = vsub.f32 %v2110, %v2542
    %v2544 = vand.u32 %v2543, 4294901760
    %2545 = vmatmul.mubr.f32.gmra.mrb[0].mxu0 %v2544
    %v2546 = vpop.f32.mrb[0].mxu0
    %v2547 = vadd.f32 %v2457, %v2546
    %v2548 = vpop.f32.mrb[0].mxu0
    %v2549 = vadd.f32 %v2459, %v2548
    %2550 = vdwg.mxu0
    %v2551 = vand.u32 %v19, 4294901760
    %v2552 = vsub.f32 %v19, %v2551
    %v2553 = vand.u32 %v2552, 4294901760
    %2554 = vmatprep.subr.mxu0 %v2553
    %v2555 = vand.u32 %v18, 4294901760
    %v2556 = vsub.f32 %v18, %v2555
    %v2557 = vand.u32 %v2556, 4294901760
    %2558 = vmatpush1.msra.mxu0 %v2557
    %v2559 = vand.u32 %v21, 4294901760
    %v2560 = vsub.f32 %v21, %v2559
    %v2561 = vand.u32 %v2560, 4294901760
    %2562 = vmatprep.subr.mxu0 %v2561
    %v2563 = vand.u32 %v20, 4294901760
    %v2564 = vsub.f32 %v20, %v2563
    %v2565 = vand.u32 %v2564, 4294901760
    %2566 = vmatpush1.msra.mxu0 %v2565
    %v2567 = vand.u32 %v23, 4294901760
    %v2568 = vsub.f32 %v23, %v2567
    %v2569 = vand.u32 %v2568, 4294901760
    %2570 = vmatprep.subr.mxu0 %v2569
    %v2571 = vand.u32 %v22, 4294901760
    %v2572 = vsub.f32 %v22, %v2571
    %v2573 = vand.u32 %v2572, 4294901760
    %2574 = vmatpush1.msra.mxu0 %v2573
    %v2575 = vand.u32 %v25, 4294901760
    %v2576 = vsub.f32 %v25, %v2575
    %v2577 = vand.u32 %v2576, 4294901760
    %2578 = vmatprep.subr.mxu0 %v2577
    %v2579 = vand.u32 %v24, 4294901760
    %v2580 = vsub.f32 %v24, %v2579
    %v2581 = vand.u32 %v2580, 4294901760
    %2582 = vmatpush1.msra.mxu0 %v2581
    %v2583 = vand.u32 %v27, 4294901760
    %v2584 = vsub.f32 %v27, %v2583
    %v2585 = vand.u32 %v2584, 4294901760
    %2586 = vmatprep.subr.mxu0 %v2585
    %v2587 = vand.u32 %v26, 4294901760
    %v2588 = vsub.f32 %v26, %v2587
    %v2589 = vand.u32 %v2588, 4294901760
    %2590 = vmatpush1.msra.mxu0 %v2589
    %v2591 = vand.u32 %v29, 4294901760
    %v2592 = vsub.f32 %v29, %v2591
    %v2593 = vand.u32 %v2592, 4294901760
    %2594 = vmatprep.subr.mxu0 %v2593
    %v2595 = vand.u32 %v28, 4294901760
    %v2596 = vsub.f32 %v28, %v2595
    %v2597 = vand.u32 %v2596, 4294901760
    %2598 = vmatpush1.msra.mxu0 %v2597
    %v2599 = vand.u32 %v31, 4294901760
    %v2600 = vsub.f32 %v31, %v2599
    %v2601 = vand.u32 %v2600, 4294901760
    %2602 = vmatprep.subr.mxu0 %v2601
    %v2603 = vand.u32 %v30, 4294901760
    %v2604 = vsub.f32 %v30, %v2603
    %v2605 = vand.u32 %v2604, 4294901760
    %2606 = vmatpush1.msra.mxu0 %v2605
    %v2607 = vand.u32 %v33, 4294901760
    %v2608 = vsub.f32 %v33, %v2607
    %v2609 = vand.u32 %v2608, 4294901760
    %2610 = vmatprep.subr.mxu0 %v2609
    %v2611 = vand.u32 %v32, 4294901760
    %v2612 = vsub.f32 %v32, %v2611
    %v2613 = vand.u32 %v2612, 4294901760
    %2614 = vmatpush1.msra.mxu0 %v2613
    %2615 = vmatprep.subr.mxu0 0.0
    %2616 = vmatpush1.msra.mxu0 0.0
    %2617 = vmatprep.subr.mxu0 0.0
    %2618 = vmatpush1.msra.mxu0 0.0
    %2619 = vmatprep.subr.mxu0 0.0
    %2620 = vmatpush1.msra.mxu0 0.0
    %2621 = vmatprep.subr.mxu0 0.0
    %2622 = vmatpush1.msra.mxu0 0.0
    %2623 = vmatprep.subr.mxu0 0.0
    %2624 = vmatpush1.msra.mxu0 0.0
    %2625 = vmatprep.subr.mxu0 0.0
    %2626 = vmatpush1.msra.mxu0 0.0
    %2627 = vmatprep.subr.mxu0 0.0
    %2628 = vmatpush1.msra.mxu0 0.0
    %2629 = vmatprep.subr.mxu0 0.0
    %2630 = vmatpush1.msra.mxu0 0.0
    %2631 = vmatprep.subr.mxu0 0.0
    %2632 = vmatpush1.msra.mxu0 0.0
    %2633 = vmatprep.subr.mxu0 0.0
    %2634 = vmatpush1.msra.mxu0 0.0
    %2635 = vmatprep.subr.mxu0 0.0
    %2636 = vmatpush1.msra.mxu0 0.0
    %2637 = vmatprep.subr.mxu0 0.0
    %2638 = vmatpush1.msra.mxu0 0.0
    %2639 = vmatprep.subr.mxu0 0.0
    %2640 = vmatpush1.msra.mxu0 0.0
    %2641 = vmatprep.subr.mxu0 0.0
    %2642 = vmatpush1.msra.mxu0 0.0
    %2643 = vmatprep.subr.mxu0 0.0
    %2644 = vmatpush1.msra.mxu0 0.0
    %2645 = vmatprep.subr.mxu0 0.0
    %2646 = vmatpush1.msra.mxu0 0.0
    %2647 = vmatprep.subr.mxu0 0.0
    %2648 = vmatpush1.msra.mxu0 0.0
    %2649 = vmatprep.subr.mxu0 0.0
    %2650 = vmatpush1.msra.mxu0 0.0
    %2651 = vmatprep.subr.mxu0 0.0
    %2652 = vmatpush1.msra.mxu0 0.0
    %2653 = vmatprep.subr.mxu0 0.0
    %2654 = vmatpush1.msra.mxu0 0.0
    %2655 = vmatprep.subr.mxu0 0.0
    %2656 = vmatpush1.msra.mxu0 0.0
    %2657 = vmatprep.subr.mxu0 0.0
    %2658 = vmatpush1.msra.mxu0 0.0
    %2659 = vmatprep.subr.mxu0 0.0
    %2660 = vmatpush1.msra.mxu0 0.0
    %2661 = vmatprep.subr.mxu0 0.0
    %2662 = vmatpush1.msra.mxu0 0.0
    %2663 = vmatprep.mubr.f32.mxu0 0.0
    %v2664 = vand.u32 %v2110, 4294901760
    %2665 = vmatmul.mubr.f32.gmra.mrb[0].mxu0 %v2664
    %v2666 = vpop.f32.mrb[0].mxu0
    %v2667 = vadd.f32 %v2547, %v2666
    %v2668 = vpop.f32.mrb[0].mxu0
    %v2669 = vadd.f32 %v2549, %v2668
    %2670 = vdwg.mxu0
    %v2671 = vand.u32 %v19, 4294901760
    %2672 = vmatprep.subr.mxu0 %v2671
    %v2673 = vand.u32 %v18, 4294901760
    %2674 = vmatpush1.msra.mxu0 %v2673
    %v2675 = vand.u32 %v21, 4294901760
    %2676 = vmatprep.subr.mxu0 %v2675
    %v2677 = vand.u32 %v20, 4294901760
    %2678 = vmatpush1.msra.mxu0 %v2677
    %v2679 = vand.u32 %v23, 4294901760
    %2680 = vmatprep.subr.mxu0 %v2679
    %v2681 = vand.u32 %v22, 4294901760
    %2682 = vmatpush1.msra.mxu0 %v2681
    %v2683 = vand.u32 %v25, 4294901760
    %2684 = vmatprep.subr.mxu0 %v2683
    %v2685 = vand.u32 %v24, 4294901760
    %2686 = vmatpush1.msra.mxu0 %v2685
    %v2687 = vand.u32 %v27, 4294901760
    %2688 = vmatprep.subr.mxu0 %v2687
    %v2689 = vand.u32 %v26, 4294901760
    %2690 = vmatpush1.msra.mxu0 %v2689
    %v2691 = vand.u32 %v29, 4294901760
    %2692 = vmatprep.subr.mxu0 %v2691
    %v2693 = vand.u32 %v28, 4294901760
    %2694 = vmatpush1.msra.mxu0 %v2693
    %v2695 = vand.u32 %v31, 4294901760
    %2696 = vmatprep.subr.mxu0 %v2695
    %v2697 = vand.u32 %v30, 4294901760
    %2698 = vmatpush1.msra.mxu0 %v2697
    %v2699 = vand.u32 %v33, 4294901760
    %2700 = vmatprep.subr.mxu0 %v2699
    %v2701 = vand.u32 %v32, 4294901760
    %2702 = vmatpush1.msra.mxu0 %v2701
    %2703 = vmatprep.subr.mxu0 0.0
    %2704 = vmatpush1.msra.mxu0 0.0
    %2705 = vmatprep.subr.mxu0 0.0
    %2706 = vmatpush1.msra.mxu0 0.0
    %2707 = vmatprep.subr.mxu0 0.0
    %2708 = vmatpush1.msra.mxu0 0.0
    %2709 = vmatprep.subr.mxu0 0.0
    %2710 = vmatpush1.msra.mxu0 0.0
    %2711 = vmatprep.subr.mxu0 0.0
    %2712 = vmatpush1.msra.mxu0 0.0
    %2713 = vmatprep.subr.mxu0 0.0
    %2714 = vmatpush1.msra.mxu0 0.0
    %2715 = vmatprep.subr.mxu0 0.0
    %2716 = vmatpush1.msra.mxu0 0.0
    %2717 = vmatprep.subr.mxu0 0.0
    %2718 = vmatpush1.msra.mxu0 0.0
    %2719 = vmatprep.subr.mxu0 0.0
    %2720 = vmatpush1.msra.mxu0 0.0
    %2721 = vmatprep.subr.mxu0 0.0
    %2722 = vmatpush1.msra.mxu0 0.0
    %2723 = vmatprep.subr.mxu0 0.0
    %2724 = vmatpush1.msra.mxu0 0.0
    %2725 = vmatprep.subr.mxu0 0.0
    %2726 = vmatpush1.msra.mxu0 0.0
    %2727 = vmatprep.subr.mxu0 0.0
    %2728 = vmatpush1.msra.mxu0 0.0
    %2729 = vmatprep.subr.mxu0 0.0
    %2730 = vmatpush1.msra.mxu0 0.0
    %2731 = vmatprep.subr.mxu0 0.0
    %2732 = vmatpush1.msra.mxu0 0.0
    %2733 = vmatprep.subr.mxu0 0.0
    %2734 = vmatpush1.msra.mxu0 0.0
    %2735 = vmatprep.subr.mxu0 0.0
    %2736 = vmatpush1.msra.mxu0 0.0
    %2737 = vmatprep.subr.mxu0 0.0
    %2738 = vmatpush1.msra.mxu0 0.0
    %2739 = vmatprep.subr.mxu0 0.0
    %2740 = vmatpush1.msra.mxu0 0.0
    %2741 = vmatprep.subr.mxu0 0.0
    %2742 = vmatpush1.msra.mxu0 0.0
    %2743 = vmatprep.subr.mxu0 0.0
    %2744 = vmatpush1.msra.mxu0 0.0
    %2745 = vmatprep.subr.mxu0 0.0
    %2746 = vmatpush1.msra.mxu0 0.0
    %2747 = vmatprep.subr.mxu0 0.0
    %2748 = vmatpush1.msra.mxu0 0.0
    %2749 = vmatprep.subr.mxu0 0.0
    %2750 = vmatpush1.msra.mxu0 0.0
    %2751 = vmatprep.mubr.f32.mxu0 0.0
    %v2752 = vand.u32 %v2110, 4294901760
    %2753 = vmatmul.mubr.f32.gmra.mrb[0].mxu0 %v2752
    %v2754 = vpop.f32.mrb[0].mxu0
    %v2755 = vadd.f32 %v2667, %v2754
    %v2756 = vpop.f32.mrb[0].mxu0
    %v2757 = vadd.f32 %v2669, %v2756
    %2758 = vdwg.mxu0
    %v2761 = vcombine.low %v2755, %v2757
    %v2763 = vadd.f32 %v2109, %v2761
    %v2764 = vxor.u32 %v2763, 2147483648
    %v2765 = vmul.f32 %v2764, 1.442695
    %v2766 = vpow.pop %v2765
    %v2767 = vadd.f32 %v2766, 1.0
    %v2768 = vrcp.pop %v2767
    %v2769 = vmul.f32 1.0, %v2768
    %v2770 = vmul.f32 %v2769, %v2757
    %v2772 = vrot.slane %v2109, 4
    %v2774 = vadd.f32 %v2772, %v2770
    %v2775 = vtanh.pop %v2774
    %v2776 = vsub.f32 1.0, %v2769
    %2778 = vrot.lane.b32.xlu0 %v2775, 64
    %v2779 = vpop.permute.xlu0 %2778
    %v2781 = vmul.f32 %v2776, %v2779
    %v2782 = vmul.f32 %v2769, %v2096
    %v2783 = vadd.f32 %v2781, %v2782
    %2785 = vrot.lane.b32.xlu0 %v2783, 64
    %v2786 = vpop.permute.xlu0 %2785
    %s2788 = scalar_lea.vmem [#allocation3], 12
    %2789 = vst.msk [vmem:[%s2788] sm:$0xf] %vm727, %v2786
    %2790 = vrot.lane.b32.xlu0 %v2783, 32
    %v2791 = vpop.permute.xlu0 %2790
    %s2793 = scalar_lea.vmem [#allocation2], 16
    %2794 = vst.msk [vmem:[%s2793] sm:$0xf] %vm727, %v2791
    %s2795 = scalar_lea.vmem %s0, 32
    %v2796 = vld [vmem:[%s2795] sm:$0xff]
    %v2797 = vsel %vm47, %v2786, 0
    %v2799 = vand.u32 %v19, 4294901760
    %2800 = vmatprep.subr.mxu0 %v2799
    %v2801 = vand.u32 %v18, 4294901760
    %2802 = vmatpush1.msra.mxu0 %v2801
    %v2803 = vand.u32 %v21, 4294901760
    %2804 = vmatprep.subr.mxu0 %v2803
    %v2805 = vand.u32 %v20, 4294901760
    %2806 = vmatpush1.msra.mxu0 %v2805
    %v2807 = vand.u32 %v23, 4294901760
    %2808 = vmatprep.subr.mxu0 %v2807
    %v2809 = vand.u32 %v22, 4294901760
    %2810 = vmatpush1.msra.mxu0 %v2809
    %v2811 = vand.u32 %v25, 4294901760
    %2812 = vmatprep.subr.mxu0 %v2811
    %v2813 = vand.u32 %v24, 4294901760
    %2814 = vmatpush1.msra.mxu0 %v2813
    %v2815 = vand.u32 %v27, 4294901760
    %2816 = vmatprep.subr.mxu0 %v2815
    %v2817 = vand.u32 %v26, 4294901760
    %2818 = vmatpush1.msra.mxu0 %v2817
    %v2819 = vand.u32 %v29, 4294901760
    %2820 = vmatprep.subr.mxu0 %v2819
    %v2821 = vand.u32 %v28, 4294901760
    %2822 = vmatpush1.msra.mxu0 %v2821
    %v2823 = vand.u32 %v31, 4294901760
    %2824 = vmatprep.subr.mxu0 %v2823
    %v2825 = vand.u32 %v30, 4294901760
    %2826 = vmatpush1.msra.mxu0 %v2825
    %v2827 = vand.u32 %v33, 4294901760
    %2828 = vmatprep.subr.mxu0 %v2827
    %v2829 = vand.u32 %v32, 4294901760
    %2830 = vmatpush1.msra.mxu0 %v2829
    %2831 = vmatprep.subr.mxu0 0.0
    %2832 = vmatpush1.msra.mxu0 0.0
    %2833 = vmatprep.subr.mxu0 0.0
    %2834 = vmatpush1.msra.mxu0 0.0
    %2835 = vmatprep.subr.mxu0 0.0
    %2836 = vmatpush1.msra.mxu0 0.0
    %2837 = vmatprep.subr.mxu0 0.0
    %2838 = vmatpush1.msra.mxu0 0.0
    %2839 = vmatprep.subr.mxu0 0.0
    %2840 = vmatpush1.msra.mxu0 0.0
    %2841 = vmatprep.subr.mxu0 0.0
    %2842 = vmatpush1.msra.mxu0 0.0
    %2843 = vmatprep.subr.mxu0 0.0
    %2844 = vmatpush1.msra.mxu0 0.0
    %2845 = vmatprep.subr.mxu0 0.0
    %2846 = vmatpush1.msra.mxu0 0.0
    %2847 = vmatprep.subr.mxu0 0.0
    %2848 = vmatpush1.msra.mxu0 0.0
    %2849 = vmatprep.subr.mxu0 0.0
    %2850 = vmatpush1.msra.mxu0 0.0
    %2851 = vmatprep.subr.mxu0 0.0
    %2852 = vmatpush1.msra.mxu0 0.0
    %2853 = vmatprep.subr.mxu0 0.0
    %2854 = vmatpush1.msra.mxu0 0.0
    %2855 = vmatprep.subr.mxu0 0.0
    %2856 = vmatpush1.msra.mxu0 0.0
    %2857 = vmatprep.subr.mxu0 0.0
    %2858 = vmatpush1.msra.mxu0 0.0
    %2859 = vmatprep.subr.mxu0 0.0
    %2860 = vmatpush1.msra.mxu0 0.0
    %2861 = vmatprep.subr.mxu0 0.0
    %2862 = vmatpush1.msra.mxu0 0.0
    %2863 = vmatprep.subr.mxu0 0.0
    %2864 = vmatpush1.msra.mxu0 0.0
    %2865 = vmatprep.subr.mxu0 0.0
    %2866 = vmatpush1.msra.mxu0 0.0
    %2867 = vmatprep.subr.mxu0 0.0
    %2868 = vmatpush1.msra.mxu0 0.0
    %2869 = vmatprep.subr.mxu0 0.0
    %2870 = vmatpush1.msra.mxu0 0.0
    %2871 = vmatprep.subr.mxu0 0.0
    %2872 = vmatpush1.msra.mxu0 0.0
    %2873 = vmatprep.subr.mxu0 0.0
    %2874 = vmatpush1.msra.mxu0 0.0
    %2875 = vmatprep.subr.mxu0 0.0
    %2876 = vmatpush1.msra.mxu0 0.0
    %2877 = vmatprep.subr.mxu0 0.0
    %2878 = vmatpush1.msra.mxu0 0.0
    %2879 = vmatprep.mubr.f32.mxu0 0.0
    %v2880 = vand.u32 %v2797, 4294901760
    %v2881 = vsub.f32 %v2797, %v2880
    %v2882 = vand.u32 %v2881, 4294901760
    %v2883 = vsub.f32 %v2881, %v2882
    %v2884 = vand.u32 %v2883, 4294901760
    %2885 = vmatmul.mubr.f32.gmra.mrb[0].mxu0 %v2884
    %v2886 = vpop.f32.mrb[0].mxu0
    %v2887 = vadd.f32 %v39, %v2886
    %v2888 = vpop.f32.mrb[0].mxu0
    %v2889 = vadd.f32 %v43, %v2888
    %2890 = vdwg.mxu0
    %v2891 = vand.u32 %v19, 4294901760
    %v2892 = vsub.f32 %v19, %v2891
    %v2893 = vand.u32 %v2892, 4294901760
    %v2894 = vsub.f32 %v2892, %v2893
    %v2895 = vand.u32 %v2894, 4294901760
    %2896 = vmatprep.subr.mxu0 %v2895
    %v2897 = vand.u32 %v18, 4294901760
    %v2898 = vsub.f32 %v18, %v2897
    %v2899 = vand.u32 %v2898, 4294901760
    %v2900 = vsub.f32 %v2898, %v2899
    %v2901 = vand.u32 %v2900, 4294901760
    %2902 = vmatpush1.msra.mxu0 %v2901
    %v2903 = vand.u32 %v21, 4294901760
    %v2904 = vsub.f32 %v21, %v2903
    %v2905 = vand.u32 %v2904, 4294901760
    %v2906 = vsub.f32 %v2904, %v2905
    %v2907 = vand.u32 %v2906, 4294901760
    %2908 = vmatprep.subr.mxu0 %v2907
    %v2909 = vand.u32 %v20, 4294901760
    %v2910 = vsub.f32 %v20, %v2909
    %v2911 = vand.u32 %v2910, 4294901760
    %v2912 = vsub.f32 %v2910, %v2911
    %v2913 = vand.u32 %v2912, 4294901760
    %2914 = vmatpush1.msra.mxu0 %v2913
    %v2915 = vand.u32 %v23, 4294901760
    %v2916 = vsub.f32 %v23, %v2915
    %v2917 = vand.u32 %v2916, 4294901760
    %v2918 = vsub.f32 %v2916, %v2917
    %v2919 = vand.u32 %v2918, 4294901760
    %2920 = vmatprep.subr.mxu0 %v2919
    %v2921 = vand.u32 %v22, 4294901760
    %v2922 = vsub.f32 %v22, %v2921
    %v2923 = vand.u32 %v2922, 4294901760
    %v2924 = vsub.f32 %v2922, %v2923
    %v2925 = vand.u32 %v2924, 4294901760
    %2926 = vmatpush1.msra.mxu0 %v2925
    %v2927 = vand.u32 %v25, 4294901760
    %v2928 = vsub.f32 %v25, %v2927
    %v2929 = vand.u32 %v2928, 4294901760
    %v2930 = vsub.f32 %v2928, %v2929
    %v2931 = vand.u32 %v2930, 4294901760
    %2932 = vmatprep.subr.mxu0 %v2931
    %v2933 = vand.u32 %v24, 4294901760
    %v2934 = vsub.f32 %v24, %v2933
    %v2935 = vand.u32 %v2934, 4294901760
    %v2936 = vsub.f32 %v2934, %v2935
    %v2937 = vand.u32 %v2936, 4294901760
    %2938 = vmatpush1.msra.mxu0 %v2937
    %v2939 = vand.u32 %v27, 4294901760
    %v2940 = vsub.f32 %v27, %v2939
    %v2941 = vand.u32 %v2940, 4294901760
    %v2942 = vsub.f32 %v2940, %v2941
    %v2943 = vand.u32 %v2942, 4294901760
    %2944 = vmatprep.subr.mxu0 %v2943
    %v2945 = vand.u32 %v26, 4294901760
    %v2946 = vsub.f32 %v26, %v2945
    %v2947 = vand.u32 %v2946, 4294901760
    %v2948 = vsub.f32 %v2946, %v2947
    %v2949 = vand.u32 %v2948, 4294901760
    %2950 = vmatpush1.msra.mxu0 %v2949
    %v2951 = vand.u32 %v29, 4294901760
    %v2952 = vsub.f32 %v29, %v2951
    %v2953 = vand.u32 %v2952, 4294901760
    %v2954 = vsub.f32 %v2952, %v2953
    %v2955 = vand.u32 %v2954, 4294901760
    %2956 = vmatprep.subr.mxu0 %v2955
    %v2957 = vand.u32 %v28, 4294901760
    %v2958 = vsub.f32 %v28, %v2957
    %v2959 = vand.u32 %v2958, 4294901760
    %v2960 = vsub.f32 %v2958, %v2959
    %v2961 = vand.u32 %v2960, 4294901760
    %2962 = vmatpush1.msra.mxu0 %v2961
    %v2963 = vand.u32 %v31, 4294901760
    %v2964 = vsub.f32 %v31, %v2963
    %v2965 = vand.u32 %v2964, 4294901760
    %v2966 = vsub.f32 %v2964, %v2965
    %v2967 = vand.u32 %v2966, 4294901760
    %2968 = vmatprep.subr.mxu0 %v2967
    %v2969 = vand.u32 %v30, 4294901760
    %v2970 = vsub.f32 %v30, %v2969
    %v2971 = vand.u32 %v2970, 4294901760
    %v2972 = vsub.f32 %v2970, %v2971
    %v2973 = vand.u32 %v2972, 4294901760
    %2974 = vmatpush1.msra.mxu0 %v2973
    %v2975 = vand.u32 %v33, 4294901760
    %v2976 = vsub.f32 %v33, %v2975
    %v2977 = vand.u32 %v2976, 4294901760
    %v2978 = vsub.f32 %v2976, %v2977
    %v2979 = vand.u32 %v2978, 4294901760
    %2980 = vmatprep.subr.mxu0 %v2979
    %v2981 = vand.u32 %v32, 4294901760
    %v2982 = vsub.f32 %v32, %v2981
    %v2983 = vand.u32 %v2982, 4294901760
    %v2984 = vsub.f32 %v2982, %v2983
    %v2985 = vand.u32 %v2984, 4294901760
    %2986 = vmatpush1.msra.mxu0 %v2985
    %2987 = vmatprep.subr.mxu0 0.0
    %2988 = vmatpush1.msra.mxu0 0.0
    %2989 = vmatprep.subr.mxu0 0.0
    %2990 = vmatpush1.msra.mxu0 0.0
    %2991 = vmatprep.subr.mxu0 0.0
    %2992 = vmatpush1.msra.mxu0 0.0
    %2993 = vmatprep.subr.mxu0 0.0
    %2994 = vmatpush1.msra.mxu0 0.0
    %2995 = vmatprep.subr.mxu0 0.0
    %2996 = vmatpush1.msra.mxu0 0.0
    %2997 = vmatprep.subr.mxu0 0.0
    %2998 = vmatpush1.msra.mxu0 0.0
    %2999 = vmatprep.subr.mxu0 0.0
    %3000 = vmatpush1.msra.mxu0 0.0
    %3001 = vmatprep.subr.mxu0 0.0
    %3002 = vmatpush1.msra.mxu0 0.0
    %3003 = vmatprep.subr.mxu0 0.0
    %3004 = vmatpush1.msra.mxu0 0.0
    %3005 = vmatprep.subr.mxu0 0.0
    %3006 = vmatpush1.msra.mxu0 0.0
    %3007 = vmatprep.subr.mxu0 0.0
    %3008 = vmatpush1.msra.mxu0 0.0
    %3009 = vmatprep.subr.mxu0 0.0
    %3010 = vmatpush1.msra.mxu0 0.0
    %3011 = vmatprep.subr.mxu0 0.0
    %3012 = vmatpush1.msra.mxu0 0.0
    %3013 = vmatprep.subr.mxu0 0.0
    %3014 = vmatpush1.msra.mxu0 0.0
    %3015 = vmatprep.subr.mxu0 0.0
    %3016 = vmatpush1.msra.mxu0 0.0
    %3017 = vmatprep.subr.mxu0 0.0
    %3018 = vmatpush1.msra.mxu0 0.0
    %3019 = vmatprep.subr.mxu0 0.0
    %3020 = vmatpush1.msra.mxu0 0.0
    %3021 = vmatprep.subr.mxu0 0.0
    %3022 = vmatpush1.msra.mxu0 0.0
    %3023 = vmatprep.subr.mxu0 0.0
    %3024 = vmatpush1.msra.mxu0 0.0
    %3025 = vmatprep.subr.mxu0 0.0
    %3026 = vmatpush1.msra.mxu0 0.0
    %3027 = vmatprep.subr.mxu0 0.0
    %3028 = vmatpush1.msra.mxu0 0.0
    %3029 = vmatprep.subr.mxu0 0.0
    %3030 = vmatpush1.msra.mxu0 0.0
    %3031 = vmatprep.subr.mxu0 0.0
    %3032 = vmatpush1.msra.mxu0 0.0
    %3033 = vmatprep.subr.mxu0 0.0
    %3034 = vmatpush1.msra.mxu0 0.0
    %3035 = vmatprep.mubr.f32.mxu0 0.0
    %v3036 = vand.u32 %v2797, 4294901760
    %3037 = vmatmul.mubr.f32.gmra.mrb[0].mxu0 %v3036
    %v3038 = vpop.f32.mrb[0].mxu0
    %v3039 = vadd.f32 %v2887, %v3038
    %v3040 = vpop.f32.mrb[0].mxu0
    %v3041 = vadd.f32 %v2889, %v3040
    %3042 = vdwg.mxu0
    %v3043 = vand.u32 %v19, 4294901760
    %v3044 = vsub.f32 %v19, %v3043
    %3045 = vmatprep.subr.mxu0 %v3044
    %v3046 = vand.u32 %v18, 4294901760
    %v3047 = vsub.f32 %v18, %v3046
    %3048 = vmatpush1.msra.mxu0 %v3047
    %v3049 = vand.u32 %v21, 4294901760
    %v3050 = vsub.f32 %v21, %v3049
    %3051 = vmatprep.subr.mxu0 %v3050
    %v3052 = vand.u32 %v20, 4294901760
    %v3053 = vsub.f32 %v20, %v3052
    %3054 = vmatpush1.msra.mxu0 %v3053
    %v3055 = vand.u32 %v23, 4294901760
    %v3056 = vsub.f32 %v23, %v3055
    %3057 = vmatprep.subr.mxu0 %v3056
    %v3058 = vand.u32 %v22, 4294901760
    %v3059 = vsub.f32 %v22, %v3058
    %3060 = vmatpush1.msra.mxu0 %v3059
    %v3061 = vand.u32 %v25, 4294901760
    %v3062 = vsub.f32 %v25, %v3061
    %3063 = vmatprep.subr.mxu0 %v3062
    %v3064 = vand.u32 %v24, 4294901760
    %v3065 = vsub.f32 %v24, %v3064
    %3066 = vmatpush1.msra.mxu0 %v3065
    %v3067 = vand.u32 %v27, 4294901760
    %v3068 = vsub.f32 %v27, %v3067
    %3069 = vmatprep.subr.mxu0 %v3068
    %v3070 = vand.u32 %v26, 4294901760
    %v3071 = vsub.f32 %v26, %v3070
    %3072 = vmatpush1.msra.mxu0 %v3071
    %v3073 = vand.u32 %v29, 4294901760
    %v3074 = vsub.f32 %v29, %v3073
    %3075 = vmatprep.subr.mxu0 %v3074
    %v3076 = vand.u32 %v28, 4294901760
    %v3077 = vsub.f32 %v28, %v3076
    %3078 = vmatpush1.msra.mxu0 %v3077
    %v3079 = vand.u32 %v31, 4294901760
    %v3080 = vsub.f32 %v31, %v3079
    %3081 = vmatprep.subr.mxu0 %v3080
    %v3082 = vand.u32 %v30, 4294901760
    %v3083 = vsub.f32 %v30, %v3082
    %3084 = vmatpush1.msra.mxu0 %v3083
    %v3085 = vand.u32 %v33, 4294901760
    %v3086 = vsub.f32 %v33, %v3085
    %3087 = vmatprep.subr.mxu0 %v3086
    %v3088 = vand.u32 %v32, 4294901760
    %v3089 = vsub.f32 %v32, %v3088
    %3090 = vmatpush1.msra.mxu0 %v3089
    %3091 = vmatprep.subr.mxu0 0.0
    %3092 = vmatpush1.msra.mxu0 0.0
    %3093 = vmatprep.subr.mxu0 0.0
    %3094 = vmatpush1.msra.mxu0 0.0
    %3095 = vmatprep.subr.mxu0 0.0
    %3096 = vmatpush1.msra.mxu0 0.0
    %3097 = vmatprep.subr.mxu0 0.0
    %3098 = vmatpush1.msra.mxu0 0.0
    %3099 = vmatprep.subr.mxu0 0.0
    %3100 = vmatpush1.msra.mxu0 0.0
    %3101 = vmatprep.subr.mxu0 0.0
    %3102 = vmatpush1.msra.mxu0 0.0
    %3103 = vmatprep.subr.mxu0 0.0
    %3104 = vmatpush1.msra.mxu0 0.0
    %3105 = vmatprep.subr.mxu0 0.0
    %3106 = vmatpush1.msra.mxu0 0.0
    %3107 = vmatprep.subr.mxu0 0.0
    %3108 = vmatpush1.msra.mxu0 0.0
    %3109 = vmatprep.subr.mxu0 0.0
    %3110 = vmatpush1.msra.mxu0 0.0
    %3111 = vmatprep.subr.mxu0 0.0
    %3112 = vmatpush1.msra.mxu0 0.0
    %3113 = vmatprep.subr.mxu0 0.0
    %3114 = vmatpush1.msra.mxu0 0.0
    %3115 = vmatprep.subr.mxu0 0.0
    %3116 = vmatpush1.msra.mxu0 0.0
    %3117 = vmatprep.subr.mxu0 0.0
    %3118 = vmatpush1.msra.mxu0 0.0
    %3119 = vmatprep.subr.mxu0 0.0
    %3120 = vmatpush1.msra.mxu0 0.0
    %3121 = vmatprep.subr.mxu0 0.0
    %3122 = vmatpush1.msra.mxu0 0.0
    %3123 = vmatprep.subr.mxu0 0.0
    %3124 = vmatpush1.msra.mxu0 0.0
    %3125 = vmatprep.subr.mxu0 0.0
    %3126 = vmatpush1.msra.mxu0 0.0
    %3127 = vmatprep.subr.mxu0 0.0
    %3128 = vmatpush1.msra.mxu0 0.0
    %3129 = vmatprep.subr.mxu0 0.0
    %3130 = vmatpush1.msra.mxu0 0.0
    %3131 = vmatprep.subr.mxu0 0.0
    %3132 = vmatpush1.msra.mxu0 0.0
    %3133 = vmatprep.subr.mxu0 0.0
    %3134 = vmatpush1.msra.mxu0 0.0
    %3135 = vmatprep.subr.mxu0 0.0
    %3136 = vmatpush1.msra.mxu0 0.0
    %3137 = vmatprep.subr.mxu0 0.0
    %3138 = vmatpush1.msra.mxu0 0.0
    %3139 = vmatprep.mubr.f32.mxu0 0.0
    %v3140 = vand.u32 %v2797, 4294901760
    %v3141 = vsub.f32 %v2797, %v3140
    %3142 = vmatmul.mubr.f32.gmra.mrb[0].mxu0 %v3141
    %v3143 = vpop.f32.mrb[0].mxu0
    %v3144 = vadd.f32 %v3039, %v3143
    %v3145 = vpop.f32.mrb[0].mxu0
    %v3146 = vadd.f32 %v3041, %v3145
    %3147 = vdwg.mxu0
    %v3148 = vand.u32 %v19, 4294901760
    %3149 = vmatprep.subr.mxu0 %v3148
    %v3150 = vand.u32 %v18, 4294901760
    %3151 = vmatpush1.msra.mxu0 %v3150
    %v3152 = vand.u32 %v21, 4294901760
    %3153 = vmatprep.subr.mxu0 %v3152
    %v3154 = vand.u32 %v20, 4294901760
    %3155 = vmatpush1.msra.mxu0 %v3154
    %v3156 = vand.u32 %v23, 4294901760
    %3157 = vmatprep.subr.mxu0 %v3156
    %v3158 = vand.u32 %v22, 4294901760
    %3159 = vmatpush1.msra.mxu0 %v3158
    %v3160 = vand.u32 %v25, 4294901760
    %3161 = vmatprep.subr.mxu0 %v3160
    %v3162 = vand.u32 %v24, 4294901760
    %3163 = vmatpush1.msra.mxu0 %v3162
    %v3164 = vand.u32 %v27, 4294901760
    %3165 = vmatprep.subr.mxu0 %v3164
    %v3166 = vand.u32 %v26, 4294901760
    %3167 = vmatpush1.msra.mxu0 %v3166
    %v3168 = vand.u32 %v29, 4294901760
    %3169 = vmatprep.subr.mxu0 %v3168
    %v3170 = vand.u32 %v28, 4294901760
    %3171 = vmatpush1.msra.mxu0 %v3170
    %v3172 = vand.u32 %v31, 4294901760
    %3173 = vmatprep.subr.mxu0 %v3172
    %v3174 = vand.u32 %v30, 4294901760
    %3175 = vmatpush1.msra.mxu0 %v3174
    %v3176 = vand.u32 %v33, 4294901760
    %3177 = vmatprep.subr.mxu0 %v3176
    %v3178 = vand.u32 %v32, 4294901760
    %3179 = vmatpush1.msra.mxu0 %v3178
    %3180 = vmatprep.subr.mxu0 0.0
    %3181 = vmatpush1.msra.mxu0 0.0
    %3182 = vmatprep.subr.mxu0 0.0
    %3183 = vmatpush1.msra.mxu0 0.0
    %3184 = vmatprep.subr.mxu0 0.0
    %3185 = vmatpush1.msra.mxu0 0.0
    %3186 = vmatprep.subr.mxu0 0.0
    %3187 = vmatpush1.msra.mxu0 0.0
    %3188 = vmatprep.subr.mxu0 0.0
    %3189 = vmatpush1.msra.mxu0 0.0
    %3190 = vmatprep.subr.mxu0 0.0
    %3191 = vmatpush1.msra.mxu0 0.0
    %3192 = vmatprep.subr.mxu0 0.0
    %3193 = vmatpush1.msra.mxu0 0.0
    %3194 = vmatprep.subr.mxu0 0.0
    %3195 = vmatpush1.msra.mxu0 0.0
    %3196 = vmatprep.subr.mxu0 0.0
    %3197 = vmatpush1.msra.mxu0 0.0
    %3198 = vmatprep.subr.mxu0 0.0
    %3199 = vmatpush1.msra.mxu0 0.0
    %3200 = vmatprep.subr.mxu0 0.0
    %3201 = vmatpush1.msra.mxu0 0.0
    %3202 = vmatprep.subr.mxu0 0.0
    %3203 = vmatpush1.msra.mxu0 0.0
    %3204 = vmatprep.subr.mxu0 0.0
    %3205 = vmatpush1.msra.mxu0 0.0
    %3206 = vmatprep.subr.mxu0 0.0
    %3207 = vmatpush1.msra.mxu0 0.0
    %3208 = vmatprep.subr.mxu0 0.0
    %3209 = vmatpush1.msra.mxu0 0.0
    %3210 = vmatprep.subr.mxu0 0.0
    %3211 = vmatpush1.msra.mxu0 0.0
    %3212 = vmatprep.subr.mxu0 0.0
    %3213 = vmatpush1.msra.mxu0 0.0
    %3214 = vmatprep.subr.mxu0 0.0
    %3215 = vmatpush1.msra.mxu0 0.0
    %3216 = vmatprep.subr.mxu0 0.0
    %3217 = vmatpush1.msra.mxu0 0.0
    %3218 = vmatprep.subr.mxu0 0.0
    %3219 = vmatpush1.msra.mxu0 0.0
    %3220 = vmatprep.subr.mxu0 0.0
    %3221 = vmatpush1.msra.mxu0 0.0
    %3222 = vmatprep.subr.mxu0 0.0
    %3223 = vmatpush1.msra.mxu0 0.0
    %3224 = vmatprep.subr.mxu0 0.0
    %3225 = vmatpush1.msra.mxu0 0.0
    %3226 = vmatprep.subr.mxu0 0.0
    %3227 = vmatpush1.msra.mxu0 0.0
    %3228 = vmatprep.mubr.f32.mxu0 0.0
    %v3229 = vand.u32 %v2797, 4294901760
    %v3230 = vsub.f32 %v2797, %v3229
    %v3231 = vand.u32 %v3230, 4294901760
    %3232 = vmatmul.mubr.f32.gmra.mrb[0].mxu0 %v3231
    %v3233 = vpop.f32.mrb[0].mxu0
    %v3234 = vadd.f32 %v3144, %v3233
    %v3235 = vpop.f32.mrb[0].mxu0
    %v3236 = vadd.f32 %v3146, %v3235
    %3237 = vdwg.mxu0
    %v3238 = vand.u32 %v19, 4294901760
    %v3239 = vsub.f32 %v19, %v3238
    %v3240 = vand.u32 %v3239, 4294901760
    %3241 = vmatprep.subr.mxu0 %v3240
    %v3242 = vand.u32 %v18, 4294901760
    %v3243 = vsub.f32 %v18, %v3242
    %v3244 = vand.u32 %v3243, 4294901760
    %3245 = vmatpush1.msra.mxu0 %v3244
    %v3246 = vand.u32 %v21, 4294901760
    %v3247 = vsub.f32 %v21, %v3246
    %v3248 = vand.u32 %v3247, 4294901760
    %3249 = vmatprep.subr.mxu0 %v3248
    %v3250 = vand.u32 %v20, 4294901760
    %v3251 = vsub.f32 %v20, %v3250
    %v3252 = vand.u32 %v3251, 4294901760
    %3253 = vmatpush1.msra.mxu0 %v3252
    %v3254 = vand.u32 %v23, 4294901760
    %v3255 = vsub.f32 %v23, %v3254
    %v3256 = vand.u32 %v3255, 4294901760
    %3257 = vmatprep.subr.mxu0 %v3256
    %v3258 = vand.u32 %v22, 4294901760
    %v3259 = vsub.f32 %v22, %v3258
    %v3260 = vand.u32 %v3259, 4294901760
    %3261 = vmatpush1.msra.mxu0 %v3260
    %v3262 = vand.u32 %v25, 4294901760
    %v3263 = vsub.f32 %v25, %v3262
    %v3264 = vand.u32 %v3263, 4294901760
    %3265 = vmatprep.subr.mxu0 %v3264
    %v3266 = vand.u32 %v24, 4294901760
    %v3267 = vsub.f32 %v24, %v3266
    %v3268 = vand.u32 %v3267, 4294901760
    %3269 = vmatpush1.msra.mxu0 %v3268
    %v3270 = vand.u32 %v27, 4294901760
    %v3271 = vsub.f32 %v27, %v3270
    %v3272 = vand.u32 %v3271, 4294901760
    %3273 = vmatprep.subr.mxu0 %v3272
    %v3274 = vand.u32 %v26, 4294901760
    %v3275 = vsub.f32 %v26, %v3274
    %v3276 = vand.u32 %v3275, 4294901760
    %3277 = vmatpush1.msra.mxu0 %v3276
    %v3278 = vand.u32 %v29, 4294901760
    %v3279 = vsub.f32 %v29, %v3278
    %v3280 = vand.u32 %v3279, 4294901760
    %3281 = vmatprep.subr.mxu0 %v3280
    %v3282 = vand.u32 %v28, 4294901760
    %v3283 = vsub.f32 %v28, %v3282
    %v3284 = vand.u32 %v3283, 4294901760
    %3285 = vmatpush1.msra.mxu0 %v3284
    %v3286 = vand.u32 %v31, 4294901760
    %v3287 = vsub.f32 %v31, %v3286
    %v3288 = vand.u32 %v3287, 4294901760
    %3289 = vmatprep.subr.mxu0 %v3288
    %v3290 = vand.u32 %v30, 4294901760
    %v3291 = vsub.f32 %v30, %v3290
    %v3292 = vand.u32 %v3291, 4294901760
    %3293 = vmatpush1.msra.mxu0 %v3292
    %v3294 = vand.u32 %v33, 4294901760
    %v3295 = vsub.f32 %v33, %v3294
    %v3296 = vand.u32 %v3295, 4294901760
    %3297 = vmatprep.subr.mxu0 %v3296
    %v3298 = vand.u32 %v32, 4294901760
    %v3299 = vsub.f32 %v32, %v3298
    %v3300 = vand.u32 %v3299, 4294901760
    %3301 = vmatpush1.msra.mxu0 %v3300
    %3302 = vmatprep.subr.mxu0 0.0
    %3303 = vmatpush1.msra.mxu0 0.0
    %3304 = vmatprep.subr.mxu0 0.0
    %3305 = vmatpush1.msra.mxu0 0.0
    %3306 = vmatprep.subr.mxu0 0.0
    %3307 = vmatpush1.msra.mxu0 0.0
    %3308 = vmatprep.subr.mxu0 0.0
    %3309 = vmatpush1.msra.mxu0 0.0
    %3310 = vmatprep.subr.mxu0 0.0
    %3311 = vmatpush1.msra.mxu0 0.0
    %3312 = vmatprep.subr.mxu0 0.0
    %3313 = vmatpush1.msra.mxu0 0.0
    %3314 = vmatprep.subr.mxu0 0.0
    %3315 = vmatpush1.msra.mxu0 0.0
    %3316 = vmatprep.subr.mxu0 0.0
    %3317 = vmatpush1.msra.mxu0 0.0
    %3318 = vmatprep.subr.mxu0 0.0
    %3319 = vmatpush1.msra.mxu0 0.0
    %3320 = vmatprep.subr.mxu0 0.0
    %3321 = vmatpush1.msra.mxu0 0.0
    %3322 = vmatprep.subr.mxu0 0.0
    %3323 = vmatpush1.msra.mxu0 0.0
    %3324 = vmatprep.subr.mxu0 0.0
    %3325 = vmatpush1.msra.mxu0 0.0
    %3326 = vmatprep.subr.mxu0 0.0
    %3327 = vmatpush1.msra.mxu0 0.0
    %3328 = vmatprep.subr.mxu0 0.0
    %3329 = vmatpush1.msra.mxu0 0.0
    %3330 = vmatprep.subr.mxu0 0.0
    %3331 = vmatpush1.msra.mxu0 0.0
    %3332 = vmatprep.subr.mxu0 0.0
    %3333 = vmatpush1.msra.mxu0 0.0
    %3334 = vmatprep.subr.mxu0 0.0
    %3335 = vmatpush1.msra.mxu0 0.0
    %3336 = vmatprep.subr.mxu0 0.0
    %3337 = vmatpush1.msra.mxu0 0.0
    %3338 = vmatprep.subr.mxu0 0.0
    %3339 = vmatpush1.msra.mxu0 0.0
    %3340 = vmatprep.subr.mxu0 0.0
    %3341 = vmatpush1.msra.mxu0 0.0
    %3342 = vmatprep.subr.mxu0 0.0
    %3343 = vmatpush1.msra.mxu0 0.0
    %3344 = vmatprep.subr.mxu0 0.0
    %3345 = vmatpush1.msra.mxu0 0.0
    %3346 = vmatprep.subr.mxu0 0.0
    %3347 = vmatpush1.msra.mxu0 0.0
    %3348 = vmatprep.subr.mxu0 0.0
    %3349 = vmatpush1.msra.mxu0 0.0
    %3350 = vmatprep.mubr.f32.mxu0 0.0
    %v3351 = vand.u32 %v2797, 4294901760
    %3352 = vmatmul.mubr.f32.gmra.mrb[0].mxu0 %v3351
    %v3353 = vpop.f32.mrb[0].mxu0
    %v3354 = vadd.f32 %v3234, %v3353
    %v3355 = vpop.f32.mrb[0].mxu0
    %v3356 = vadd.f32 %v3236, %v3355
    %3357 = vdwg.mxu0
    %v3358 = vand.u32 %v19, 4294901760
    %3359 = vmatprep.subr.mxu0 %v3358
    %v3360 = vand.u32 %v18, 4294901760
    %3361 = vmatpush1.msra.mxu0 %v3360
    %v3362 = vand.u32 %v21, 4294901760
    %3363 = vmatprep.subr.mxu0 %v3362
    %v3364 = vand.u32 %v20, 4294901760
    %3365 = vmatpush1.msra.mxu0 %v3364
    %v3366 = vand.u32 %v23, 4294901760
    %3367 = vmatprep.subr.mxu0 %v3366
    %v3368 = vand.u32 %v22, 4294901760
    %3369 = vmatpush1.msra.mxu0 %v3368
    %v3370 = vand.u32 %v25, 4294901760
    %3371 = vmatprep.subr.mxu0 %v3370
    %v3372 = vand.u32 %v24, 4294901760
    %3373 = vmatpush1.msra.mxu0 %v3372
    %v3374 = vand.u32 %v27, 4294901760
    %3375 = vmatprep.subr.mxu0 %v3374
    %v3376 = vand.u32 %v26, 4294901760
    %3377 = vmatpush1.msra.mxu0 %v3376
    %v3378 = vand.u32 %v29, 4294901760
    %3379 = vmatprep.subr.mxu0 %v3378
    %v3380 = vand.u32 %v28, 4294901760
    %3381 = vmatpush1.msra.mxu0 %v3380
    %v3382 = vand.u32 %v31, 4294901760
    %3383 = vmatprep.subr.mxu0 %v3382
    %v3384 = vand.u32 %v30, 4294901760
    %3385 = vmatpush1.msra.mxu0 %v3384
    %v3386 = vand.u32 %v33, 4294901760
    %3387 = vmatprep.subr.mxu0 %v3386
    %v3388 = vand.u32 %v32, 4294901760
    %3389 = vmatpush1.msra.mxu0 %v3388
    %3390 = vmatprep.subr.mxu0 0.0
    %3391 = vmatpush1.msra.mxu0 0.0
    %3392 = vmatprep.subr.mxu0 0.0
    %3393 = vmatpush1.msra.mxu0 0.0
    %3394 = vmatprep.subr.mxu0 0.0
    %3395 = vmatpush1.msra.mxu0 0.0
    %3396 = vmatprep.subr.mxu0 0.0
    %3397 = vmatpush1.msra.mxu0 0.0
    %3398 = vmatprep.subr.mxu0 0.0
    %3399 = vmatpush1.msra.mxu0 0.0
    %3400 = vmatprep.subr.mxu0 0.0
    %3401 = vmatpush1.msra.mxu0 0.0
    %3402 = vmatprep.subr.mxu0 0.0
    %3403 = vmatpush1.msra.mxu0 0.0
    %3404 = vmatprep.subr.mxu0 0.0
    %3405 = vmatpush1.msra.mxu0 0.0
    %3406 = vmatprep.subr.mxu0 0.0
    %3407 = vmatpush1.msra.mxu0 0.0
    %3408 = vmatprep.subr.mxu0 0.0
    %3409 = vmatpush1.msra.mxu0 0.0
    %3410 = vmatprep.subr.mxu0 0.0
    %3411 = vmatpush1.msra.mxu0 0.0
    %3412 = vmatprep.subr.mxu0 0.0
    %3413 = vmatpush1.msra.mxu0 0.0
    %3414 = vmatprep.subr.mxu0 0.0
    %3415 = vmatpush1.msra.mxu0 0.0
    %3416 = vmatprep.subr.mxu0 0.0
    %3417 = vmatpush1.msra.mxu0 0.0
    %3418 = vmatprep.subr.mxu0 0.0
    %3419 = vmatpush1.msra.mxu0 0.0
    %3420 = vmatprep.subr.mxu0 0.0
    %3421 = vmatpush1.msra.mxu0 0.0
    %3422 = vmatprep.subr.mxu0 0.0
    %3423 = vmatpush1.msra.mxu0 0.0
    %3424 = vmatprep.subr.mxu0 0.0
    %3425 = vmatpush1.msra.mxu0 0.0
    %3426 = vmatprep.subr.mxu0 0.0
    %3427 = vmatpush1.msra.mxu0 0.0
    %3428 = vmatprep.subr.mxu0 0.0
    %3429 = vmatpush1.msra.mxu0 0.0
    %3430 = vmatprep.subr.mxu0 0.0
    %3431 = vmatpush1.msra.mxu0 0.0
    %3432 = vmatprep.subr.mxu0 0.0
    %3433 = vmatpush1.msra.mxu0 0.0
    %3434 = vmatprep.subr.mxu0 0.0
    %3435 = vmatpush1.msra.mxu0 0.0
    %3436 = vmatprep.subr.mxu0 0.0
    %3437 = vmatpush1.msra.mxu0 0.0
    %3438 = vmatprep.mubr.f32.mxu0 0.0
    %v3439 = vand.u32 %v2797, 4294901760
    %3440 = vmatmul.mubr.f32.gmra.mrb[0].mxu0 %v3439
    %v3441 = vpop.f32.mrb[0].mxu0
    %v3442 = vadd.f32 %v3354, %v3441
    %v3443 = vpop.f32.mrb[0].mxu0
    %v3444 = vadd.f32 %v3356, %v3443
    %3445 = vdwg.mxu0
    %v3448 = vcombine.low %v3442, %v3444
    %v3450 = vadd.f32 %v2796, %v3448
    %v3451 = vxor.u32 %v3450, 2147483648
    %v3452 = vmul.f32 %v3451, 1.442695
    %v3453 = vpow.pop %v3452
    %v3454 = vadd.f32 %v3453, 1.0
    %v3455 = vrcp.pop %v3454
    %v3456 = vmul.f32 1.0, %v3455
    %v3457 = vmul.f32 %v3456, %v3444
    %v3459 = vrot.slane %v2796, 4
    %v3461 = vadd.f32 %v3459, %v3457
    %v3462 = vtanh.pop %v3461
    %v3463 = vsub.f32 1.0, %v3456
    %3465 = vrot.lane.b32.xlu0 %v3462, 64
    %v3466 = vpop.permute.xlu0 %3465
    %v3468 = vmul.f32 %v3463, %v3466
    %v3469 = vmul.f32 %v3456, %v2783
    %v3470 = vadd.f32 %v3468, %v3469
    %3472 = vrot.lane.b32.xlu0 %v3470, 64
    %v3473 = vpop.permute.xlu0 %3472
    %s3475 = scalar_lea.vmem [#allocation3], 16
    %3476 = vst.msk [vmem:[%s3475] sm:$0xf] %vm727, %v3473
    %3477 = vrot.lane.b32.xlu0 %v3470, 32
    %v3478 = vpop.permute.xlu0 %3477
    %s3480 = scalar_lea.vmem [#allocation2], 12
    %3481 = vst.msk [vmem:[%s3480] sm:$0xf] %vm727, %v3478
    %s3482 = scalar_lea.vmem %s0, 40
    %v3483 = vld [vmem:[%s3482] sm:$0xff]
    %v3484 = vsel %vm47, %v3473, 0
    %v3486 = vand.u32 %v19, 4294901760
    %3487 = vmatprep.subr.mxu0 %v3486
    %v3488 = vand.u32 %v18, 4294901760
    %3489 = vmatpush1.msra.mxu0 %v3488
    %v3490 = vand.u32 %v21, 4294901760
    %3491 = vmatprep.subr.mxu0 %v3490
    %v3492 = vand.u32 %v20, 4294901760
    %3493 = vmatpush1.msra.mxu0 %v3492
    %v3494 = vand.u32 %v23, 4294901760
    %3495 = vmatprep.subr.mxu0 %v3494
    %v3496 = vand.u32 %v22, 4294901760
    %3497 = vmatpush1.msra.mxu0 %v3496
    %v3498 = vand.u32 %v25, 4294901760
    %3499 = vmatprep.subr.mxu0 %v3498
    %v3500 = vand.u32 %v24, 4294901760
    %3501 = vmatpush1.msra.mxu0 %v3500
    %v3502 = vand.u32 %v27, 4294901760
    %3503 = vmatprep.subr.mxu0 %v3502
    %v3504 = vand.u32 %v26, 4294901760
    %3505 = vmatpush1.msra.mxu0 %v3504
    %v3506 = vand.u32 %v29, 4294901760
    %3507 = vmatprep.subr.mxu0 %v3506
    %v3508 = vand.u32 %v28, 4294901760
    %3509 = vmatpush1.msra.mxu0 %v3508
    %v3510 = vand.u32 %v31, 4294901760
    %3511 = vmatprep.subr.mxu0 %v3510
    %v3512 = vand.u32 %v30, 4294901760
    %3513 = vmatpush1.msra.mxu0 %v3512
    %v3514 = vand.u32 %v33, 4294901760
    %3515 = vmatprep.subr.mxu0 %v3514
    %v3516 = vand.u32 %v32, 4294901760
    %3517 = vmatpush1.msra.mxu0 %v3516
    %3518 = vmatprep.subr.mxu0 0.0
    %3519 = vmatpush1.msra.mxu0 0.0
    %3520 = vmatprep.subr.mxu0 0.0
    %3521 = vmatpush1.msra.mxu0 0.0
    %3522 = vmatprep.subr.mxu0 0.0
    %3523 = vmatpush1.msra.mxu0 0.0
    %3524 = vmatprep.subr.mxu0 0.0
    %3525 = vmatpush1.msra.mxu0 0.0
    %3526 = vmatprep.subr.mxu0 0.0
    %3527 = vmatpush1.msra.mxu0 0.0
    %3528 = vmatprep.subr.mxu0 0.0
    %3529 = vmatpush1.msra.mxu0 0.0
    %3530 = vmatprep.subr.mxu0 0.0
    %3531 = vmatpush1.msra.mxu0 0.0
    %3532 = vmatprep.subr.mxu0 0.0
    %3533 = vmatpush1.msra.mxu0 0.0
    %3534 = vmatprep.subr.mxu0 0.0
    %3535 = vmatpush1.msra.mxu0 0.0
    %3536 = vmatprep.subr.mxu0 0.0
    %3537 = vmatpush1.msra.mxu0 0.0
    %3538 = vmatprep.subr.mxu0 0.0
    %3539 = vmatpush1.msra.mxu0 0.0
    %3540 = vmatprep.subr.mxu0 0.0
    %3541 = vmatpush1.msra.mxu0 0.0
    %3542 = vmatprep.subr.mxu0 0.0
    %3543 = vmatpush1.msra.mxu0 0.0
    %3544 = vmatprep.subr.mxu0 0.0
    %3545 = vmatpush1.msra.mxu0 0.0
    %3546 = vmatprep.subr.mxu0 0.0
    %3547 = vmatpush1.msra.mxu0 0.0
    %3548 = vmatprep.subr.mxu0 0.0
    %3549 = vmatpush1.msra.mxu0 0.0
    %3550 = vmatprep.subr.mxu0 0.0
    %3551 = vmatpush1.msra.mxu0 0.0
    %3552 = vmatprep.subr.mxu0 0.0
    %3553 = vmatpush1.msra.mxu0 0.0
    %3554 = vmatprep.subr.mxu0 0.0
    %3555 = vmatpush1.msra.mxu0 0.0
    %3556 = vmatprep.subr.mxu0 0.0
    %3557 = vmatpush1.msra.mxu0 0.0
    %3558 = vmatprep.subr.mxu0 0.0
    %3559 = vmatpush1.msra.mxu0 0.0
    %3560 = vmatprep.subr.mxu0 0.0
    %3561 = vmatpush1.msra.mxu0 0.0
    %3562 = vmatprep.subr.mxu0 0.0
    %3563 = vmatpush1.msra.mxu0 0.0
    %3564 = vmatprep.subr.mxu0 0.0
    %3565 = vmatpush1.msra.mxu0 0.0
    %3566 = vmatprep.mubr.f32.mxu0 0.0
    %v3567 = vand.u32 %v3484, 4294901760
    %v3568 = vsub.f32 %v3484, %v3567
    %v3569 = vand.u32 %v3568, 4294901760
    %v3570 = vsub.f32 %v3568, %v3569
    %v3571 = vand.u32 %v3570, 4294901760
    %3572 = vmatmul.mubr.f32.gmra.mrb[0].mxu0 %v3571
    %v3573 = vpop.f32.mrb[0].mxu0
    %v3574 = vadd.f32 %v39, %v3573
    %v3575 = vpop.f32.mrb[0].mxu0
    %v3576 = vadd.f32 %v43, %v3575
    %3577 = vdwg.mxu0
    %v3578 = vand.u32 %v19, 4294901760
    %v3579 = vsub.f32 %v19, %v3578
    %v3580 = vand.u32 %v3579, 4294901760
    %v3581 = vsub.f32 %v3579, %v3580
    %v3582 = vand.u32 %v3581, 4294901760
    %3583 = vmatprep.subr.mxu0 %v3582
    %v3584 = vand.u32 %v18, 4294901760
    %v3585 = vsub.f32 %v18, %v3584
    %v3586 = vand.u32 %v3585, 4294901760
    %v3587 = vsub.f32 %v3585, %v3586
    %v3588 = vand.u32 %v3587, 4294901760
    %3589 = vmatpush1.msra.mxu0 %v3588
    %v3590 = vand.u32 %v21, 4294901760
    %v3591 = vsub.f32 %v21, %v3590
    %v3592 = vand.u32 %v3591, 4294901760
    %v3593 = vsub.f32 %v3591, %v3592
    %v3594 = vand.u32 %v3593, 4294901760
    %3595 = vmatprep.subr.mxu0 %v3594
    %v3596 = vand.u32 %v20, 4294901760
    %v3597 = vsub.f32 %v20, %v3596
    %v3598 = vand.u32 %v3597, 4294901760
    %v3599 = vsub.f32 %v3597, %v3598
    %v3600 = vand.u32 %v3599, 4294901760
    %3601 = vmatpush1.msra.mxu0 %v3600
    %v3602 = vand.u32 %v23, 4294901760
    %v3603 = vsub.f32 %v23, %v3602
    %v3604 = vand.u32 %v3603, 4294901760
    %v3605 = vsub.f32 %v3603, %v3604
    %v3606 = vand.u32 %v3605, 4294901760
    %3607 = vmatprep.subr.mxu0 %v3606
    %v3608 = vand.u32 %v22, 4294901760
    %v3609 = vsub.f32 %v22, %v3608
    %v3610 = vand.u32 %v3609, 4294901760
    %v3611 = vsub.f32 %v3609, %v3610
    %v3612 = vand.u32 %v3611, 4294901760
    %3613 = vmatpush1.msra.mxu0 %v3612
    %v3614 = vand.u32 %v25, 4294901760
    %v3615 = vsub.f32 %v25, %v3614
    %v3616 = vand.u32 %v3615, 4294901760
    %v3617 = vsub.f32 %v3615, %v3616
    %v3618 = vand.u32 %v3617, 4294901760
    %3619 = vmatprep.subr.mxu0 %v3618
    %v3620 = vand.u32 %v24, 4294901760
    %v3621 = vsub.f32 %v24, %v3620
    %v3622 = vand.u32 %v3621, 4294901760
    %v3623 = vsub.f32 %v3621, %v3622
    %v3624 = vand.u32 %v3623, 4294901760
    %3625 = vmatpush1.msra.mxu0 %v3624
    %v3626 = vand.u32 %v27, 4294901760
    %v3627 = vsub.f32 %v27, %v3626
    %v3628 = vand.u32 %v3627, 4294901760
    %v3629 = vsub.f32 %v3627, %v3628
    %v3630 = vand.u32 %v3629, 4294901760
    %3631 = vmatprep.subr.mxu0 %v3630
    %v3632 = vand.u32 %v26, 4294901760
    %v3633 = vsub.f32 %v26, %v3632
    %v3634 = vand.u32 %v3633, 4294901760
    %v3635 = vsub.f32 %v3633, %v3634
    %v3636 = vand.u32 %v3635, 4294901760
    %3637 = vmatpush1.msra.mxu0 %v3636
    %v3638 = vand.u32 %v29, 4294901760
    %v3639 = vsub.f32 %v29, %v3638
    %v3640 = vand.u32 %v3639, 4294901760
    %v3641 = vsub.f32 %v3639, %v3640
    %v3642 = vand.u32 %v3641, 4294901760
    %3643 = vmatprep.subr.mxu0 %v3642
    %v3644 = vand.u32 %v28, 4294901760
    %v3645 = vsub.f32 %v28, %v3644
    %v3646 = vand.u32 %v3645, 4294901760
    %v3647 = vsub.f32 %v3645, %v3646
    %v3648 = vand.u32 %v3647, 4294901760
    %3649 = vmatpush1.msra.mxu0 %v3648
    %v3650 = vand.u32 %v31, 4294901760
    %v3651 = vsub.f32 %v31, %v3650
    %v3652 = vand.u32 %v3651, 4294901760
    %v3653 = vsub.f32 %v3651, %v3652
    %v3654 = vand.u32 %v3653, 4294901760
    %3655 = vmatprep.subr.mxu0 %v3654
    %v3656 = vand.u32 %v30, 4294901760
    %v3657 = vsub.f32 %v30, %v3656
    %v3658 = vand.u32 %v3657, 4294901760
    %v3659 = vsub.f32 %v3657, %v3658
    %v3660 = vand.u32 %v3659, 4294901760
    %3661 = vmatpush1.msra.mxu0 %v3660
    %v3662 = vand.u32 %v33, 4294901760
    %v3663 = vsub.f32 %v33, %v3662
    %v3664 = vand.u32 %v3663, 4294901760
    %v3665 = vsub.f32 %v3663, %v3664
    %v3666 = vand.u32 %v3665, 4294901760
    %3667 = vmatprep.subr.mxu0 %v3666
    %v3668 = vand.u32 %v32, 4294901760
    %v3669 = vsub.f32 %v32, %v3668
    %v3670 = vand.u32 %v3669, 4294901760
    %v3671 = vsub.f32 %v3669, %v3670
    %v3672 = vand.u32 %v3671, 4294901760
    %3673 = vmatpush1.msra.mxu0 %v3672
    %3674 = vmatprep.subr.mxu0 0.0
    %3675 = vmatpush1.msra.mxu0 0.0
    %3676 = vmatprep.subr.mxu0 0.0
    %3677 = vmatpush1.msra.mxu0 0.0
    %3678 = vmatprep.subr.mxu0 0.0
    %3679 = vmatpush1.msra.mxu0 0.0
    %3680 = vmatprep.subr.mxu0 0.0
    %3681 = vmatpush1.msra.mxu0 0.0
    %3682 = vmatprep.subr.mxu0 0.0
    %3683 = vmatpush1.msra.mxu0 0.0
    %3684 = vmatprep.subr.mxu0 0.0
    %3685 = vmatpush1.msra.mxu0 0.0
    %3686 = vmatprep.subr.mxu0 0.0
    %3687 = vmatpush1.msra.mxu0 0.0
    %3688 = vmatprep.subr.mxu0 0.0
    %3689 = vmatpush1.msra.mxu0 0.0
    %3690 = vmatprep.subr.mxu0 0.0
    %3691 = vmatpush1.msra.mxu0 0.0
    %3692 = vmatprep.subr.mxu0 0.0
    %3693 = vmatpush1.msra.mxu0 0.0
    %3694 = vmatprep.subr.mxu0 0.0
    %3695 = vmatpush1.msra.mxu0 0.0
    %3696 = vmatprep.subr.mxu0 0.0
    %3697 = vmatpush1.msra.mxu0 0.0
    %3698 = vmatprep.subr.mxu0 0.0
    %3699 = vmatpush1.msra.mxu0 0.0
    %3700 = vmatprep.subr.mxu0 0.0
    %3701 = vmatpush1.msra.mxu0 0.0
    %3702 = vmatprep.subr.mxu0 0.0
    %3703 = vmatpush1.msra.mxu0 0.0
    %3704 = vmatprep.subr.mxu0 0.0
    %3705 = vmatpush1.msra.mxu0 0.0
    %3706 = vmatprep.subr.mxu0 0.0
    %3707 = vmatpush1.msra.mxu0 0.0
    %3708 = vmatprep.subr.mxu0 0.0
    %3709 = vmatpush1.msra.mxu0 0.0
    %3710 = vmatprep.subr.mxu0 0.0
    %3711 = vmatpush1.msra.mxu0 0.0
    %3712 = vmatprep.subr.mxu0 0.0
    %3713 = vmatpush1.msra.mxu0 0.0
    %3714 = vmatprep.subr.mxu0 0.0
    %3715 = vmatpush1.msra.mxu0 0.0
    %3716 = vmatprep.subr.mxu0 0.0
    %3717 = vmatpush1.msra.mxu0 0.0
    %3718 = vmatprep.subr.mxu0 0.0
    %3719 = vmatpush1.msra.mxu0 0.0
    %3720 = vmatprep.subr.mxu0 0.0
    %3721 = vmatpush1.msra.mxu0 0.0
    %3722 = vmatprep.mubr.f32.mxu0 0.0
    %v3723 = vand.u32 %v3484, 4294901760
    %3724 = vmatmul.mubr.f32.gmra.mrb[0].mxu0 %v3723
    %v3725 = vpop.f32.mrb[0].mxu0
    %v3726 = vadd.f32 %v3574, %v3725
    %v3727 = vpop.f32.mrb[0].mxu0
    %v3728 = vadd.f32 %v3576, %v3727
    %3729 = vdwg.mxu0
    %v3730 = vand.u32 %v19, 4294901760
    %v3731 = vsub.f32 %v19, %v3730
    %3732 = vmatprep.subr.mxu0 %v3731
    %v3733 = vand.u32 %v18, 4294901760
    %v3734 = vsub.f32 %v18, %v3733
    %3735 = vmatpush1.msra.mxu0 %v3734
    %v3736 = vand.u32 %v21, 4294901760
    %v3737 = vsub.f32 %v21, %v3736
    %3738 = vmatprep.subr.mxu0 %v3737
    %v3739 = vand.u32 %v20, 4294901760
    %v3740 = vsub.f32 %v20, %v3739
    %3741 = vmatpush1.msra.mxu0 %v3740
    %v3742 = vand.u32 %v23, 4294901760
    %v3743 = vsub.f32 %v23, %v3742
    %3744 = vmatprep.subr.mxu0 %v3743
    %v3745 = vand.u32 %v22, 4294901760
    %v3746 = vsub.f32 %v22, %v3745
    %3747 = vmatpush1.msra.mxu0 %v3746
    %v3748 = vand.u32 %v25, 4294901760
    %v3749 = vsub.f32 %v25, %v3748
    %3750 = vmatprep.subr.mxu0 %v3749
    %v3751 = vand.u32 %v24, 4294901760
    %v3752 = vsub.f32 %v24, %v3751
    %3753 = vmatpush1.msra.mxu0 %v3752
    %v3754 = vand.u32 %v27, 4294901760
    %v3755 = vsub.f32 %v27, %v3754
    %3756 = vmatprep.subr.mxu0 %v3755
    %v3757 = vand.u32 %v26, 4294901760
    %v3758 = vsub.f32 %v26, %v3757
    %3759 = vmatpush1.msra.mxu0 %v3758
    %v3760 = vand.u32 %v29, 4294901760
    %v3761 = vsub.f32 %v29, %v3760
    %3762 = vmatprep.subr.mxu0 %v3761
    %v3763 = vand.u32 %v28, 4294901760
    %v3764 = vsub.f32 %v28, %v3763
    %3765 = vmatpush1.msra.mxu0 %v3764
    %v3766 = vand.u32 %v31, 4294901760
    %v3767 = vsub.f32 %v31, %v3766
    %3768 = vmatprep.subr.mxu0 %v3767
    %v3769 = vand.u32 %v30, 4294901760
    %v3770 = vsub.f32 %v30, %v3769
    %3771 = vmatpush1.msra.mxu0 %v3770
    %v3772 = vand.u32 %v33, 4294901760
    %v3773 = vsub.f32 %v33, %v3772
    %3774 = vmatprep.subr.mxu0 %v3773
    %v3775 = vand.u32 %v32, 4294901760
    %v3776 = vsub.f32 %v32, %v3775
    %3777 = vmatpush1.msra.mxu0 %v3776
    %3778 = vmatprep.subr.mxu0 0.0
    %3779 = vmatpush1.msra.mxu0 0.0
    %3780 = vmatprep.subr.mxu0 0.0
    %3781 = vmatpush1.msra.mxu0 0.0
    %3782 = vmatprep.subr.mxu0 0.0
    %3783 = vmatpush1.msra.mxu0 0.0
    %3784 = vmatprep.subr.mxu0 0.0
    %3785 = vmatpush1.msra.mxu0 0.0
    %3786 = vmatprep.subr.mxu0 0.0
    %3787 = vmatpush1.msra.mxu0 0.0
    %3788 = vmatprep.subr.mxu0 0.0
    %3789 = vmatpush1.msra.mxu0 0.0
    %3790 = vmatprep.subr.mxu0 0.0
    %3791 = vmatpush1.msra.mxu0 0.0
    %3792 = vmatprep.subr.mxu0 0.0
    %3793 = vmatpush1.msra.mxu0 0.0
    %3794 = vmatprep.subr.mxu0 0.0
    %3795 = vmatpush1.msra.mxu0 0.0
    %3796 = vmatprep.subr.mxu0 0.0
    %3797 = vmatpush1.msra.mxu0 0.0
    %3798 = vmatprep.subr.mxu0 0.0
    %3799 = vmatpush1.msra.mxu0 0.0
    %3800 = vmatprep.subr.mxu0 0.0
    %3801 = vmatpush1.msra.mxu0 0.0
    %3802 = vmatprep.subr.mxu0 0.0
    %3803 = vmatpush1.msra.mxu0 0.0
    %3804 = vmatprep.subr.mxu0 0.0
    %3805 = vmatpush1.msra.mxu0 0.0
    %3806 = vmatprep.subr.mxu0 0.0
    %3807 = vmatpush1.msra.mxu0 0.0
    %3808 = vmatprep.subr.mxu0 0.0
    %3809 = vmatpush1.msra.mxu0 0.0
    %3810 = vmatprep.subr.mxu0 0.0
    %3811 = vmatpush1.msra.mxu0 0.0
    %3812 = vmatprep.subr.mxu0 0.0
    %3813 = vmatpush1.msra.mxu0 0.0
    %3814 = vmatprep.subr.mxu0 0.0
    %3815 = vmatpush1.msra.mxu0 0.0
    %3816 = vmatprep.subr.mxu0 0.0
    %3817 = vmatpush1.msra.mxu0 0.0
    %3818 = vmatprep.subr.mxu0 0.0
    %3819 = vmatpush1.msra.mxu0 0.0
    %3820 = vmatprep.subr.mxu0 0.0
    %3821 = vmatpush1.msra.mxu0 0.0
    %3822 = vmatprep.subr.mxu0 0.0
    %3823 = vmatpush1.msra.mxu0 0.0
    %3824 = vmatprep.subr.mxu0 0.0
    %3825 = vmatpush1.msra.mxu0 0.0
    %3826 = vmatprep.mubr.f32.mxu0 0.0
    %v3827 = vand.u32 %v3484, 4294901760
    %v3828 = vsub.f32 %v3484, %v3827
    %3829 = vmatmul.mubr.f32.gmra.mrb[0].mxu0 %v3828
    %v3830 = vpop.f32.mrb[0].mxu0
    %v3831 = vadd.f32 %v3726, %v3830
    %v3832 = vpop.f32.mrb[0].mxu0
    %v3833 = vadd.f32 %v3728, %v3832
    %3834 = vdwg.mxu0
    %v3835 = vand.u32 %v19, 4294901760
    %3836 = vmatprep.subr.mxu0 %v3835
    %v3837 = vand.u32 %v18, 4294901760
    %3838 = vmatpush1.msra.mxu0 %v3837
    %v3839 = vand.u32 %v21, 4294901760
    %3840 = vmatprep.subr.mxu0 %v3839
    %v3841 = vand.u32 %v20, 4294901760
    %3842 = vmatpush1.msra.mxu0 %v3841
    %v3843 = vand.u32 %v23, 4294901760
    %3844 = vmatprep.subr.mxu0 %v3843
    %v3845 = vand.u32 %v22, 4294901760
    %3846 = vmatpush1.msra.mxu0 %v3845
    %v3847 = vand.u32 %v25, 4294901760
    %3848 = vmatprep.subr.mxu0 %v3847
    %v3849 = vand.u32 %v24, 4294901760
    %3850 = vmatpush1.msra.mxu0 %v3849
    %v3851 = vand.u32 %v27, 4294901760
    %3852 = vmatprep.subr.mxu0 %v3851
    %v3853 = vand.u32 %v26, 4294901760
    %3854 = vmatpush1.msra.mxu0 %v3853
    %v3855 = vand.u32 %v29, 4294901760
    %3856 = vmatprep.subr.mxu0 %v3855
    %v3857 = vand.u32 %v28, 4294901760
    %3858 = vmatpush1.msra.mxu0 %v3857
    %v3859 = vand.u32 %v31, 4294901760
    %3860 = vmatprep.subr.mxu0 %v3859
    %v3861 = vand.u32 %v30, 4294901760
    %3862 = vmatpush1.msra.mxu0 %v3861
    %v3863 = vand.u32 %v33, 4294901760
    %3864 = vmatprep.subr.mxu0 %v3863
    %v3865 = vand.u32 %v32, 4294901760
    %3866 = vmatpush1.msra.mxu0 %v3865
    %3867 = vmatprep.subr.mxu0 0.0
    %3868 = vmatpush1.msra.mxu0 0.0
    %3869 = vmatprep.subr.mxu0 0.0
    %3870 = vmatpush1.msra.mxu0 0.0
    %3871 = vmatprep.subr.mxu0 0.0
    %3872 = vmatpush1.msra.mxu0 0.0
    %3873 = vmatprep.subr.mxu0 0.0
    %3874 = vmatpush1.msra.mxu0 0.0
    %3875 = vmatprep.subr.mxu0 0.0
    %3876 = vmatpush1.msra.mxu0 0.0
    %3877 = vmatprep.subr.mxu0 0.0
    %3878 = vmatpush1.msra.mxu0 0.0
    %3879 = vmatprep.subr.mxu0 0.0
    %3880 = vmatpush1.msra.mxu0 0.0
    %3881 = vmatprep.subr.mxu0 0.0
    %3882 = vmatpush1.msra.mxu0 0.0
    %3883 = vmatprep.subr.mxu0 0.0
    %3884 = vmatpush1.msra.mxu0 0.0
    %3885 = vmatprep.subr.mxu0 0.0
    %3886 = vmatpush1.msra.mxu0 0.0
    %3887 = vmatprep.subr.mxu0 0.0
    %3888 = vmatpush1.msra.mxu0 0.0
    %3889 = vmatprep.subr.mxu0 0.0
    %3890 = vmatpush1.msra.mxu0 0.0
    %3891 = vmatprep.subr.mxu0 0.0
    %3892 = vmatpush1.msra.mxu0 0.0
    %3893 = vmatprep.subr.mxu0 0.0
    %3894 = vmatpush1.msra.mxu0 0.0
    %3895 = vmatprep.subr.mxu0 0.0
    %3896 = vmatpush1.msra.mxu0 0.0
    %3897 = vmatprep.subr.mxu0 0.0
    %3898 = vmatpush1.msra.mxu0 0.0
    %3899 = vmatprep.subr.mxu0 0.0
    %3900 = vmatpush1.msra.mxu0 0.0
    %3901 = vmatprep.subr.mxu0 0.0
    %3902 = vmatpush1.msra.mxu0 0.0
    %3903 = vmatprep.subr.mxu0 0.0
    %3904 = vmatpush1.msra.mxu0 0.0
    %3905 = vmatprep.subr.mxu0 0.0
    %3906 = vmatpush1.msra.mxu0 0.0
    %3907 = vmatprep.subr.mxu0 0.0
    %3908 = vmatpush1.msra.mxu0 0.0
    %3909 = vmatprep.subr.mxu0 0.0
    %3910 = vmatpush1.msra.mxu0 0.0
    %3911 = vmatprep.subr.mxu0 0.0
    %3912 = vmatpush1.msra.mxu0 0.0
    %3913 = vmatprep.subr.mxu0 0.0
    %3914 = vmatpush1.msra.mxu0 0.0
    %3915 = vmatprep.mubr.f32.mxu0 0.0
    %v3916 = vand.u32 %v3484, 4294901760
    %v3917 = vsub.f32 %v3484, %v3916
    %v3918 = vand.u32 %v3917, 4294901760
    %3919 = vmatmul.mubr.f32.gmra.mrb[0].mxu0 %v3918
    %v3920 = vpop.f32.mrb[0].mxu0
    %v3921 = vadd.f32 %v3831, %v3920
    %v3922 = vpop.f32.mrb[0].mxu0
    %v3923 = vadd.f32 %v3833, %v3922
    %3924 = vdwg.mxu0
    %v3925 = vand.u32 %v19, 4294901760
    %v3926 = vsub.f32 %v19, %v3925
    %v3927 = vand.u32 %v3926, 4294901760
    %3928 = vmatprep.subr.mxu0 %v3927
    %v3929 = vand.u32 %v18, 4294901760
    %v3930 = vsub.f32 %v18, %v3929
    %v3931 = vand.u32 %v3930, 4294901760
    %3932 = vmatpush1.msra.mxu0 %v3931
    %v3933 = vand.u32 %v21, 4294901760
    %v3934 = vsub.f32 %v21, %v3933
    %v3935 = vand.u32 %v3934, 4294901760
    %3936 = vmatprep.subr.mxu0 %v3935
    %v3937 = vand.u32 %v20, 4294901760
    %v3938 = vsub.f32 %v20, %v3937
    %v3939 = vand.u32 %v3938, 4294901760
    %3940 = vmatpush1.msra.mxu0 %v3939
    %v3941 = vand.u32 %v23, 4294901760
    %v3942 = vsub.f32 %v23, %v3941
    %v3943 = vand.u32 %v3942, 4294901760
    %3944 = vmatprep.subr.mxu0 %v3943
    %v3945 = vand.u32 %v22, 4294901760
    %v3946 = vsub.f32 %v22, %v3945
    %v3947 = vand.u32 %v3946, 4294901760
    %3948 = vmatpush1.msra.mxu0 %v3947
    %v3949 = vand.u32 %v25, 4294901760
    %v3950 = vsub.f32 %v25, %v3949
    %v3951 = vand.u32 %v3950, 4294901760
    %3952 = vmatprep.subr.mxu0 %v3951
    %v3953 = vand.u32 %v24, 4294901760
    %v3954 = vsub.f32 %v24, %v3953
    %v3955 = vand.u32 %v3954, 4294901760
    %3956 = vmatpush1.msra.mxu0 %v3955
    %v3957 = vand.u32 %v27, 4294901760
    %v3958 = vsub.f32 %v27, %v3957
    %v3959 = vand.u32 %v3958, 4294901760
    %3960 = vmatprep.subr.mxu0 %v3959
    %v3961 = vand.u32 %v26, 4294901760
    %v3962 = vsub.f32 %v26, %v3961
    %v3963 = vand.u32 %v3962, 4294901760
    %3964 = vmatpush1.msra.mxu0 %v3963
    %v3965 = vand.u32 %v29, 4294901760
    %v3966 = vsub.f32 %v29, %v3965
    %v3967 = vand.u32 %v3966, 4294901760
    %3968 = vmatprep.subr.mxu0 %v3967
    %v3969 = vand.u32 %v28, 4294901760
    %v3970 = vsub.f32 %v28, %v3969
    %v3971 = vand.u32 %v3970, 4294901760
    %3972 = vmatpush1.msra.mxu0 %v3971
    %v3973 = vand.u32 %v31, 4294901760
    %v3974 = vsub.f32 %v31, %v3973
    %v3975 = vand.u32 %v3974, 4294901760
    %3976 = vmatprep.subr.mxu0 %v3975
    %v3977 = vand.u32 %v30, 4294901760
    %v3978 = vsub.f32 %v30, %v3977
    %v3979 = vand.u32 %v3978, 4294901760
    %3980 = vmatpush1.msra.mxu0 %v3979
    %v3981 = vand.u32 %v33, 4294901760
    %v3982 = vsub.f32 %v33, %v3981
    %v3983 = vand.u32 %v3982, 4294901760
    %3984 = vmatprep.subr.mxu0 %v3983
    %v3985 = vand.u32 %v32, 4294901760
    %v3986 = vsub.f32 %v32, %v3985
    %v3987 = vand.u32 %v3986, 4294901760
    %3988 = vmatpush1.msra.mxu0 %v3987
    %3989 = vmatprep.subr.mxu0 0.0
    %3990 = vmatpush1.msra.mxu0 0.0
    %3991 = vmatprep.subr.mxu0 0.0
    %3992 = vmatpush1.msra.mxu0 0.0
    %3993 = vmatprep.subr.mxu0 0.0
    %3994 = vmatpush1.msra.mxu0 0.0
    %3995 = vmatprep.subr.mxu0 0.0
    %3996 = vmatpush1.msra.mxu0 0.0
    %3997 = vmatprep.subr.mxu0 0.0
    %3998 = vmatpush1.msra.mxu0 0.0
    %3999 = vmatprep.subr.mxu0 0.0
    %4000 = vmatpush1.msra.mxu0 0.0
    %4001 = vmatprep.subr.mxu0 0.0
    %4002 = vmatpush1.msra.mxu0 0.0
    %4003 = vmatprep.subr.mxu0 0.0
    %4004 = vmatpush1.msra.mxu0 0.0
    %4005 = vmatprep.subr.mxu0 0.0
    %4006 = vmatpush1.msra.mxu0 0.0
    %4007 = vmatprep.subr.mxu0 0.0
    %4008 = vmatpush1.msra.mxu0 0.0
    %4009 = vmatprep.subr.mxu0 0.0
    %4010 = vmatpush1.msra.mxu0 0.0
    %4011 = vmatprep.subr.mxu0 0.0
    %4012 = vmatpush1.msra.mxu0 0.0
    %4013 = vmatprep.subr.mxu0 0.0
    %4014 = vmatpush1.msra.mxu0 0.0
    %4015 = vmatprep.subr.mxu0 0.0
    %4016 = vmatpush1.msra.mxu0 0.0
    %4017 = vmatprep.subr.mxu0 0.0
    %4018 = vmatpush1.msra.mxu0 0.0
    %4019 = vmatprep.subr.mxu0 0.0
    %4020 = vmatpush1.msra.mxu0 0.0
    %4021 = vmatprep.subr.mxu0 0.0
    %4022 = vmatpush1.msra.mxu0 0.0
    %4023 = vmatprep.subr.mxu0 0.0
    %4024 = vmatpush1.msra.mxu0 0.0
    %4025 = vmatprep.subr.mxu0 0.0
    %4026 = vmatpush1.msra.mxu0 0.0
    %4027 = vmatprep.subr.mxu0 0.0
    %4028 = vmatpush1.msra.mxu0 0.0
    %4029 = vmatprep.subr.mxu0 0.0
    %4030 = vmatpush1.msra.mxu0 0.0
    %4031 = vmatprep.subr.mxu0 0.0
    %4032 = vmatpush1.msra.mxu0 0.0
    %4033 = vmatprep.subr.mxu0 0.0
    %4034 = vmatpush1.msra.mxu0 0.0
    %4035 = vmatprep.subr.mxu0 0.0
    %4036 = vmatpush1.msra.mxu0 0.0
    %4037 = vmatprep.mubr.f32.mxu0 0.0
    %v4038 = vand.u32 %v3484, 4294901760
    %4039 = vmatmul.mubr.f32.gmra.mrb[0].mxu0 %v4038
    %v4040 = vpop.f32.mrb[0].mxu0
    %v4041 = vadd.f32 %v3921, %v4040
    %v4042 = vpop.f32.mrb[0].mxu0
    %v4043 = vadd.f32 %v3923, %v4042
    %4044 = vdwg.mxu0
    %v4045 = vand.u32 %v19, 4294901760
    %4046 = vmatprep.subr.mxu0 %v4045
    %v4047 = vand.u32 %v18, 4294901760
    %4048 = vmatpush1.msra.mxu0 %v4047
    %v4049 = vand.u32 %v21, 4294901760
    %4050 = vmatprep.subr.mxu0 %v4049
    %v4051 = vand.u32 %v20, 4294901760
    %4052 = vmatpush1.msra.mxu0 %v4051
    %v4053 = vand.u32 %v23, 4294901760
    %4054 = vmatprep.subr.mxu0 %v4053
    %v4055 = vand.u32 %v22, 4294901760
    %4056 = vmatpush1.msra.mxu0 %v4055
    %v4057 = vand.u32 %v25, 4294901760
    %4058 = vmatprep.subr.mxu0 %v4057
    %v4059 = vand.u32 %v24, 4294901760
    %4060 = vmatpush1.msra.mxu0 %v4059
    %v4061 = vand.u32 %v27, 4294901760
    %4062 = vmatprep.subr.mxu0 %v4061
    %v4063 = vand.u32 %v26, 4294901760
    %4064 = vmatpush1.msra.mxu0 %v4063
    %v4065 = vand.u32 %v29, 4294901760
    %4066 = vmatprep.subr.mxu0 %v4065
    %v4067 = vand.u32 %v28, 4294901760
    %4068 = vmatpush1.msra.mxu0 %v4067
    %v4069 = vand.u32 %v31, 4294901760
    %4070 = vmatprep.subr.mxu0 %v4069
    %v4071 = vand.u32 %v30, 4294901760
    %4072 = vmatpush1.msra.mxu0 %v4071
    %v4073 = vand.u32 %v33, 4294901760
    %4074 = vmatprep.subr.mxu0 %v4073
    %v4075 = vand.u32 %v32, 4294901760
    %4076 = vmatpush1.msra.mxu0 %v4075
    %4077 = vmatprep.subr.mxu0 0.0
    %4078 = vmatpush1.msra.mxu0 0.0
    %4079 = vmatprep.subr.mxu0 0.0
    %4080 = vmatpush1.msra.mxu0 0.0
    %4081 = vmatprep.subr.mxu0 0.0
    %4082 = vmatpush1.msra.mxu0 0.0
    %4083 = vmatprep.subr.mxu0 0.0
    %4084 = vmatpush1.msra.mxu0 0.0
    %4085 = vmatprep.subr.mxu0 0.0
    %4086 = vmatpush1.msra.mxu0 0.0
    %4087 = vmatprep.subr.mxu0 0.0
    %4088 = vmatpush1.msra.mxu0 0.0
    %4089 = vmatprep.subr.mxu0 0.0
    %4090 = vmatpush1.msra.mxu0 0.0
    %4091 = vmatprep.subr.mxu0 0.0
    %4092 = vmatpush1.msra.mxu0 0.0
    %4093 = vmatprep.subr.mxu0 0.0
    %4094 = vmatpush1.msra.mxu0 0.0
    %4095 = vmatprep.subr.mxu0 0.0
    %4096 = vmatpush1.msra.mxu0 0.0
    %4097 = vmatprep.subr.mxu0 0.0
    %4098 = vmatpush1.msra.mxu0 0.0
    %4099 = vmatprep.subr.mxu0 0.0
    %4100 = vmatpush1.msra.mxu0 0.0
    %4101 = vmatprep.subr.mxu0 0.0
    %4102 = vmatpush1.msra.mxu0 0.0
    %4103 = vmatprep.subr.mxu0 0.0
    %4104 = vmatpush1.msra.mxu0 0.0
    %4105 = vmatprep.subr.mxu0 0.0
    %4106 = vmatpush1.msra.mxu0 0.0
    %4107 = vmatprep.subr.mxu0 0.0
    %4108 = vmatpush1.msra.mxu0 0.0
    %4109 = vmatprep.subr.mxu0 0.0
    %4110 = vmatpush1.msra.mxu0 0.0
    %4111 = vmatprep.subr.mxu0 0.0
    %4112 = vmatpush1.msra.mxu0 0.0
    %4113 = vmatprep.subr.mxu0 0.0
    %4114 = vmatpush1.msra.mxu0 0.0
    %4115 = vmatprep.subr.mxu0 0.0
    %4116 = vmatpush1.msra.mxu0 0.0
    %4117 = vmatprep.subr.mxu0 0.0
    %4118 = vmatpush1.msra.mxu0 0.0
    %4119 = vmatprep.subr.mxu0 0.0
    %4120 = vmatpush1.msra.mxu0 0.0
    %4121 = vmatprep.subr.mxu0 0.0
    %4122 = vmatpush1.msra.mxu0 0.0
    %4123 = vmatprep.subr.mxu0 0.0
    %4124 = vmatpush1.msra.mxu0 0.0
    %4125 = vmatprep.mubr.f32.mxu0 0.0
    %v4126 = vand.u32 %v3484, 4294901760
    %4127 = vmatmul.mubr.f32.gmra.mrb[0].mxu0 %v4126
    %v4128 = vpop.f32.mrb[0].mxu0
    %v4129 = vadd.f32 %v4041, %v4128
    %v4130 = vpop.f32.mrb[0].mxu0
    %v4131 = vadd.f32 %v4043, %v4130
    %4132 = vdwg.mxu0
    %v4135 = vcombine.low %v4129, %v4131
    %v4137 = vadd.f32 %v3483, %v4135
    %v4138 = vxor.u32 %v4137, 2147483648
    %v4139 = vmul.f32 %v4138, 1.442695
    %v4140 = vpow.pop %v4139
    %v4141 = vadd.f32 %v4140, 1.0
    %v4142 = vrcp.pop %v4141
    %v4143 = vmul.f32 1.0, %v4142
    %v4144 = vmul.f32 %v4143, %v4131
    %v4146 = vrot.slane %v3483, 4
    %v4148 = vadd.f32 %v4146, %v4144
    %v4149 = vtanh.pop %v4148
    %v4150 = vsub.f32 1.0, %v4143
    %4152 = vrot.lane.b32.xlu0 %v4149, 64
    %v4153 = vpop.permute.xlu0 %4152
    %v4155 = vmul.f32 %v4150, %v4153
    %v4156 = vmul.f32 %v4143, %v3470
    %v4157 = vadd.f32 %v4155, %v4156
    %4159 = vrot.lane.b32.xlu0 %v4157, 64
    %v4160 = vpop.permute.xlu0 %4159
    %s4162 = scalar_lea.vmem [#allocation3], 20
    %4163 = vst.msk [vmem:[%s4162] sm:$0xf] %vm727, %v4160
    %4164 = vrot.lane.b32.xlu0 %v4157, 32
    %v4165 = vpop.permute.xlu0 %4164
    %s4167 = scalar_lea.vmem [#allocation2], 8
    %4168 = vst.msk [vmem:[%s4167] sm:$0xf] %vm727, %v4165
    %s4169 = scalar_lea.vmem %s0, 48
    %v4170 = vld [vmem:[%s4169] sm:$0xff]
    %v4171 = vsel %vm47, %v4160, 0
    %v4173 = vand.u32 %v19, 4294901760
    %4174 = vmatprep.subr.mxu0 %v4173
    %v4175 = vand.u32 %v18, 4294901760
    %4176 = vmatpush1.msra.mxu0 %v4175
    %v4177 = vand.u32 %v21, 4294901760
    %4178 = vmatprep.subr.mxu0 %v4177
    %v4179 = vand.u32 %v20, 4294901760
    %4180 = vmatpush1.msra.mxu0 %v4179
    %v4181 = vand.u32 %v23, 4294901760
    %4182 = vmatprep.subr.mxu0 %v4181
    %v4183 = vand.u32 %v22, 4294901760
    %4184 = vmatpush1.msra.mxu0 %v4183
    %v4185 = vand.u32 %v25, 4294901760
    %4186 = vmatprep.subr.mxu0 %v4185
    %v4187 = vand.u32 %v24, 4294901760
    %4188 = vmatpush1.msra.mxu0 %v4187
    %v4189 = vand.u32 %v27, 4294901760
    %4190 = vmatprep.subr.mxu0 %v4189
    %v4191 = vand.u32 %v26, 4294901760
    %4192 = vmatpush1.msra.mxu0 %v4191
    %v4193 = vand.u32 %v29, 4294901760
    %4194 = vmatprep.subr.mxu0 %v4193
    %v4195 = vand.u32 %v28, 4294901760
    %4196 = vmatpush1.msra.mxu0 %v4195
    %v4197 = vand.u32 %v31, 4294901760
    %4198 = vmatprep.subr.mxu0 %v4197
    %v4199 = vand.u32 %v30, 4294901760
    %4200 = vmatpush1.msra.mxu0 %v4199
    %v4201 = vand.u32 %v33, 4294901760
    %4202 = vmatprep.subr.mxu0 %v4201
    %v4203 = vand.u32 %v32, 4294901760
    %4204 = vmatpush1.msra.mxu0 %v4203
    %4205 = vmatprep.subr.mxu0 0.0
    %4206 = vmatpush1.msra.mxu0 0.0
    %4207 = vmatprep.subr.mxu0 0.0
    %4208 = vmatpush1.msra.mxu0 0.0
    %4209 = vmatprep.subr.mxu0 0.0
    %4210 = vmatpush1.msra.mxu0 0.0
    %4211 = vmatprep.subr.mxu0 0.0
    %4212 = vmatpush1.msra.mxu0 0.0
    %4213 = vmatprep.subr.mxu0 0.0
    %4214 = vmatpush1.msra.mxu0 0.0
    %4215 = vmatprep.subr.mxu0 0.0
    %4216 = vmatpush1.msra.mxu0 0.0
    %4217 = vmatprep.subr.mxu0 0.0
    %4218 = vmatpush1.msra.mxu0 0.0
    %4219 = vmatprep.subr.mxu0 0.0
    %4220 = vmatpush1.msra.mxu0 0.0
    %4221 = vmatprep.subr.mxu0 0.0
    %4222 = vmatpush1.msra.mxu0 0.0
    %4223 = vmatprep.subr.mxu0 0.0
    %4224 = vmatpush1.msra.mxu0 0.0
    %4225 = vmatprep.subr.mxu0 0.0
    %4226 = vmatpush1.msra.mxu0 0.0
    %4227 = vmatprep.subr.mxu0 0.0
    %4228 = vmatpush1.msra.mxu0 0.0
    %4229 = vmatprep.subr.mxu0 0.0
    %4230 = vmatpush1.msra.mxu0 0.0
    %4231 = vmatprep.subr.mxu0 0.0
    %4232 = vmatpush1.msra.mxu0 0.0
    %4233 = vmatprep.subr.mxu0 0.0
    %4234 = vmatpush1.msra.mxu0 0.0
    %4235 = vmatprep.subr.mxu0 0.0
    %4236 = vmatpush1.msra.mxu0 0.0
    %4237 = vmatprep.subr.mxu0 0.0
    %4238 = vmatpush1.msra.mxu0 0.0
    %4239 = vmatprep.subr.mxu0 0.0
    %4240 = vmatpush1.msra.mxu0 0.0
    %4241 = vmatprep.subr.mxu0 0.0
    %4242 = vmatpush1.msra.mxu0 0.0
    %4243 = vmatprep.subr.mxu0 0.0
    %4244 = vmatpush1.msra.mxu0 0.0
    %4245 = vmatprep.subr.mxu0 0.0
    %4246 = vmatpush1.msra.mxu0 0.0
    %4247 = vmatprep.subr.mxu0 0.0
    %4248 = vmatpush1.msra.mxu0 0.0
    %4249 = vmatprep.subr.mxu0 0.0
    %4250 = vmatpush1.msra.mxu0 0.0
    %4251 = vmatprep.subr.mxu0 0.0
    %4252 = vmatpush1.msra.mxu0 0.0
    %4253 = vmatprep.mubr.f32.mxu0 0.0
    %v4254 = vand.u32 %v4171, 4294901760
    %v4255 = vsub.f32 %v4171, %v4254
    %v4256 = vand.u32 %v4255, 4294901760
    %v4257 = vsub.f32 %v4255, %v4256
    %v4258 = vand.u32 %v4257, 4294901760
    %4259 = vmatmul.mubr.f32.gmra.mrb[0].mxu0 %v4258
    %v4260 = vpop.f32.mrb[0].mxu0
    %v4261 = vadd.f32 %v39, %v4260
    %v4262 = vpop.f32.mrb[0].mxu0
    %v4263 = vadd.f32 %v43, %v4262
    %4264 = vdwg.mxu0
    %v4265 = vand.u32 %v19, 4294901760
    %v4266 = vsub.f32 %v19, %v4265
    %v4267 = vand.u32 %v4266, 4294901760
    %v4268 = vsub.f32 %v4266, %v4267
    %v4269 = vand.u32 %v4268, 4294901760
    %4270 = vmatprep.subr.mxu0 %v4269
    %v4271 = vand.u32 %v18, 4294901760
    %v4272 = vsub.f32 %v18, %v4271
    %v4273 = vand.u32 %v4272, 4294901760
    %v4274 = vsub.f32 %v4272, %v4273
    %v4275 = vand.u32 %v4274, 4294901760
    %4276 = vmatpush1.msra.mxu0 %v4275
    %v4277 = vand.u32 %v21, 4294901760
    %v4278 = vsub.f32 %v21, %v4277
    %v4279 = vand.u32 %v4278, 4294901760
    %v4280 = vsub.f32 %v4278, %v4279
    %v4281 = vand.u32 %v4280, 4294901760
    %4282 = vmatprep.subr.mxu0 %v4281
    %v4283 = vand.u32 %v20, 4294901760
    %v4284 = vsub.f32 %v20, %v4283
    %v4285 = vand.u32 %v4284, 4294901760
    %v4286 = vsub.f32 %v4284, %v4285
    %v4287 = vand.u32 %v4286, 4294901760
    %4288 = vmatpush1.msra.mxu0 %v4287
    %v4289 = vand.u32 %v23, 4294901760
    %v4290 = vsub.f32 %v23, %v4289
    %v4291 = vand.u32 %v4290, 4294901760
    %v4292 = vsub.f32 %v4290, %v4291
    %v4293 = vand.u32 %v4292, 4294901760
    %4294 = vmatprep.subr.mxu0 %v4293
    %v4295 = vand.u32 %v22, 4294901760
    %v4296 = vsub.f32 %v22, %v4295
    %v4297 = vand.u32 %v4296, 4294901760
    %v4298 = vsub.f32 %v4296, %v4297
    %v4299 = vand.u32 %v4298, 4294901760
    %4300 = vmatpush1.msra.mxu0 %v4299
    %v4301 = vand.u32 %v25, 4294901760
    %v4302 = vsub.f32 %v25, %v4301
    %v4303 = vand.u32 %v4302, 4294901760
    %v4304 = vsub.f32 %v4302, %v4303
    %v4305 = vand.u32 %v4304, 4294901760
    %4306 = vmatprep.subr.mxu0 %v4305
    %v4307 = vand.u32 %v24, 4294901760
    %v4308 = vsub.f32 %v24, %v4307
    %v4309 = vand.u32 %v4308, 4294901760
    %v4310 = vsub.f32 %v4308, %v4309
    %v4311 = vand.u32 %v4310, 4294901760
    %4312 = vmatpush1.msra.mxu0 %v4311
    %v4313 = vand.u32 %v27, 4294901760
    %v4314 = vsub.f32 %v27, %v4313
    %v4315 = vand.u32 %v4314, 4294901760
    %v4316 = vsub.f32 %v4314, %v4315
    %v4317 = vand.u32 %v4316, 4294901760
    %4318 = vmatprep.subr.mxu0 %v4317
    %v4319 = vand.u32 %v26, 4294901760
    %v4320 = vsub.f32 %v26, %v4319
    %v4321 = vand.u32 %v4320, 4294901760
    %v4322 = vsub.f32 %v4320, %v4321
    %v4323 = vand.u32 %v4322, 4294901760
    %4324 = vmatpush1.msra.mxu0 %v4323
    %v4325 = vand.u32 %v29, 4294901760
    %v4326 = vsub.f32 %v29, %v4325
    %v4327 = vand.u32 %v4326, 4294901760
    %v4328 = vsub.f32 %v4326, %v4327
    %v4329 = vand.u32 %v4328, 4294901760
    %4330 = vmatprep.subr.mxu0 %v4329
    %v4331 = vand.u32 %v28, 4294901760
    %v4332 = vsub.f32 %v28, %v4331
    %v4333 = vand.u32 %v4332, 4294901760
    %v4334 = vsub.f32 %v4332, %v4333
    %v4335 = vand.u32 %v4334, 4294901760
    %4336 = vmatpush1.msra.mxu0 %v4335
    %v4337 = vand.u32 %v31, 4294901760
    %v4338 = vsub.f32 %v31, %v4337
    %v4339 = vand.u32 %v4338, 4294901760
    %v4340 = vsub.f32 %v4338, %v4339
    %v4341 = vand.u32 %v4340, 4294901760
    %4342 = vmatprep.subr.mxu0 %v4341
    %v4343 = vand.u32 %v30, 4294901760
    %v4344 = vsub.f32 %v30, %v4343
    %v4345 = vand.u32 %v4344, 4294901760
    %v4346 = vsub.f32 %v4344, %v4345
    %v4347 = vand.u32 %v4346, 4294901760
    %4348 = vmatpush1.msra.mxu0 %v4347
    %v4349 = vand.u32 %v33, 4294901760
    %v4350 = vsub.f32 %v33, %v4349
    %v4351 = vand.u32 %v4350, 4294901760
    %v4352 = vsub.f32 %v4350, %v4351
    %v4353 = vand.u32 %v4352, 4294901760
    %4354 = vmatprep.subr.mxu0 %v4353
    %v4355 = vand.u32 %v32, 4294901760
    %v4356 = vsub.f32 %v32, %v4355
    %v4357 = vand.u32 %v4356, 4294901760
    %v4358 = vsub.f32 %v4356, %v4357
    %v4359 = vand.u32 %v4358, 4294901760
    %4360 = vmatpush1.msra.mxu0 %v4359
    %4361 = vmatprep.subr.mxu0 0.0
    %4362 = vmatpush1.msra.mxu0 0.0
    %4363 = vmatprep.subr.mxu0 0.0
    %4364 = vmatpush1.msra.mxu0 0.0
    %4365 = vmatprep.subr.mxu0 0.0
    %4366 = vmatpush1.msra.mxu0 0.0
    %4367 = vmatprep.subr.mxu0 0.0
    %4368 = vmatpush1.msra.mxu0 0.0
    %4369 = vmatprep.subr.mxu0 0.0
    %4370 = vmatpush1.msra.mxu0 0.0
    %4371 = vmatprep.subr.mxu0 0.0
    %4372 = vmatpush1.msra.mxu0 0.0
    %4373 = vmatprep.subr.mxu0 0.0
    %4374 = vmatpush1.msra.mxu0 0.0
    %4375 = vmatprep.subr.mxu0 0.0
    %4376 = vmatpush1.msra.mxu0 0.0
    %4377 = vmatprep.subr.mxu0 0.0
    %4378 = vmatpush1.msra.mxu0 0.0
    %4379 = vmatprep.subr.mxu0 0.0
    %4380 = vmatpush1.msra.mxu0 0.0
    %4381 = vmatprep.subr.mxu0 0.0
    %4382 = vmatpush1.msra.mxu0 0.0
    %4383 = vmatprep.subr.mxu0 0.0
    %4384 = vmatpush1.msra.mxu0 0.0
    %4385 = vmatprep.subr.mxu0 0.0
    %4386 = vmatpush1.msra.mxu0 0.0
    %4387 = vmatprep.subr.mxu0 0.0
    %4388 = vmatpush1.msra.mxu0 0.0
    %4389 = vmatprep.subr.mxu0 0.0
    %4390 = vmatpush1.msra.mxu0 0.0
    %4391 = vmatprep.subr.mxu0 0.0
    %4392 = vmatpush1.msra.mxu0 0.0
    %4393 = vmatprep.subr.mxu0 0.0
    %4394 = vmatpush1.msra.mxu0 0.0
    %4395 = vmatprep.subr.mxu0 0.0
    %4396 = vmatpush1.msra.mxu0 0.0
    %4397 = vmatprep.subr.mxu0 0.0
    %4398 = vmatpush1.msra.mxu0 0.0
    %4399 = vmatprep.subr.mxu0 0.0
    %4400 = vmatpush1.msra.mxu0 0.0
    %4401 = vmatprep.subr.mxu0 0.0
    %4402 = vmatpush1.msra.mxu0 0.0
    %4403 = vmatprep.subr.mxu0 0.0
    %4404 = vmatpush1.msra.mxu0 0.0
    %4405 = vmatprep.subr.mxu0 0.0
    %4406 = vmatpush1.msra.mxu0 0.0
    %4407 = vmatprep.subr.mxu0 0.0
    %4408 = vmatpush1.msra.mxu0 0.0
    %4409 = vmatprep.mubr.f32.mxu0 0.0
    %v4410 = vand.u32 %v4171, 4294901760
    %4411 = vmatmul.mubr.f32.gmra.mrb[0].mxu0 %v4410
    %v4412 = vpop.f32.mrb[0].mxu0
    %v4413 = vadd.f32 %v4261, %v4412
    %v4414 = vpop.f32.mrb[0].mxu0
    %v4415 = vadd.f32 %v4263, %v4414
    %4416 = vdwg.mxu0
    %v4417 = vand.u32 %v19, 4294901760
    %v4418 = vsub.f32 %v19, %v4417
    %4419 = vmatprep.subr.mxu0 %v4418
    %v4420 = vand.u32 %v18, 4294901760
    %v4421 = vsub.f32 %v18, %v4420
    %4422 = vmatpush1.msra.mxu0 %v4421
    %v4423 = vand.u32 %v21, 4294901760
    %v4424 = vsub.f32 %v21, %v4423
    %4425 = vmatprep.subr.mxu0 %v4424
    %v4426 = vand.u32 %v20, 4294901760
    %v4427 = vsub.f32 %v20, %v4426
    %4428 = vmatpush1.msra.mxu0 %v4427
    %v4429 = vand.u32 %v23, 4294901760
    %v4430 = vsub.f32 %v23, %v4429
    %4431 = vmatprep.subr.mxu0 %v4430
    %v4432 = vand.u32 %v22, 4294901760
    %v4433 = vsub.f32 %v22, %v4432
    %4434 = vmatpush1.msra.mxu0 %v4433
    %v4435 = vand.u32 %v25, 4294901760
    %v4436 = vsub.f32 %v25, %v4435
    %4437 = vmatprep.subr.mxu0 %v4436
    %v4438 = vand.u32 %v24, 4294901760
    %v4439 = vsub.f32 %v24, %v4438
    %4440 = vmatpush1.msra.mxu0 %v4439
    %v4441 = vand.u32 %v27, 4294901760
    %v4442 = vsub.f32 %v27, %v4441
    %4443 = vmatprep.subr.mxu0 %v4442
    %v4444 = vand.u32 %v26, 4294901760
    %v4445 = vsub.f32 %v26, %v4444
    %4446 = vmatpush1.msra.mxu0 %v4445
    %v4447 = vand.u32 %v29, 4294901760
    %v4448 = vsub.f32 %v29, %v4447
    %4449 = vmatprep.subr.mxu0 %v4448
    %v4450 = vand.u32 %v28, 4294901760
    %v4451 = vsub.f32 %v28, %v4450
    %4452 = vmatpush1.msra.mxu0 %v4451
    %v4453 = vand.u32 %v31, 4294901760
    %v4454 = vsub.f32 %v31, %v4453
    %4455 = vmatprep.subr.mxu0 %v4454
    %v4456 = vand.u32 %v30, 4294901760
    %v4457 = vsub.f32 %v30, %v4456
    %4458 = vmatpush1.msra.mxu0 %v4457
    %v4459 = vand.u32 %v33, 4294901760
    %v4460 = vsub.f32 %v33, %v4459
    %4461 = vmatprep.subr.mxu0 %v4460
    %v4462 = vand.u32 %v32, 4294901760
    %v4463 = vsub.f32 %v32, %v4462
    %4464 = vmatpush1.msra.mxu0 %v4463
    %4465 = vmatprep.subr.mxu0 0.0
    %4466 = vmatpush1.msra.mxu0 0.0
    %4467 = vmatprep.subr.mxu0 0.0
    %4468 = vmatpush1.msra.mxu0 0.0
    %4469 = vmatprep.subr.mxu0 0.0
    %4470 = vmatpush1.msra.mxu0 0.0
    %4471 = vmatprep.subr.mxu0 0.0
    %4472 = vmatpush1.msra.mxu0 0.0
    %4473 = vmatprep.subr.mxu0 0.0
    %4474 = vmatpush1.msra.mxu0 0.0
    %4475 = vmatprep.subr.mxu0 0.0
    %4476 = vmatpush1.msra.mxu0 0.0
    %4477 = vmatprep.subr.mxu0 0.0
    %4478 = vmatpush1.msra.mxu0 0.0
    %4479 = vmatprep.subr.mxu0 0.0
    %4480 = vmatpush1.msra.mxu0 0.0
    %4481 = vmatprep.subr.mxu0 0.0
    %4482 = vmatpush1.msra.mxu0 0.0
    %4483 = vmatprep.subr.mxu0 0.0
    %4484 = vmatpush1.msra.mxu0 0.0
    %4485 = vmatprep.subr.mxu0 0.0
    %4486 = vmatpush1.msra.mxu0 0.0
    %4487 = vmatprep.subr.mxu0 0.0
    %4488 = vmatpush1.msra.mxu0 0.0
    %4489 = vmatprep.subr.mxu0 0.0
    %4490 = vmatpush1.msra.mxu0 0.0
    %4491 = vmatprep.subr.mxu0 0.0
    %4492 = vmatpush1.msra.mxu0 0.0
    %4493 = vmatprep.subr.mxu0 0.0
    %4494 = vmatpush1.msra.mxu0 0.0
    %4495 = vmatprep.subr.mxu0 0.0
    %4496 = vmatpush1.msra.mxu0 0.0
    %4497 = vmatprep.subr.mxu0 0.0
    %4498 = vmatpush1.msra.mxu0 0.0
    %4499 = vmatprep.subr.mxu0 0.0
    %4500 = vmatpush1.msra.mxu0 0.0
    %4501 = vmatprep.subr.mxu0 0.0
    %4502 = vmatpush1.msra.mxu0 0.0
    %4503 = vmatprep.subr.mxu0 0.0
    %4504 = vmatpush1.msra.mxu0 0.0
    %4505 = vmatprep.subr.mxu0 0.0
    %4506 = vmatpush1.msra.mxu0 0.0
    %4507 = vmatprep.subr.mxu0 0.0
    %4508 = vmatpush1.msra.mxu0 0.0
    %4509 = vmatprep.subr.mxu0 0.0
    %4510 = vmatpush1.msra.mxu0 0.0
    %4511 = vmatprep.subr.mxu0 0.0
    %4512 = vmatpush1.msra.mxu0 0.0
    %4513 = vmatprep.mubr.f32.mxu0 0.0
    %v4514 = vand.u32 %v4171, 4294901760
    %v4515 = vsub.f32 %v4171, %v4514
    %4516 = vmatmul.mubr.f32.gmra.mrb[0].mxu0 %v4515
    %v4517 = vpop.f32.mrb[0].mxu0
    %v4518 = vadd.f32 %v4413, %v4517
    %v4519 = vpop.f32.mrb[0].mxu0
    %v4520 = vadd.f32 %v4415, %v4519
    %4521 = vdwg.mxu0
    %v4522 = vand.u32 %v19, 4294901760
    %4523 = vmatprep.subr.mxu0 %v4522
    %v4524 = vand.u32 %v18, 4294901760
    %4525 = vmatpush1.msra.mxu0 %v4524
    %v4526 = vand.u32 %v21, 4294901760
    %4527 = vmatprep.subr.mxu0 %v4526
    %v4528 = vand.u32 %v20, 4294901760
    %4529 = vmatpush1.msra.mxu0 %v4528
    %v4530 = vand.u32 %v23, 4294901760
    %4531 = vmatprep.subr.mxu0 %v4530
    %v4532 = vand.u32 %v22, 4294901760
    %4533 = vmatpush1.msra.mxu0 %v4532
    %v4534 = vand.u32 %v25, 4294901760
    %4535 = vmatprep.subr.mxu0 %v4534
    %v4536 = vand.u32 %v24, 4294901760
    %4537 = vmatpush1.msra.mxu0 %v4536
    %v4538 = vand.u32 %v27, 4294901760
    %4539 = vmatprep.subr.mxu0 %v4538
    %v4540 = vand.u32 %v26, 4294901760
    %4541 = vmatpush1.msra.mxu0 %v4540
    %v4542 = vand.u32 %v29, 4294901760
    %4543 = vmatprep.subr.mxu0 %v4542
    %v4544 = vand.u32 %v28, 4294901760
    %4545 = vmatpush1.msra.mxu0 %v4544
    %v4546 = vand.u32 %v31, 4294901760
    %4547 = vmatprep.subr.mxu0 %v4546
    %v4548 = vand.u32 %v30, 4294901760
    %4549 = vmatpush1.msra.mxu0 %v4548
    %v4550 = vand.u32 %v33, 4294901760
    %4551 = vmatprep.subr.mxu0 %v4550
    %v4552 = vand.u32 %v32, 4294901760
    %4553 = vmatpush1.msra.mxu0 %v4552
    %4554 = vmatprep.subr.mxu0 0.0
    %4555 = vmatpush1.msra.mxu0 0.0
    %4556 = vmatprep.subr.mxu0 0.0
    %4557 = vmatpush1.msra.mxu0 0.0
    %4558 = vmatprep.subr.mxu0 0.0
    %4559 = vmatpush1.msra.mxu0 0.0
    %4560 = vmatprep.subr.mxu0 0.0
    %4561 = vmatpush1.msra.mxu0 0.0
    %4562 = vmatprep.subr.mxu0 0.0
    %4563 = vmatpush1.msra.mxu0 0.0
    %4564 = vmatprep.subr.mxu0 0.0
    %4565 = vmatpush1.msra.mxu0 0.0
    %4566 = vmatprep.subr.mxu0 0.0
    %4567 = vmatpush1.msra.mxu0 0.0
    %4568 = vmatprep.subr.mxu0 0.0
    %4569 = vmatpush1.msra.mxu0 0.0
    %4570 = vmatprep.subr.mxu0 0.0
    %4571 = vmatpush1.msra.mxu0 0.0
    %4572 = vmatprep.subr.mxu0 0.0
    %4573 = vmatpush1.msra.mxu0 0.0
    %4574 = vmatprep.subr.mxu0 0.0
    %4575 = vmatpush1.msra.mxu0 0.0
    %4576 = vmatprep.subr.mxu0 0.0
    %4577 = vmatpush1.msra.mxu0 0.0
    %4578 = vmatprep.subr.mxu0 0.0
    %4579 = vmatpush1.msra.mxu0 0.0
    %4580 = vmatprep.subr.mxu0 0.0
    %4581 = vmatpush1.msra.mxu0 0.0
    %4582 = vmatprep.subr.mxu0 0.0
    %4583 = vmatpush1.msra.mxu0 0.0
    %4584 = vmatprep.subr.mxu0 0.0
    %4585 = vmatpush1.msra.mxu0 0.0
    %4586 = vmatprep.subr.mxu0 0.0
    %4587 = vmatpush1.msra.mxu0 0.0
    %4588 = vmatprep.subr.mxu0 0.0
    %4589 = vmatpush1.msra.mxu0 0.0
    %4590 = vmatprep.subr.mxu0 0.0
    %4591 = vmatpush1.msra.mxu0 0.0
    %4592 = vmatprep.subr.mxu0 0.0
    %4593 = vmatpush1.msra.mxu0 0.0
    %4594 = vmatprep.subr.mxu0 0.0
    %4595 = vmatpush1.msra.mxu0 0.0
    %4596 = vmatprep.subr.mxu0 0.0
    %4597 = vmatpush1.msra.mxu0 0.0
    %4598 = vmatprep.subr.mxu0 0.0
    %4599 = vmatpush1.msra.mxu0 0.0
    %4600 = vmatprep.subr.mxu0 0.0
    %4601 = vmatpush1.msra.mxu0 0.0
    %4602 = vmatprep.mubr.f32.mxu0 0.0
    %v4603 = vand.u32 %v4171, 4294901760
    %v4604 = vsub.f32 %v4171, %v4603
    %v4605 = vand.u32 %v4604, 4294901760
    %4606 = vmatmul.mubr.f32.gmra.mrb[0].mxu0 %v4605
    %v4607 = vpop.f32.mrb[0].mxu0
    %v4608 = vadd.f32 %v4518, %v4607
    %v4609 = vpop.f32.mrb[0].mxu0
    %v4610 = vadd.f32 %v4520, %v4609
    %4611 = vdwg.mxu0
    %v4612 = vand.u32 %v19, 4294901760
    %v4613 = vsub.f32 %v19, %v4612
    %v4614 = vand.u32 %v4613, 4294901760
    %4615 = vmatprep.subr.mxu0 %v4614
    %v4616 = vand.u32 %v18, 4294901760
    %v4617 = vsub.f32 %v18, %v4616
    %v4618 = vand.u32 %v4617, 4294901760
    %4619 = vmatpush1.msra.mxu0 %v4618
    %v4620 = vand.u32 %v21, 4294901760
    %v4621 = vsub.f32 %v21, %v4620
    %v4622 = vand.u32 %v4621, 4294901760
    %4623 = vmatprep.subr.mxu0 %v4622
    %v4624 = vand.u32 %v20, 4294901760
    %v4625 = vsub.f32 %v20, %v4624
    %v4626 = vand.u32 %v4625, 4294901760
    %4627 = vmatpush1.msra.mxu0 %v4626
    %v4628 = vand.u32 %v23, 4294901760
    %v4629 = vsub.f32 %v23, %v4628
    %v4630 = vand.u32 %v4629, 4294901760
    %4631 = vmatprep.subr.mxu0 %v4630
    %v4632 = vand.u32 %v22, 4294901760
    %v4633 = vsub.f32 %v22, %v4632
    %v4634 = vand.u32 %v4633, 4294901760
    %4635 = vmatpush1.msra.mxu0 %v4634
    %v4636 = vand.u32 %v25, 4294901760
    %v4637 = vsub.f32 %v25, %v4636
    %v4638 = vand.u32 %v4637, 4294901760
    %4639 = vmatprep.subr.mxu0 %v4638
    %v4640 = vand.u32 %v24, 4294901760
    %v4641 = vsub.f32 %v24, %v4640
    %v4642 = vand.u32 %v4641, 4294901760
    %4643 = vmatpush1.msra.mxu0 %v4642
    %v4644 = vand.u32 %v27, 4294901760
    %v4645 = vsub.f32 %v27, %v4644
    %v4646 = vand.u32 %v4645, 4294901760
    %4647 = vmatprep.subr.mxu0 %v4646
    %v4648 = vand.u32 %v26, 4294901760
    %v4649 = vsub.f32 %v26, %v4648
    %v4650 = vand.u32 %v4649, 4294901760
    %4651 = vmatpush1.msra.mxu0 %v4650
    %v4652 = vand.u32 %v29, 4294901760
    %v4653 = vsub.f32 %v29, %v4652
    %v4654 = vand.u32 %v4653, 4294901760
    %4655 = vmatprep.subr.mxu0 %v4654
    %v4656 = vand.u32 %v28, 4294901760
    %v4657 = vsub.f32 %v28, %v4656
    %v4658 = vand.u32 %v4657, 4294901760
    %4659 = vmatpush1.msra.mxu0 %v4658
    %v4660 = vand.u32 %v31, 4294901760
    %v4661 = vsub.f32 %v31, %v4660
    %v4662 = vand.u32 %v4661, 4294901760
    %4663 = vmatprep.subr.mxu0 %v4662
    %v4664 = vand.u32 %v30, 4294901760
    %v4665 = vsub.f32 %v30, %v4664
    %v4666 = vand.u32 %v4665, 4294901760
    %4667 = vmatpush1.msra.mxu0 %v4666
    %v4668 = vand.u32 %v33, 4294901760
    %v4669 = vsub.f32 %v33, %v4668
    %v4670 = vand.u32 %v4669, 4294901760
    %4671 = vmatprep.subr.mxu0 %v4670
    %v4672 = vand.u32 %v32, 4294901760
    %v4673 = vsub.f32 %v32, %v4672
    %v4674 = vand.u32 %v4673, 4294901760
    %4675 = vmatpush1.msra.mxu0 %v4674
    %4676 = vmatprep.subr.mxu0 0.0
    %4677 = vmatpush1.msra.mxu0 0.0
    %4678 = vmatprep.subr.mxu0 0.0
    %4679 = vmatpush1.msra.mxu0 0.0
    %4680 = vmatprep.subr.mxu0 0.0
    %4681 = vmatpush1.msra.mxu0 0.0
    %4682 = vmatprep.subr.mxu0 0.0
    %4683 = vmatpush1.msra.mxu0 0.0
    %4684 = vmatprep.subr.mxu0 0.0
    %4685 = vmatpush1.msra.mxu0 0.0
    %4686 = vmatprep.subr.mxu0 0.0
    %4687 = vmatpush1.msra.mxu0 0.0
    %4688 = vmatprep.subr.mxu0 0.0
    %4689 = vmatpush1.msra.mxu0 0.0
    %4690 = vmatprep.subr.mxu0 0.0
    %4691 = vmatpush1.msra.mxu0 0.0
    %4692 = vmatprep.subr.mxu0 0.0
    %4693 = vmatpush1.msra.mxu0 0.0
    %4694 = vmatprep.subr.mxu0 0.0
    %4695 = vmatpush1.msra.mxu0 0.0
    %4696 = vmatprep.subr.mxu0 0.0
    %4697 = vmatpush1.msra.mxu0 0.0
    %4698 = vmatprep.subr.mxu0 0.0
    %4699 = vmatpush1.msra.mxu0 0.0
    %4700 = vmatprep.subr.mxu0 0.0
    %4701 = vmatpush1.msra.mxu0 0.0
    %4702 = vmatprep.subr.mxu0 0.0
    %4703 = vmatpush1.msra.mxu0 0.0
    %4704 = vmatprep.subr.mxu0 0.0
    %4705 = vmatpush1.msra.mxu0 0.0
    %4706 = vmatprep.subr.mxu0 0.0
    %4707 = vmatpush1.msra.mxu0 0.0
    %4708 = vmatprep.subr.mxu0 0.0
    %4709 = vmatpush1.msra.mxu0 0.0
    %4710 = vmatprep.subr.mxu0 0.0
    %4711 = vmatpush1.msra.mxu0 0.0
    %4712 = vmatprep.subr.mxu0 0.0
    %4713 = vmatpush1.msra.mxu0 0.0
    %4714 = vmatprep.subr.mxu0 0.0
    %4715 = vmatpush1.msra.mxu0 0.0
    %4716 = vmatprep.subr.mxu0 0.0
    %4717 = vmatpush1.msra.mxu0 0.0
    %4718 = vmatprep.subr.mxu0 0.0
    %4719 = vmatpush1.msra.mxu0 0.0
    %4720 = vmatprep.subr.mxu0 0.0
    %4721 = vmatpush1.msra.mxu0 0.0
    %4722 = vmatprep.subr.mxu0 0.0
    %4723 = vmatpush1.msra.mxu0 0.0
    %4724 = vmatprep.mubr.f32.mxu0 0.0
    %v4725 = vand.u32 %v4171, 4294901760
    %4726 = vmatmul.mubr.f32.gmra.mrb[0].mxu0 %v4725
    %v4727 = vpop.f32.mrb[0].mxu0
    %v4728 = vadd.f32 %v4608, %v4727
    %v4729 = vpop.f32.mrb[0].mxu0
    %v4730 = vadd.f32 %v4610, %v4729
    %4731 = vdwg.mxu0
    %v4732 = vand.u32 %v19, 4294901760
    %4733 = vmatprep.subr.mxu0 %v4732
    %v4734 = vand.u32 %v18, 4294901760
    %4735 = vmatpush1.msra.mxu0 %v4734
    %v4736 = vand.u32 %v21, 4294901760
    %4737 = vmatprep.subr.mxu0 %v4736
    %v4738 = vand.u32 %v20, 4294901760
    %4739 = vmatpush1.msra.mxu0 %v4738
    %v4740 = vand.u32 %v23, 4294901760
    %4741 = vmatprep.subr.mxu0 %v4740
    %v4742 = vand.u32 %v22, 4294901760
    %4743 = vmatpush1.msra.mxu0 %v4742
    %v4744 = vand.u32 %v25, 4294901760
    %4745 = vmatprep.subr.mxu0 %v4744
    %v4746 = vand.u32 %v24, 4294901760
    %4747 = vmatpush1.msra.mxu0 %v4746
    %v4748 = vand.u32 %v27, 4294901760
    %4749 = vmatprep.subr.mxu0 %v4748
    %v4750 = vand.u32 %v26, 4294901760
    %4751 = vmatpush1.msra.mxu0 %v4750
    %v4752 = vand.u32 %v29, 4294901760
    %4753 = vmatprep.subr.mxu0 %v4752
    %v4754 = vand.u32 %v28, 4294901760
    %4755 = vmatpush1.msra.mxu0 %v4754
    %v4756 = vand.u32 %v31, 4294901760
    %4757 = vmatprep.subr.mxu0 %v4756
    %v4758 = vand.u32 %v30, 4294901760
    %4759 = vmatpush1.msra.mxu0 %v4758
    %v4760 = vand.u32 %v33, 4294901760
    %4761 = vmatprep.subr.mxu0 %v4760
    %v4762 = vand.u32 %v32, 4294901760
    %4763 = vmatpush1.msra.mxu0 %v4762
    %4764 = vmatprep.subr.mxu0 0.0
    %4765 = vmatpush1.msra.mxu0 0.0
    %4766 = vmatprep.subr.mxu0 0.0
    %4767 = vmatpush1.msra.mxu0 0.0
    %4768 = vmatprep.subr.mxu0 0.0
    %4769 = vmatpush1.msra.mxu0 0.0
    %4770 = vmatprep.subr.mxu0 0.0
    %4771 = vmatpush1.msra.mxu0 0.0
    %4772 = vmatprep.subr.mxu0 0.0
    %4773 = vmatpush1.msra.mxu0 0.0
    %4774 = vmatprep.subr.mxu0 0.0
    %4775 = vmatpush1.msra.mxu0 0.0
    %4776 = vmatprep.subr.mxu0 0.0
    %4777 = vmatpush1.msra.mxu0 0.0
    %4778 = vmatprep.subr.mxu0 0.0
    %4779 = vmatpush1.msra.mxu0 0.0
    %4780 = vmatprep.subr.mxu0 0.0
    %4781 = vmatpush1.msra.mxu0 0.0
    %4782 = vmatprep.subr.mxu0 0.0
    %4783 = vmatpush1.msra.mxu0 0.0
    %4784 = vmatprep.subr.mxu0 0.0
    %4785 = vmatpush1.msra.mxu0 0.0
    %4786 = vmatprep.subr.mxu0 0.0
    %4787 = vmatpush1.msra.mxu0 0.0
    %4788 = vmatprep.subr.mxu0 0.0
    %4789 = vmatpush1.msra.mxu0 0.0
    %4790 = vmatprep.subr.mxu0 0.0
    %4791 = vmatpush1.msra.mxu0 0.0
    %4792 = vmatprep.subr.mxu0 0.0
    %4793 = vmatpush1.msra.mxu0 0.0
    %4794 = vmatprep.subr.mxu0 0.0
    %4795 = vmatpush1.msra.mxu0 0.0
    %4796 = vmatprep.subr.mxu0 0.0
    %4797 = vmatpush1.msra.mxu0 0.0
    %4798 = vmatprep.subr.mxu0 0.0
    %4799 = vmatpush1.msra.mxu0 0.0
    %4800 = vmatprep.subr.mxu0 0.0
    %4801 = vmatpush1.msra.mxu0 0.0
    %4802 = vmatprep.subr.mxu0 0.0
    %4803 = vmatpush1.msra.mxu0 0.0
    %4804 = vmatprep.subr.mxu0 0.0
    %4805 = vmatpush1.msra.mxu0 0.0
    %4806 = vmatprep.subr.mxu0 0.0
    %4807 = vmatpush1.msra.mxu0 0.0
    %4808 = vmatprep.subr.mxu0 0.0
    %4809 = vmatpush1.msra.mxu0 0.0
    %4810 = vmatprep.subr.mxu0 0.0
    %4811 = vmatpush1.msra.mxu0 0.0
    %4812 = vmatprep.mubr.f32.mxu0 0.0
    %v4813 = vand.u32 %v4171, 4294901760
    %4814 = vmatmul.mubr.f32.gmra.mrb[0].mxu0 %v4813
    %v4815 = vpop.f32.mrb[0].mxu0
    %v4816 = vadd.f32 %v4728, %v4815
    %v4817 = vpop.f32.mrb[0].mxu0
    %v4818 = vadd.f32 %v4730, %v4817
    %4819 = vdwg.mxu0
    %v4822 = vcombine.low %v4816, %v4818
    %v4824 = vadd.f32 %v4170, %v4822
    %v4825 = vxor.u32 %v4824, 2147483648
    %v4826 = vmul.f32 %v4825, 1.442695
    %v4827 = vpow.pop %v4826
    %v4828 = vadd.f32 %v4827, 1.0
    %v4829 = vrcp.pop %v4828
    %v4830 = vmul.f32 1.0, %v4829
    %v4831 = vmul.f32 %v4830, %v4818
    %v4833 = vrot.slane %v4170, 4
    %v4835 = vadd.f32 %v4833, %v4831
    %v4836 = vtanh.pop %v4835
    %v4837 = vsub.f32 1.0, %v4830
    %4839 = vrot.lane.b32.xlu0 %v4836, 64
    %v4840 = vpop.permute.xlu0 %4839
    %v4842 = vmul.f32 %v4837, %v4840
    %v4843 = vmul.f32 %v4830, %v4157
    %v4844 = vadd.f32 %v4842, %v4843
    %4846 = vrot.lane.b32.xlu0 %v4844, 64
    %v4847 = vpop.permute.xlu0 %4846
    %s4849 = scalar_lea.vmem [#allocation3], 24
    %4850 = vst.msk [vmem:[%s4849] sm:$0xf] %vm727, %v4847
    %4851 = vrot.lane.b32.xlu0 %v4844, 32
    %v4852 = vpop.permute.xlu0 %4851
    %s4854 = scalar_lea.vmem [#allocation2], 4
    %4855 = vst.msk [vmem:[%s4854] sm:$0xf] %vm727, %v4852
    %s4856 = scalar_lea.vmem %s0, 56
    %v4857 = vld [vmem:[%s4856] sm:$0xff]
    %v4858 = vsel %vm47, %v4847, 0
    %v4860 = vand.u32 %v19, 4294901760
    %4861 = vmatprep.subr.mxu0 %v4860
    %v4862 = vand.u32 %v18, 4294901760
    %4863 = vmatpush1.msra.mxu0 %v4862
    %v4864 = vand.u32 %v21, 4294901760
    %4865 = vmatprep.subr.mxu0 %v4864
    %v4866 = vand.u32 %v20, 4294901760
    %4867 = vmatpush1.msra.mxu0 %v4866
    %v4868 = vand.u32 %v23, 4294901760
    %4869 = vmatprep.subr.mxu0 %v4868
    %v4870 = vand.u32 %v22, 4294901760
    %4871 = vmatpush1.msra.mxu0 %v4870
    %v4872 = vand.u32 %v25, 4294901760
    %4873 = vmatprep.subr.mxu0 %v4872
    %v4874 = vand.u32 %v24, 4294901760
    %4875 = vmatpush1.msra.mxu0 %v4874
    %v4876 = vand.u32 %v27, 4294901760
    %4877 = vmatprep.subr.mxu0 %v4876
    %v4878 = vand.u32 %v26, 4294901760
    %4879 = vmatpush1.msra.mxu0 %v4878
    %v4880 = vand.u32 %v29, 4294901760
    %4881 = vmatprep.subr.mxu0 %v4880
    %v4882 = vand.u32 %v28, 4294901760
    %4883 = vmatpush1.msra.mxu0 %v4882
    %v4884 = vand.u32 %v31, 4294901760
    %4885 = vmatprep.subr.mxu0 %v4884
    %v4886 = vand.u32 %v30, 4294901760
    %4887 = vmatpush1.msra.mxu0 %v4886
    %v4888 = vand.u32 %v33, 4294901760
    %4889 = vmatprep.subr.mxu0 %v4888
    %v4890 = vand.u32 %v32, 4294901760
    %4891 = vmatpush1.msra.mxu0 %v4890
    %4892 = vmatprep.subr.mxu0 0.0
    %4893 = vmatpush1.msra.mxu0 0.0
    %4894 = vmatprep.subr.mxu0 0.0
    %4895 = vmatpush1.msra.mxu0 0.0
    %4896 = vmatprep.subr.mxu0 0.0
    %4897 = vmatpush1.msra.mxu0 0.0
    %4898 = vmatprep.subr.mxu0 0.0
    %4899 = vmatpush1.msra.mxu0 0.0
    %4900 = vmatprep.subr.mxu0 0.0
    %4901 = vmatpush1.msra.mxu0 0.0
    %4902 = vmatprep.subr.mxu0 0.0
    %4903 = vmatpush1.msra.mxu0 0.0
    %4904 = vmatprep.subr.mxu0 0.0
    %4905 = vmatpush1.msra.mxu0 0.0
    %4906 = vmatprep.subr.mxu0 0.0
    %4907 = vmatpush1.msra.mxu0 0.0
    %4908 = vmatprep.subr.mxu0 0.0
    %4909 = vmatpush1.msra.mxu0 0.0
    %4910 = vmatprep.subr.mxu0 0.0
    %4911 = vmatpush1.msra.mxu0 0.0
    %4912 = vmatprep.subr.mxu0 0.0
    %4913 = vmatpush1.msra.mxu0 0.0
    %4914 = vmatprep.subr.mxu0 0.0
    %4915 = vmatpush1.msra.mxu0 0.0
    %4916 = vmatprep.subr.mxu0 0.0
    %4917 = vmatpush1.msra.mxu0 0.0
    %4918 = vmatprep.subr.mxu0 0.0
    %4919 = vmatpush1.msra.mxu0 0.0
    %4920 = vmatprep.subr.mxu0 0.0
    %4921 = vmatpush1.msra.mxu0 0.0
    %4922 = vmatprep.subr.mxu0 0.0
    %4923 = vmatpush1.msra.mxu0 0.0
    %4924 = vmatprep.subr.mxu0 0.0
    %4925 = vmatpush1.msra.mxu0 0.0
    %4926 = vmatprep.subr.mxu0 0.0
    %4927 = vmatpush1.msra.mxu0 0.0
    %4928 = vmatprep.subr.mxu0 0.0
    %4929 = vmatpush1.msra.mxu0 0.0
    %4930 = vmatprep.subr.mxu0 0.0
    %4931 = vmatpush1.msra.mxu0 0.0
    %4932 = vmatprep.subr.mxu0 0.0
    %4933 = vmatpush1.msra.mxu0 0.0
    %4934 = vmatprep.subr.mxu0 0.0
    %4935 = vmatpush1.msra.mxu0 0.0
    %4936 = vmatprep.subr.mxu0 0.0
    %4937 = vmatpush1.msra.mxu0 0.0
    %4938 = vmatprep.subr.mxu0 0.0
    %4939 = vmatpush1.msra.mxu0 0.0
    %4940 = vmatprep.mubr.f32.mxu0 0.0
    %v4941 = vand.u32 %v4858, 4294901760
    %v4942 = vsub.f32 %v4858, %v4941
    %v4943 = vand.u32 %v4942, 4294901760
    %v4944 = vsub.f32 %v4942, %v4943
    %v4945 = vand.u32 %v4944, 4294901760
    %4946 = vmatmul.mubr.f32.gmra.mrb[0].mxu0 %v4945
    %v4947 = vpop.f32.mrb[0].mxu0
    %v4948 = vadd.f32 %v39, %v4947
    %v4949 = vpop.f32.mrb[0].mxu0
    %v4950 = vadd.f32 %v43, %v4949
    %4951 = vdwg.mxu0
    %v4952 = vand.u32 %v19, 4294901760
    %v4953 = vsub.f32 %v19, %v4952
    %v4954 = vand.u32 %v4953, 4294901760
    %v4955 = vsub.f32 %v4953, %v4954
    %v4956 = vand.u32 %v4955, 4294901760
    %4957 = vmatprep.subr.mxu0 %v4956
    %v4958 = vand.u32 %v18, 4294901760
    %v4959 = vsub.f32 %v18, %v4958
    %v4960 = vand.u32 %v4959, 4294901760
    %v4961 = vsub.f32 %v4959, %v4960
    %v4962 = vand.u32 %v4961, 4294901760
    %4963 = vmatpush1.msra.mxu0 %v4962
    %v4964 = vand.u32 %v21, 4294901760
    %v4965 = vsub.f32 %v21, %v4964
    %v4966 = vand.u32 %v4965, 4294901760
    %v4967 = vsub.f32 %v4965, %v4966
    %v4968 = vand.u32 %v4967, 4294901760
    %4969 = vmatprep.subr.mxu0 %v4968
    %v4970 = vand.u32 %v20, 4294901760
    %v4971 = vsub.f32 %v20, %v4970
    %v4972 = vand.u32 %v4971, 4294901760
    %v4973 = vsub.f32 %v4971, %v4972
    %v4974 = vand.u32 %v4973, 4294901760
    %4975 = vmatpush1.msra.mxu0 %v4974
    %v4976 = vand.u32 %v23, 4294901760
    %v4977 = vsub.f32 %v23, %v4976
    %v4978 = vand.u32 %v4977, 4294901760
    %v4979 = vsub.f32 %v4977, %v4978
    %v4980 = vand.u32 %v4979, 4294901760
    %4981 = vmatprep.subr.mxu0 %v4980
    %v4982 = vand.u32 %v22, 4294901760
    %v4983 = vsub.f32 %v22, %v4982
    %v4984 = vand.u32 %v4983, 4294901760
    %v4985 = vsub.f32 %v4983, %v4984
    %v4986 = vand.u32 %v4985, 4294901760
    %4987 = vmatpush1.msra.mxu0 %v4986
    %v4988 = vand.u32 %v25, 4294901760
    %v4989 = vsub.f32 %v25, %v4988
    %v4990 = vand.u32 %v4989, 4294901760
    %v4991 = vsub.f32 %v4989, %v4990
    %v4992 = vand.u32 %v4991, 4294901760
    %4993 = vmatprep.subr.mxu0 %v4992
    %v4994 = vand.u32 %v24, 4294901760
    %v4995 = vsub.f32 %v24, %v4994
    %v4996 = vand.u32 %v4995, 4294901760
    %v4997 = vsub.f32 %v4995, %v4996
    %v4998 = vand.u32 %v4997, 4294901760
    %4999 = vmatpush1.msra.mxu0 %v4998
    %v5000 = vand.u32 %v27, 4294901760
    %v5001 = vsub.f32 %v27, %v5000
    %v5002 = vand.u32 %v5001, 4294901760
    %v5003 = vsub.f32 %v5001, %v5002
    %v5004 = vand.u32 %v5003, 4294901760
    %5005 = vmatprep.subr.mxu0 %v5004
    %v5006 = vand.u32 %v26, 4294901760
    %v5007 = vsub.f32 %v26, %v5006
    %v5008 = vand.u32 %v5007, 4294901760
    %v5009 = vsub.f32 %v5007, %v5008
    %v5010 = vand.u32 %v5009, 4294901760
    %5011 = vmatpush1.msra.mxu0 %v5010
    %v5012 = vand.u32 %v29, 4294901760
    %v5013 = vsub.f32 %v29, %v5012
    %v5014 = vand.u32 %v5013, 4294901760
    %v5015 = vsub.f32 %v5013, %v5014
    %v5016 = vand.u32 %v5015, 4294901760
    %5017 = vmatprep.subr.mxu0 %v5016
    %v5018 = vand.u32 %v28, 4294901760
    %v5019 = vsub.f32 %v28, %v5018
    %v5020 = vand.u32 %v5019, 4294901760
    %v5021 = vsub.f32 %v5019, %v5020
    %v5022 = vand.u32 %v5021, 4294901760
    %5023 = vmatpush1.msra.mxu0 %v5022
    %v5024 = vand.u32 %v31, 4294901760
    %v5025 = vsub.f32 %v31, %v5024
    %v5026 = vand.u32 %v5025, 4294901760
    %v5027 = vsub.f32 %v5025, %v5026
    %v5028 = vand.u32 %v5027, 4294901760
    %5029 = vmatprep.subr.mxu0 %v5028
    %v5030 = vand.u32 %v30, 4294901760
    %v5031 = vsub.f32 %v30, %v5030
    %v5032 = vand.u32 %v5031, 4294901760
    %v5033 = vsub.f32 %v5031, %v5032
    %v5034 = vand.u32 %v5033, 4294901760
    %5035 = vmatpush1.msra.mxu0 %v5034
    %v5036 = vand.u32 %v33, 4294901760
    %v5037 = vsub.f32 %v33, %v5036
    %v5038 = vand.u32 %v5037, 4294901760
    %v5039 = vsub.f32 %v5037, %v5038
    %v5040 = vand.u32 %v5039, 4294901760
    %5041 = vmatprep.subr.mxu0 %v5040
    %v5042 = vand.u32 %v32, 4294901760
    %v5043 = vsub.f32 %v32, %v5042
    %v5044 = vand.u32 %v5043, 4294901760
    %v5045 = vsub.f32 %v5043, %v5044
    %v5046 = vand.u32 %v5045, 4294901760
    %5047 = vmatpush1.msra.mxu0 %v5046
    %5048 = vmatprep.subr.mxu0 0.0
    %5049 = vmatpush1.msra.mxu0 0.0
    %5050 = vmatprep.subr.mxu0 0.0
    %5051 = vmatpush1.msra.mxu0 0.0
    %5052 = vmatprep.subr.mxu0 0.0
    %5053 = vmatpush1.msra.mxu0 0.0
    %5054 = vmatprep.subr.mxu0 0.0
    %5055 = vmatpush1.msra.mxu0 0.0
    %5056 = vmatprep.subr.mxu0 0.0
    %5057 = vmatpush1.msra.mxu0 0.0
    %5058 = vmatprep.subr.mxu0 0.0
    %5059 = vmatpush1.msra.mxu0 0.0
    %5060 = vmatprep.subr.mxu0 0.0
    %5061 = vmatpush1.msra.mxu0 0.0
    %5062 = vmatprep.subr.mxu0 0.0
    %5063 = vmatpush1.msra.mxu0 0.0
    %5064 = vmatprep.subr.mxu0 0.0
    %5065 = vmatpush1.msra.mxu0 0.0
    %5066 = vmatprep.subr.mxu0 0.0
    %5067 = vmatpush1.msra.mxu0 0.0
    %5068 = vmatprep.subr.mxu0 0.0
    %5069 = vmatpush1.msra.mxu0 0.0
    %5070 = vmatprep.subr.mxu0 0.0
    %5071 = vmatpush1.msra.mxu0 0.0
    %5072 = vmatprep.subr.mxu0 0.0
    %5073 = vmatpush1.msra.mxu0 0.0
    %5074 = vmatprep.subr.mxu0 0.0
    %5075 = vmatpush1.msra.mxu0 0.0
    %5076 = vmatprep.subr.mxu0 0.0
    %5077 = vmatpush1.msra.mxu0 0.0
    %5078 = vmatprep.subr.mxu0 0.0
    %5079 = vmatpush1.msra.mxu0 0.0
    %5080 = vmatprep.subr.mxu0 0.0
    %5081 = vmatpush1.msra.mxu0 0.0
    %5082 = vmatprep.subr.mxu0 0.0
    %5083 = vmatpush1.msra.mxu0 0.0
    %5084 = vmatprep.subr.mxu0 0.0
    %5085 = vmatpush1.msra.mxu0 0.0
    %5086 = vmatprep.subr.mxu0 0.0
    %5087 = vmatpush1.msra.mxu0 0.0
    %5088 = vmatprep.subr.mxu0 0.0
    %5089 = vmatpush1.msra.mxu0 0.0
    %5090 = vmatprep.subr.mxu0 0.0
    %5091 = vmatpush1.msra.mxu0 0.0
    %5092 = vmatprep.subr.mxu0 0.0
    %5093 = vmatpush1.msra.mxu0 0.0
    %5094 = vmatprep.subr.mxu0 0.0
    %5095 = vmatpush1.msra.mxu0 0.0
    %5096 = vmatprep.mubr.f32.mxu0 0.0
    %v5097 = vand.u32 %v4858, 4294901760
    %5098 = vmatmul.mubr.f32.gmra.mrb[0].mxu0 %v5097
    %v5099 = vpop.f32.mrb[0].mxu0
    %v5100 = vadd.f32 %v4948, %v5099
    %v5101 = vpop.f32.mrb[0].mxu0
    %v5102 = vadd.f32 %v4950, %v5101
    %5103 = vdwg.mxu0
    %v5104 = vand.u32 %v19, 4294901760
    %v5105 = vsub.f32 %v19, %v5104
    %5106 = vmatprep.subr.mxu0 %v5105
    %v5107 = vand.u32 %v18, 4294901760
    %v5108 = vsub.f32 %v18, %v5107
    %5109 = vmatpush1.msra.mxu0 %v5108
    %v5110 = vand.u32 %v21, 4294901760
    %v5111 = vsub.f32 %v21, %v5110
    %5112 = vmatprep.subr.mxu0 %v5111
    %v5113 = vand.u32 %v20, 4294901760
    %v5114 = vsub.f32 %v20, %v5113
    %5115 = vmatpush1.msra.mxu0 %v5114
    %v5116 = vand.u32 %v23, 4294901760
    %v5117 = vsub.f32 %v23, %v5116
    %5118 = vmatprep.subr.mxu0 %v5117
    %v5119 = vand.u32 %v22, 4294901760
    %v5120 = vsub.f32 %v22, %v5119
    %5121 = vmatpush1.msra.mxu0 %v5120
    %v5122 = vand.u32 %v25, 4294901760
    %v5123 = vsub.f32 %v25, %v5122
    %5124 = vmatprep.subr.mxu0 %v5123
    %v5125 = vand.u32 %v24, 4294901760
    %v5126 = vsub.f32 %v24, %v5125
    %5127 = vmatpush1.msra.mxu0 %v5126
    %v5128 = vand.u32 %v27, 4294901760
    %v5129 = vsub.f32 %v27, %v5128
    %5130 = vmatprep.subr.mxu0 %v5129
    %v5131 = vand.u32 %v26, 4294901760
    %v5132 = vsub.f32 %v26, %v5131
    %5133 = vmatpush1.msra.mxu0 %v5132
    %v5134 = vand.u32 %v29, 4294901760
    %v5135 = vsub.f32 %v29, %v5134
    %5136 = vmatprep.subr.mxu0 %v5135
    %v5137 = vand.u32 %v28, 4294901760
    %v5138 = vsub.f32 %v28, %v5137
    %5139 = vmatpush1.msra.mxu0 %v5138
    %v5140 = vand.u32 %v31, 4294901760
    %v5141 = vsub.f32 %v31, %v5140
    %5142 = vmatprep.subr.mxu0 %v5141
    %v5143 = vand.u32 %v30, 4294901760
    %v5144 = vsub.f32 %v30, %v5143
    %5145 = vmatpush1.msra.mxu0 %v5144
    %v5146 = vand.u32 %v33, 4294901760
    %v5147 = vsub.f32 %v33, %v5146
    %5148 = vmatprep.subr.mxu0 %v5147
    %v5149 = vand.u32 %v32, 4294901760
    %v5150 = vsub.f32 %v32, %v5149
    %5151 = vmatpush1.msra.mxu0 %v5150
    %5152 = vmatprep.subr.mxu0 0.0
    %5153 = vmatpush1.msra.mxu0 0.0
    %5154 = vmatprep.subr.mxu0 0.0
    %5155 = vmatpush1.msra.mxu0 0.0
    %5156 = vmatprep.subr.mxu0 0.0
    %5157 = vmatpush1.msra.mxu0 0.0
    %5158 = vmatprep.subr.mxu0 0.0
    %5159 = vmatpush1.msra.mxu0 0.0
    %5160 = vmatprep.subr.mxu0 0.0
    %5161 = vmatpush1.msra.mxu0 0.0
    %5162 = vmatprep.subr.mxu0 0.0
    %5163 = vmatpush1.msra.mxu0 0.0
    %5164 = vmatprep.subr.mxu0 0.0
    %5165 = vmatpush1.msra.mxu0 0.0
    %5166 = vmatprep.subr.mxu0 0.0
    %5167 = vmatpush1.msra.mxu0 0.0
    %5168 = vmatprep.subr.mxu0 0.0
    %5169 = vmatpush1.msra.mxu0 0.0
    %5170 = vmatprep.subr.mxu0 0.0
    %5171 = vmatpush1.msra.mxu0 0.0
    %5172 = vmatprep.subr.mxu0 0.0
    %5173 = vmatpush1.msra.mxu0 0.0
    %5174 = vmatprep.subr.mxu0 0.0
    %5175 = vmatpush1.msra.mxu0 0.0
    %5176 = vmatprep.subr.mxu0 0.0
    %5177 = vmatpush1.msra.mxu0 0.0
    %5178 = vmatprep.subr.mxu0 0.0
    %5179 = vmatpush1.msra.mxu0 0.0
    %5180 = vmatprep.subr.mxu0 0.0
    %5181 = vmatpush1.msra.mxu0 0.0
    %5182 = vmatprep.subr.mxu0 0.0
    %5183 = vmatpush1.msra.mxu0 0.0
    %5184 = vmatprep.subr.mxu0 0.0
    %5185 = vmatpush1.msra.mxu0 0.0
    %5186 = vmatprep.subr.mxu0 0.0
    %5187 = vmatpush1.msra.mxu0 0.0
    %5188 = vmatprep.subr.mxu0 0.0
    %5189 = vmatpush1.msra.mxu0 0.0
    %5190 = vmatprep.subr.mxu0 0.0
    %5191 = vmatpush1.msra.mxu0 0.0
    %5192 = vmatprep.subr.mxu0 0.0
    %5193 = vmatpush1.msra.mxu0 0.0
    %5194 = vmatprep.subr.mxu0 0.0
    %5195 = vmatpush1.msra.mxu0 0.0
    %5196 = vmatprep.subr.mxu0 0.0
    %5197 = vmatpush1.msra.mxu0 0.0
    %5198 = vmatprep.subr.mxu0 0.0
    %5199 = vmatpush1.msra.mxu0 0.0
    %5200 = vmatprep.mubr.f32.mxu0 0.0
    %v5201 = vand.u32 %v4858, 4294901760
    %v5202 = vsub.f32 %v4858, %v5201
    %5203 = vmatmul.mubr.f32.gmra.mrb[0].mxu0 %v5202
    %v5204 = vpop.f32.mrb[0].mxu0
    %v5205 = vadd.f32 %v5100, %v5204
    %v5206 = vpop.f32.mrb[0].mxu0
    %v5207 = vadd.f32 %v5102, %v5206
    %5208 = vdwg.mxu0
    %v5209 = vand.u32 %v19, 4294901760
    %5210 = vmatprep.subr.mxu0 %v5209
    %v5211 = vand.u32 %v18, 4294901760
    %5212 = vmatpush1.msra.mxu0 %v5211
    %v5213 = vand.u32 %v21, 4294901760
    %5214 = vmatprep.subr.mxu0 %v5213
    %v5215 = vand.u32 %v20, 4294901760
    %5216 = vmatpush1.msra.mxu0 %v5215
    %v5217 = vand.u32 %v23, 4294901760
    %5218 = vmatprep.subr.mxu0 %v5217
    %v5219 = vand.u32 %v22, 4294901760
    %5220 = vmatpush1.msra.mxu0 %v5219
    %v5221 = vand.u32 %v25, 4294901760
    %5222 = vmatprep.subr.mxu0 %v5221
    %v5223 = vand.u32 %v24, 4294901760
    %5224 = vmatpush1.msra.mxu0 %v5223
    %v5225 = vand.u32 %v27, 4294901760
    %5226 = vmatprep.subr.mxu0 %v5225
    %v5227 = vand.u32 %v26, 4294901760
    %5228 = vmatpush1.msra.mxu0 %v5227
    %v5229 = vand.u32 %v29, 4294901760
    %5230 = vmatprep.subr.mxu0 %v5229
    %v5231 = vand.u32 %v28, 4294901760
    %5232 = vmatpush1.msra.mxu0 %v5231
    %v5233 = vand.u32 %v31, 4294901760
    %5234 = vmatprep.subr.mxu0 %v5233
    %v5235 = vand.u32 %v30, 4294901760
    %5236 = vmatpush1.msra.mxu0 %v5235
    %v5237 = vand.u32 %v33, 4294901760
    %5238 = vmatprep.subr.mxu0 %v5237
    %v5239 = vand.u32 %v32, 4294901760
    %5240 = vmatpush1.msra.mxu0 %v5239
    %5241 = vmatprep.subr.mxu0 0.0
    %5242 = vmatpush1.msra.mxu0 0.0
    %5243 = vmatprep.subr.mxu0 0.0
    %5244 = vmatpush1.msra.mxu0 0.0
    %5245 = vmatprep.subr.mxu0 0.0
    %5246 = vmatpush1.msra.mxu0 0.0
    %5247 = vmatprep.subr.mxu0 0.0
    %5248 = vmatpush1.msra.mxu0 0.0
    %5249 = vmatprep.subr.mxu0 0.0
    %5250 = vmatpush1.msra.mxu0 0.0
    %5251 = vmatprep.subr.mxu0 0.0
    %5252 = vmatpush1.msra.mxu0 0.0
    %5253 = vmatprep.subr.mxu0 0.0
    %5254 = vmatpush1.msra.mxu0 0.0
    %5255 = vmatprep.subr.mxu0 0.0
    %5256 = vmatpush1.msra.mxu0 0.0
    %5257 = vmatprep.subr.mxu0 0.0
    %5258 = vmatpush1.msra.mxu0 0.0
    %5259 = vmatprep.subr.mxu0 0.0
    %5260 = vmatpush1.msra.mxu0 0.0
    %5261 = vmatprep.subr.mxu0 0.0
    %5262 = vmatpush1.msra.mxu0 0.0
    %5263 = vmatprep.subr.mxu0 0.0
    %5264 = vmatpush1.msra.mxu0 0.0
    %5265 = vmatprep.subr.mxu0 0.0
    %5266 = vmatpush1.msra.mxu0 0.0
    %5267 = vmatprep.subr.mxu0 0.0
    %5268 = vmatpush1.msra.mxu0 0.0
    %5269 = vmatprep.subr.mxu0 0.0
    %5270 = vmatpush1.msra.mxu0 0.0
    %5271 = vmatprep.subr.mxu0 0.0
    %5272 = vmatpush1.msra.mxu0 0.0
    %5273 = vmatprep.subr.mxu0 0.0
    %5274 = vmatpush1.msra.mxu0 0.0
    %5275 = vmatprep.subr.mxu0 0.0
    %5276 = vmatpush1.msra.mxu0 0.0
    %5277 = vmatprep.subr.mxu0 0.0
    %5278 = vmatpush1.msra.mxu0 0.0
    %5279 = vmatprep.subr.mxu0 0.0
    %5280 = vmatpush1.msra.mxu0 0.0
    %5281 = vmatprep.subr.mxu0 0.0
    %5282 = vmatpush1.msra.mxu0 0.0
    %5283 = vmatprep.subr.mxu0 0.0
    %5284 = vmatpush1.msra.mxu0 0.0
    %5285 = vmatprep.subr.mxu0 0.0
    %5286 = vmatpush1.msra.mxu0 0.0
    %5287 = vmatprep.subr.mxu0 0.0
    %5288 = vmatpush1.msra.mxu0 0.0
    %5289 = vmatprep.mubr.f32.mxu0 0.0
    %v5290 = vand.u32 %v4858, 4294901760
    %v5291 = vsub.f32 %v4858, %v5290
    %v5292 = vand.u32 %v5291, 4294901760
    %5293 = vmatmul.mubr.f32.gmra.mrb[0].mxu0 %v5292
    %v5294 = vpop.f32.mrb[0].mxu0
    %v5295 = vadd.f32 %v5205, %v5294
    %v5296 = vpop.f32.mrb[0].mxu0
    %v5297 = vadd.f32 %v5207, %v5296
    %5298 = vdwg.mxu0
    %v5299 = vand.u32 %v19, 4294901760
    %v5300 = vsub.f32 %v19, %v5299
    %v5301 = vand.u32 %v5300, 4294901760
    %5302 = vmatprep.subr.mxu0 %v5301
    %v5303 = vand.u32 %v18, 4294901760
    %v5304 = vsub.f32 %v18, %v5303
    %v5305 = vand.u32 %v5304, 4294901760
    %5306 = vmatpush1.msra.mxu0 %v5305
    %v5307 = vand.u32 %v21, 4294901760
    %v5308 = vsub.f32 %v21, %v5307
    %v5309 = vand.u32 %v5308, 4294901760
    %5310 = vmatprep.subr.mxu0 %v5309
    %v5311 = vand.u32 %v20, 4294901760
    %v5312 = vsub.f32 %v20, %v5311
    %v5313 = vand.u32 %v5312, 4294901760
    %5314 = vmatpush1.msra.mxu0 %v5313
    %v5315 = vand.u32 %v23, 4294901760
    %v5316 = vsub.f32 %v23, %v5315
    %v5317 = vand.u32 %v5316, 4294901760
    %5318 = vmatprep.subr.mxu0 %v5317
    %v5319 = vand.u32 %v22, 4294901760
    %v5320 = vsub.f32 %v22, %v5319
    %v5321 = vand.u32 %v5320, 4294901760
    %5322 = vmatpush1.msra.mxu0 %v5321
    %v5323 = vand.u32 %v25, 4294901760
    %v5324 = vsub.f32 %v25, %v5323
    %v5325 = vand.u32 %v5324, 4294901760
    %5326 = vmatprep.subr.mxu0 %v5325
    %v5327 = vand.u32 %v24, 4294901760
    %v5328 = vsub.f32 %v24, %v5327
    %v5329 = vand.u32 %v5328, 4294901760
    %5330 = vmatpush1.msra.mxu0 %v5329
    %v5331 = vand.u32 %v27, 4294901760
    %v5332 = vsub.f32 %v27, %v5331
    %v5333 = vand.u32 %v5332, 4294901760
    %5334 = vmatprep.subr.mxu0 %v5333
    %v5335 = vand.u32 %v26, 4294901760
    %v5336 = vsub.f32 %v26, %v5335
    %v5337 = vand.u32 %v5336, 4294901760
    %5338 = vmatpush1.msra.mxu0 %v5337
    %v5339 = vand.u32 %v29, 4294901760
    %v5340 = vsub.f32 %v29, %v5339
    %v5341 = vand.u32 %v5340, 4294901760
    %5342 = vmatprep.subr.mxu0 %v5341
    %v5343 = vand.u32 %v28, 4294901760
    %v5344 = vsub.f32 %v28, %v5343
    %v5345 = vand.u32 %v5344, 4294901760
    %5346 = vmatpush1.msra.mxu0 %v5345
    %v5347 = vand.u32 %v31, 4294901760
    %v5348 = vsub.f32 %v31, %v5347
    %v5349 = vand.u32 %v5348, 4294901760
    %5350 = vmatprep.subr.mxu0 %v5349
    %v5351 = vand.u32 %v30, 4294901760
    %v5352 = vsub.f32 %v30, %v5351
    %v5353 = vand.u32 %v5352, 4294901760
    %5354 = vmatpush1.msra.mxu0 %v5353
    %v5355 = vand.u32 %v33, 4294901760
    %v5356 = vsub.f32 %v33, %v5355
    %v5357 = vand.u32 %v5356, 4294901760
    %5358 = vmatprep.subr.mxu0 %v5357
    %v5359 = vand.u32 %v32, 4294901760
    %v5360 = vsub.f32 %v32, %v5359
    %v5361 = vand.u32 %v5360, 4294901760
    %5362 = vmatpush1.msra.mxu0 %v5361
    %5363 = vmatprep.subr.mxu0 0.0
    %5364 = vmatpush1.msra.mxu0 0.0
    %5365 = vmatprep.subr.mxu0 0.0
    %5366 = vmatpush1.msra.mxu0 0.0
    %5367 = vmatprep.subr.mxu0 0.0
    %5368 = vmatpush1.msra.mxu0 0.0
    %5369 = vmatprep.subr.mxu0 0.0
    %5370 = vmatpush1.msra.mxu0 0.0
    %5371 = vmatprep.subr.mxu0 0.0
    %5372 = vmatpush1.msra.mxu0 0.0
    %5373 = vmatprep.subr.mxu0 0.0
    %5374 = vmatpush1.msra.mxu0 0.0
    %5375 = vmatprep.subr.mxu0 0.0
    %5376 = vmatpush1.msra.mxu0 0.0
    %5377 = vmatprep.subr.mxu0 0.0
    %5378 = vmatpush1.msra.mxu0 0.0
    %5379 = vmatprep.subr.mxu0 0.0
    %5380 = vmatpush1.msra.mxu0 0.0
    %5381 = vmatprep.subr.mxu0 0.0
    %5382 = vmatpush1.msra.mxu0 0.0
    %5383 = vmatprep.subr.mxu0 0.0
    %5384 = vmatpush1.msra.mxu0 0.0
    %5385 = vmatprep.subr.mxu0 0.0
    %5386 = vmatpush1.msra.mxu0 0.0
    %5387 = vmatprep.subr.mxu0 0.0
    %5388 = vmatpush1.msra.mxu0 0.0
    %5389 = vmatprep.subr.mxu0 0.0
    %5390 = vmatpush1.msra.mxu0 0.0
    %5391 = vmatprep.subr.mxu0 0.0
    %5392 = vmatpush1.msra.mxu0 0.0
    %5393 = vmatprep.subr.mxu0 0.0
    %5394 = vmatpush1.msra.mxu0 0.0
    %5395 = vmatprep.subr.mxu0 0.0
    %5396 = vmatpush1.msra.mxu0 0.0
    %5397 = vmatprep.subr.mxu0 0.0
    %5398 = vmatpush1.msra.mxu0 0.0
    %5399 = vmatprep.subr.mxu0 0.0
    %5400 = vmatpush1.msra.mxu0 0.0
    %5401 = vmatprep.subr.mxu0 0.0
    %5402 = vmatpush1.msra.mxu0 0.0
    %5403 = vmatprep.subr.mxu0 0.0
    %5404 = vmatpush1.msra.mxu0 0.0
    %5405 = vmatprep.subr.mxu0 0.0
    %5406 = vmatpush1.msra.mxu0 0.0
    %5407 = vmatprep.subr.mxu0 0.0
    %5408 = vmatpush1.msra.mxu0 0.0
    %5409 = vmatprep.subr.mxu0 0.0
    %5410 = vmatpush1.msra.mxu0 0.0
    %5411 = vmatprep.mubr.f32.mxu0 0.0
    %v5412 = vand.u32 %v4858, 4294901760
    %5413 = vmatmul.mubr.f32.gmra.mrb[0].mxu0 %v5412
    %v5414 = vpop.f32.mrb[0].mxu0
    %v5415 = vadd.f32 %v5295, %v5414
    %v5416 = vpop.f32.mrb[0].mxu0
    %v5417 = vadd.f32 %v5297, %v5416
    %5418 = vdwg.mxu0
    %v5419 = vand.u32 %v19, 4294901760
    %5420 = vmatprep.subr.mxu0 %v5419
    %v5421 = vand.u32 %v18, 4294901760
    %5422 = vmatpush1.msra.mxu0 %v5421
    %v5423 = vand.u32 %v21, 4294901760
    %5424 = vmatprep.subr.mxu0 %v5423
    %v5425 = vand.u32 %v20, 4294901760
    %5426 = vmatpush1.msra.mxu0 %v5425
    %v5427 = vand.u32 %v23, 4294901760
    %5428 = vmatprep.subr.mxu0 %v5427
    %v5429 = vand.u32 %v22, 4294901760
    %5430 = vmatpush1.msra.mxu0 %v5429
    %v5431 = vand.u32 %v25, 4294901760
    %5432 = vmatprep.subr.mxu0 %v5431
    %v5433 = vand.u32 %v24, 4294901760
    %5434 = vmatpush1.msra.mxu0 %v5433
    %v5435 = vand.u32 %v27, 4294901760
    %5436 = vmatprep.subr.mxu0 %v5435
    %v5437 = vand.u32 %v26, 4294901760
    %5438 = vmatpush1.msra.mxu0 %v5437
    %v5439 = vand.u32 %v29, 4294901760
    %5440 = vmatprep.subr.mxu0 %v5439
    %v5441 = vand.u32 %v28, 4294901760
    %5442 = vmatpush1.msra.mxu0 %v5441
    %v5443 = vand.u32 %v31, 4294901760
    %5444 = vmatprep.subr.mxu0 %v5443
    %v5445 = vand.u32 %v30, 4294901760
    %5446 = vmatpush1.msra.mxu0 %v5445
    %v5447 = vand.u32 %v33, 4294901760
    %5448 = vmatprep.subr.mxu0 %v5447
    %v5449 = vand.u32 %v32, 4294901760
    %5450 = vmatpush1.msra.mxu0 %v5449
    %5451 = vmatprep.subr.mxu0 0.0
    %5452 = vmatpush1.msra.mxu0 0.0
    %5453 = vmatprep.subr.mxu0 0.0
    %5454 = vmatpush1.msra.mxu0 0.0
    %5455 = vmatprep.subr.mxu0 0.0
    %5456 = vmatpush1.msra.mxu0 0.0
    %5457 = vmatprep.subr.mxu0 0.0
    %5458 = vmatpush1.msra.mxu0 0.0
    %5459 = vmatprep.subr.mxu0 0.0
    %5460 = vmatpush1.msra.mxu0 0.0
    %5461 = vmatprep.subr.mxu0 0.0
    %5462 = vmatpush1.msra.mxu0 0.0
    %5463 = vmatprep.subr.mxu0 0.0
    %5464 = vmatpush1.msra.mxu0 0.0
    %5465 = vmatprep.subr.mxu0 0.0
    %5466 = vmatpush1.msra.mxu0 0.0
    %5467 = vmatprep.subr.mxu0 0.0
    %5468 = vmatpush1.msra.mxu0 0.0
    %5469 = vmatprep.subr.mxu0 0.0
    %5470 = vmatpush1.msra.mxu0 0.0
    %5471 = vmatprep.subr.mxu0 0.0
    %5472 = vmatpush1.msra.mxu0 0.0
    %5473 = vmatprep.subr.mxu0 0.0
    %5474 = vmatpush1.msra.mxu0 0.0
    %5475 = vmatprep.subr.mxu0 0.0
    %5476 = vmatpush1.msra.mxu0 0.0
    %5477 = vmatprep.subr.mxu0 0.0
    %5478 = vmatpush1.msra.mxu0 0.0
    %5479 = vmatprep.subr.mxu0 0.0
    %5480 = vmatpush1.msra.mxu0 0.0
    %5481 = vmatprep.subr.mxu0 0.0
    %5482 = vmatpush1.msra.mxu0 0.0
    %5483 = vmatprep.subr.mxu0 0.0
    %5484 = vmatpush1.msra.mxu0 0.0
    %5485 = vmatprep.subr.mxu0 0.0
    %5486 = vmatpush1.msra.mxu0 0.0
    %5487 = vmatprep.subr.mxu0 0.0
    %5488 = vmatpush1.msra.mxu0 0.0
    %5489 = vmatprep.subr.mxu0 0.0
    %5490 = vmatpush1.msra.mxu0 0.0
    %5491 = vmatprep.subr.mxu0 0.0
    %5492 = vmatpush1.msra.mxu0 0.0
    %5493 = vmatprep.subr.mxu0 0.0
    %5494 = vmatpush1.msra.mxu0 0.0
    %5495 = vmatprep.subr.mxu0 0.0
    %5496 = vmatpush1.msra.mxu0 0.0
    %5497 = vmatprep.subr.mxu0 0.0
    %5498 = vmatpush1.msra.mxu0 0.0
    %5499 = vmatprep.mubr.f32.mxu0 0.0
    %v5500 = vand.u32 %v4858, 4294901760
    %5501 = vmatmul.mubr.f32.gmra.mrb[0].mxu0 %v5500
    %v5502 = vpop.f32.mrb[0].mxu0
    %v5503 = vadd.f32 %v5415, %v5502
    %v5504 = vpop.f32.mrb[0].mxu0
    %v5505 = vadd.f32 %v5417, %v5504
    %5506 = vdwg.mxu0
    %v5509 = vcombine.low %v5503, %v5505
    %v5511 = vadd.f32 %v4857, %v5509
    %v5512 = vxor.u32 %v5511, 2147483648
    %v5513 = vmul.f32 %v5512, 1.442695
    %v5514 = vpow.pop %v5513
    %v5515 = vadd.f32 %v5514, 1.0
    %v5516 = vrcp.pop %v5515
    %v5517 = vmul.f32 1.0, %v5516
    %v5518 = vmul.f32 %v5517, %v5505
    %v5520 = vrot.slane %v4857, 4
    %v5522 = vadd.f32 %v5520, %v5518
    %v5523 = vtanh.pop %v5522
    %v5524 = vsub.f32 1.0, %v5517
    %5526 = vrot.lane.b32.xlu0 %v5523, 64
    %v5527 = vpop.permute.xlu0 %5526
    %v5529 = vmul.f32 %v5524, %v5527
    %v5530 = vmul.f32 %v5517, %v4844
    %v5531 = vadd.f32 %v5529, %v5530
    %5533 = vrot.lane.b32.xlu0 %v5531, 64
    %v5534 = vpop.permute.xlu0 %5533
    %s5536 = scalar_lea.vmem [#allocation3], 28
    %5537 = vst.msk [vmem:[%s5536] sm:$0xf] %vm727, %v5534
    %5538 = vrot.lane.b32.xlu0 %v5531, 32
    %v5539 = vpop.permute.xlu0 %5538
    %5541 = vst.msk [vmem:[#allocation2] sm:$0xf] %vm727, %v5539
    %v5542 = vld [vmem:[#allocation3] sm:$0xf]
    %v5543 = vld [vmem:[#allocation3 + $0x4] sm:$0xf]
    %v5544 = vld [vmem:[#allocation3 + $0x8] sm:$0xf]
    %v5545 = vld [vmem:[#allocation3 + $0xc] sm:$0xf]
    %v5546 = vld [vmem:[#allocation3 + $0x10] sm:$0xf]
    %v5547 = vld [vmem:[#allocation3 + $0x14] sm:$0xf]
    %v5548 = vld [vmem:[#allocation3 + $0x18] sm:$0xf]
    %v5549 = vld [vmem:[#allocation3 + $0x1c] sm:$0xf]
    %v5550 = vld [vmem:[#allocation2] sm:$0xf]
    %v5551 = vld [vmem:[#allocation2 + $0x4] sm:$0xf]
    %v5552 = vld [vmem:[#allocation2 + $0x8] sm:$0xf]
    %v5553 = vld [vmem:[#allocation2 + $0xc] sm:$0xf]
    %v5554 = vld [vmem:[#allocation2 + $0x10] sm:$0xf]
    %v5555 = vld [vmem:[#allocation2 + $0x14] sm:$0xf]
    %v5556 = vld [vmem:[#allocation2 + $0x18] sm:$0xf]
    %v5557 = vld [vmem:[#allocation2 + $0x1c] sm:$0xf]
    %v5558 = vadd.f32 %v5542, %v5550
    %v5559 = vadd.f32 %v5543, %v5551
    %v5560 = vadd.f32 %v5544, %v5552
    %v5561 = vadd.f32 %v5545, %v5553
    %v5562 = vadd.f32 %v5546, %v5554
    %v5563 = vadd.f32 %v5547, %v5555
    %v5564 = vadd.f32 %v5548, %v5556
    %v5565 = vadd.f32 %v5549, %v5557
    %5566 = vst.msk [vmem:[#allocation3] sm:$0xf] %vm727, %v5558
    %5567 = vst.msk [vmem:[#allocation3 + $0x4] sm:$0xf] %vm727, %v5559
    %5568 = vst.msk [vmem:[#allocation3 + $0x8] sm:$0xf] %vm727, %v5560
    %5569 = vst.msk [vmem:[#allocation3 + $0xc] sm:$0xf] %vm727, %v5561
    %5570 = vst.msk [vmem:[#allocation3 + $0x10] sm:$0xf] %vm727, %v5562
    %5571 = vst.msk [vmem:[#allocation3 + $0x14] sm:$0xf] %vm727, %v5563
    %5572 = vst.msk [vmem:[#allocation3 + $0x18] sm:$0xf] %vm727, %v5564
    %5573 = vst.msk [vmem:[#allocation3 + $0x1c] sm:$0xf] %vm727, %v5565
    %5574 = vst.msk [vmem:[#allocation5] sm:$0xf] %vm727, %v5534
    %s5575 = scalar_lea.vmem [#allocation5], 4
    %5576 = vst.msk [vmem:[%s5575] sm:$0xf] %vm727, %v5539
    // Predicated region
    $region14: #{encoder_forward.1} parent=1 // pred_check
      _
    $region15: #{encoder_forward.1} parent=1 // pred_check_branch
      %5578 = sbr.rel (0) target = $region17
    $region16: #{encoder_forward.1} parent=1 // pred_region
      %s5580 = ssub.s32 512, 512
      %5581 = vsyncadd [#allocation4], %s5580
      %s5582 = sshll.u32 [#allocation3], 4
      %s5583 = int_to_ptr.vmem [resolvable:$true] %s5582
      %5588 = dma.vmem_to_hbm [thread:$0]  %s5583, 512, %s3, [#allocation4], 64, 64, 4
    $region17: #{encoder_forward.1} parent=1 // pred_fallthru
      _
    // Predicated region
    $region18: #{encoder_forward.1} parent=1 // pred_check
      _
    $region19: #{encoder_forward.1} parent=1 // pred_check_branch
      %5590 = sbr.rel (0) target = $region21
    $region20: #{encoder_forward.1} parent=1 // pred_region
      %s5592 = ssub.s32 128, 128
      %5593 = vsyncadd [#allocation6], %s5592
      %s5594 = sshll.u32 [#allocation5], 4
      %s5595 = int_to_ptr.vmem [resolvable:$true] %s5594
      %5600 = dma.vmem_to_hbm [thread:$0]  %s5595, 128, %s4, [#allocation6], 64, 64, 4
    $region21: #{encoder_forward.1} parent=1 // pred_fallthru
      _
    // Predicated region
    $region22: #{encoder_forward.1} parent=1 // pred_check
      _
    $region23: #{encoder_forward.1} parent=1 // pred_check_branch
      %5602 = sbr.rel (0) target = $region25
    $region24: #{encoder_forward.1} parent=1 // pred_region
      %5603 = dma.done [#allocation4], 512
    $region25: #{encoder_forward.1} parent=1 // pred_fallthru
      _
    // Predicated region
    $region26: #{encoder_forward.1} parent=1 // pred_check
      _
    $region27: #{encoder_forward.1} parent=1 // pred_check_branch
      %5605 = sbr.rel (0) target = $region29
    $region28: #{encoder_forward.1} parent=1 // pred_region
      %5606 = dma.done [#allocation6], 128
    $region29: #{encoder_forward.1} parent=1 // pred_fallthru
      _
    %5607 = vsyncpa [#allocation4], 1
    %5608 = vsyncpa [#allocation6], 1

</llo_original>
